<compile_context>
chip_gen: v6e
topology: v6e:2x2x1
jax: 0.10.0
libtpu: 0.0.40
codegen_flags: <defaults>
</compile_context>

<pallas_src>
import jax
import jax.numpy as jnp
from jax import lax
from jax.experimental import pallas as pl
from jax.experimental.pallas import tpu as pltpu


def rnn_kernel(doc_ref, wx_ref, b1_ref, w8pow_ref, wsmall_ref, whT_ref,
               w2_ref, b2_ref, out_ref, h_scratch):
    tile = pl.program_id(0)

    # hidden = zeros((1, 1, H)) -> (1, H) VMEM scratch carried across tiles.
    @pl.when(tile == 0)
    def _init():
        h_scratch[...] = jnp.zeros_like(h_scratch)

    tt = doc_ref.shape[0]        # time-tile size (static)
    h_dim = wx_ref.shape[1]      # H (static)
    g = tt // 8                  # number of 8-token sub-blocks per tile

    # ---- Hoisted input projection: one bf16 (Tt, E) @ (E, H) MXU matmul. ----
    # Off the serial critical path; f32 accumulate + f32 bias.
    xproj = (
        jnp.dot(doc_ref[...], wx_ref[...], preferred_element_type=jnp.float32)
        + b1_ref[...]
    )                            # (Tt, H) f32

    # ---- Level 1: combine 8-token sub-blocks against Wh^(8u) powers. ----
    # g independent (8,H)@(H,H) matmuls over vreg-aligned slices (pipelineable).
    b_acc = jnp.zeros((8, h_dim), jnp.float32)
    for v in range(g):
        blk = xproj[8 * v:8 * (v + 1), :]                                 # (8, H)
        wpow = w8pow_ref[(g - 1 - v) * h_dim:(g - v) * h_dim, :]          # Wh^(8*(g-1-v))
        b_acc = b_acc + jnp.dot(blk, wpow, preferred_element_type=jnp.float32)

    # ---- Level 2: combine the 8 residue rows against Wh^0..Wh^7. ----
    c = jnp.zeros((1, h_dim), jnp.float32)
    for r in range(8):
        wpow = wsmall_ref[(7 - r) * h_dim:(8 - r) * h_dim, :]             # Wh^(7-r)
        c = c + jnp.dot(b_acc[r:r + 1, :], wpow,
                        preferred_element_type=jnp.float32)

    # ---- Serial combine: the ONLY matmul on the recurrence critical path. ----
    h_new = (
        jnp.dot(h_scratch[...], whT_ref[...], preferred_element_type=jnp.float32)
        + c
    )
    h_scratch[...] = h_new       # single VMEM write of the carry per tile

    # output = l2(hidden).  Written every tile (tiny (1,H)@(H,O)); the value
    # left after the final tile is what gets written back to HBM.
    out_ref[...] = (
        jnp.dot(h_new, w2_ref[...], preferred_element_type=jnp.float32)
        + b2_ref[...]
    )


def rnn_forward(doc, w1, b1, w2, b2, *, block_t=128):
    """doc: (T, E) f32 packed token embeddings (batch==1, as in the module).
    w1: (H, E+H) torch-layout.  b1: (H,).  w2: (O, H) torch-layout.  b2: (O,)."""
    T, E = doc.shape
    H = w1.shape[0]
    O = w2.shape[0]
    assert T % block_t == 0, "demo requires T to be a multiple of the time tile"
    # TODO(synk): ragged T (last partial tile) needs a masked tail; padded
    # tokens do NOT contribute zero automatically (no gating/nonlinearity).
    assert block_t % 8 == 0
    assert H % 128 == 0 and E % 128 == 0

    g = block_t // 8

    # Split the concat-Linear and pre-transpose to (in, out) for row-vec matmul.
    # The big projection operands go to bf16 (MXU fast path); the recurrence
    # combination stays f32 for accuracy.
    wx = jnp.transpose(w1[:, :E]).astype(jnp.bfloat16)     # (E, H) bf16
    wh = jnp.transpose(w1[:, E:]).astype(jnp.float32)      # (H, H) f32
    b1_row = b1.reshape(1, H).astype(jnp.float32)
    w2_t = jnp.transpose(w2).astype(jnp.float32)           # (H, O)
    b2_row = b2.reshape(1, O).astype(jnp.float32)
    doc_bf16 = doc.astype(jnp.bfloat16)

    # Host-side precompute of Wh powers (f32): Wh^0..Wh^7, Wh^(8u) u<g, Wh^Tt.
    powers = [jnp.eye(H, dtype=jnp.float32)]
    for _ in range(block_t):
        powers.append(powers[-1] @ wh)
    wsmall = jnp.concatenate(powers[0:8], axis=0)                       # (8H, H)
    w8pow = jnp.concatenate([powers[8 * u] for u in range(g)], axis=0)  # (gH, H)
    whT = powers[block_t]                                               # (H, H)

    n_blocks = T // block_t
    # Grid-invariant resident blocks.  At vocab-scale E on v7x (64 MiB VMEM),
    # add pipeline_mode=pl.Buffered(1) here and/or stream Wx over a second
    # ("arbitrary") grid axis; irrelevant at these demo shapes (~3.5 MiB total).
    resident = lambda shape: pl.BlockSpec(shape, lambda i: (0, 0))

    grid_spec = pltpu.PrefetchScalarGridSpec(
        num_scalar_prefetch=0,
        grid=(n_blocks,),
        in_specs=[
            # Document streamed over time (auto double-buffered DMA), bf16.
            pl.BlockSpec((block_t, E), lambda i: (i, 0)),
            resident((E, H)),          # Wx (bf16)
            resident((1, H)),          # b1
            resident((g * H, H)),      # Wh^(8u) stack
            resident((8 * H, H)),      # Wh^0..Wh^7 stack
            resident((H, H)),          # Wh^Tt
            resident((H, O)),          # W2
            resident((1, O)),          # b2
        ],
        out_specs=resident((1, O)),
        scratch_shapes=[pltpu.VMEM((1, H), jnp.float32)],
    )

    return pl.pallas_call(
        rnn_kernel,
        out_shape=jax.ShapeDtypeStruct((1, O), jnp.float32),
        grid_spec=grid_spec,
        compiler_params=pltpu.CompilerParams(
            # Serial recurrence over time -> "arbitrary".
            dimension_semantics=("arbitrary",),
            vmem_limit_bytes=32 * 1024 * 1024,
        ),
    )(doc_bf16, wx, b1_row, w8pow, wsmall, whT, w2_t, b2_row)


def rnn_reference(doc, w1, b1, w2, b2):
    """Plain-JAX f32 mirror of the PyTorch forward, for the correctness check."""
    H = w1.shape[0]

    def cell(hidden, x_t):
        concatenated = jnp.concatenate([x_t[None, :], hidden], axis=1)
        hidden = concatenated @ w1.T + b1
        return hidden, None

    hidden0 = jnp.zeros((1, H), jnp.float32)
    hidden, _ = lax.scan(cell, hidden0, doc)
    return hidden @ w2.T + b2


if __name__ == "__main__":
    # Small synthetic sizes consistent with the module's forward.
    embedding_size = 256   # stands in for len(vocabulary_map); lane-aligned
    hidden_size = 128      # matches the module spec
    output_size = 2
    seq_len = 256          # two 128-token tiles -> exercises the cross-tile carry
    block_t = 128

    key = jax.random.PRNGKey(0)
    k_doc, k_wx, k_wh, k_b1, k_w2, k_b2 = jax.random.split(key, 6)

    # Document: sequence of token embeddings, batch==1, packed as (T, E).
    doc = jax.random.normal(k_doc, (seq_len, embedding_size), jnp.float32)

    # nn.Linear-layout params (weight (out, in), bias (out,)).  The recurrent
    # block of l1 is a scaled orthogonal matrix (spectral radius 0.985) so the
    # linear (no-nonlinearity) recurrence is well conditioned and the hidden
    # state carried between tiles contributes meaningfully to the check.
    w1_x = 0.02 * jax.random.normal(
        k_wx, (hidden_size, embedding_size), jnp.float32
    )
    q, _ = jnp.linalg.qr(
        jax.random.normal(k_wh, (hidden_size, hidden_size), jnp.float32)
    )
    w1_h = 0.985 * q
    w1 = jnp.concatenate([w1_x, w1_h], axis=1)            # (H, E+H)
    b1 = 0.02 * jax.random.normal(k_b1, (hidden_size,), jnp.float32)
    w2 = 0.1 * jax.random.normal(k_w2, (output_size, hidden_size), jnp.float32)
    b2 = 0.1 * jax.random.normal(k_b2, (output_size,), jnp.float32)

    out = rnn_forward(doc, w1, b1, w2, b2, block_t=block_t)
    out = jax.block_until_ready(out)

    ref = rnn_reference(doc, w1, b1, w2, b2)
    assert out.shape == (1, output_size)
    # bf16 MXU inputs for the projection -> looser tolerance than a pure-f32 run.
    assert jnp.allclose(out, ref, atol=5e-2, rtol=5e-2), (out, ref)

    print("KERNEL_OK")
</pallas_src>

<mosaic_0001>
module attributes {stable_mosaic.version = 11 : i64} {
  func.func @rnn_kernel(%arg0: i32, %arg1: memref<128x256xbf16, #tpu.memory_space<vmem>>, %arg2: memref<256x128xbf16, #tpu.memory_space<vmem>>, %arg3: memref<1x128xf32, #tpu.memory_space<vmem>>, %arg4: memref<2048x128xf32, #tpu.memory_space<vmem>>, %arg5: memref<1024x128xf32, #tpu.memory_space<vmem>>, %arg6: memref<128x128xf32, #tpu.memory_space<vmem>>, %arg7: memref<128x2xf32, #tpu.memory_space<vmem>>, %arg8: memref<1x2xf32, #tpu.memory_space<vmem>>, %arg9: memref<1x2xf32, #tpu.memory_space<vmem>>, %arg10: memref<1x128xf32, #tpu.memory_space<vmem>>) attributes {dimension_semantics = [#tpu.dimension_semantics<arbitrary>], iteration_bounds = array<i64: 2>, scalar_prefetch = 0 : i64, scratch_operands = 1 : i64, tpu.core_type = #tpu.core_type<tc>, window_params = [{transform_indices = @transform_0, window_bounds = array<i64: 128, 256>}, {pipeline_mode = #tpu.pipeline_mode<synchronous>, transform_indices = @transform_1, window_bounds = array<i64: 256, 128>}, {pipeline_mode = #tpu.pipeline_mode<synchronous>, transform_indices = @transform_2, window_bounds = array<i64: 1, 128>}, {pipeline_mode = #tpu.pipeline_mode<synchronous>, transform_indices = @transform_3, window_bounds = array<i64: 2048, 128>}, {pipeline_mode = #tpu.pipeline_mode<synchronous>, transform_indices = @transform_4, window_bounds = array<i64: 1024, 128>}, {pipeline_mode = #tpu.pipeline_mode<synchronous>, transform_indices = @transform_5, window_bounds = array<i64: 128, 128>}, {pipeline_mode = #tpu.pipeline_mode<synchronous>, transform_indices = @transform_6, window_bounds = array<i64: 128, 2>}, {pipeline_mode = #tpu.pipeline_mode<synchronous>, transform_indices = @transform_7, window_bounds = array<i64: 1, 2>}, {pipeline_mode = #tpu.pipeline_mode<synchronous>, transform_indices = @transform_8, window_bounds = array<i64: 1, 2>}]} {
    %c0_i32 = arith.constant 0 : i32
    %0 = arith.cmpi eq, %arg0, %c0_i32 : i32
    %1 = arith.extui %0 : i1 to i32
    %c0_i32_0 = arith.constant 0 : i32
    %2 = arith.cmpi ne, %1, %c0_i32_0 : i32
    scf.if %2 {
      %cst_79 = arith.constant 0.000000e+00 : f32
      %117 = vector.broadcast %cst_79 : f32 to vector<1x128xf32>
      %c0_80 = arith.constant 0 : index
      %c0_81 = arith.constant 0 : index
      %118 = vector.load %arg10[%c0_80, %c0_81] : memref<1x128xf32, #tpu.memory_space<vmem>>, vector<1x128xf32>
      tpu.vector_store %arg10[%c0_80, %c0_81], %117 {strides = array<i32>} : memref<1x128xf32, #tpu.memory_space<vmem>>, vector<1x128xf32>,
    } else {
    }
    %c0 = arith.constant 0 : index
    %c0_1 = arith.constant 0 : index
    %3 = vector.load %arg1[%c0, %c0_1] : memref<128x256xbf16, #tpu.memory_space<vmem>>, vector<128x256xbf16>
    %c0_2 = arith.constant 0 : index
    %c0_3 = arith.constant 0 : index
    %4 = vector.load %arg2[%c0_2, %c0_3] : memref<256x128xbf16, #tpu.memory_space<vmem>>, vector<256x128xbf16>
    %cst = arith.constant dense<0.000000e+00> : vector<128x128xf32>
    %5 = tpu.matmul %3, %4, %cst {dimension_numbers = #tpu.dot_dimension_numbers<[1], [0], [0], [1], [0, 0, 1, 1], [], []>} : vector<128x256xbf16>, vector<256x128xbf16>, vector<128x128xf32> -> vector<128x128xf32>
    %c0_4 = arith.constant 0 : index
    %c0_5 = arith.constant 0 : index
    %6 = vector.load %arg3[%c0_4, %c0_5] : memref<1x128xf32, #tpu.memory_space<vmem>>, vector<1x128xf32>
    %7 = vector.broadcast %6 : vector<1x128xf32> to vector<128x128xf32>
    %8 = arith.addf %5, %7 : vector<128x128xf32>
    %cst_6 = arith.constant 0.000000e+00 : f32
    %9 = vector.broadcast %cst_6 : f32 to vector<8x128xf32>
    %10 = vector.extract_strided_slice %8 {offsets = [0, 0], sizes = [8, 128], strides = [1, 1]} : vector<128x128xf32> to vector<8x128xf32>
    %c1920 = arith.constant 1920 : index
    %c0_7 = arith.constant 0 : index
    %11 = vector.load %arg4[%c1920, %c0_7] : memref<2048x128xf32, #tpu.memory_space<vmem>>, vector<128x128xf32>
    %cst_8 = arith.constant dense<0.000000e+00> : vector<8x128xf32>
    %12 = tpu.matmul %10, %11, %cst_8 {dimension_numbers = #tpu.dot_dimension_numbers<[1], [0], [0], [1], [0, 0, 1, 1], [], []>} : vector<8x128xf32>, vector<128x128xf32>, vector<8x128xf32> -> vector<8x128xf32>
    %13 = arith.addf %9, %12 : vector<8x128xf32>
    %14 = vector.extract_strided_slice %8 {offsets = [8, 0], sizes = [8, 128], strides = [1, 1]} : vector<128x128xf32> to vector<8x128xf32>
    %c1792 = arith.constant 1792 : index
    %c0_9 = arith.constant 0 : index
    %15 = vector.load %arg4[%c1792, %c0_9] : memref<2048x128xf32, #tpu.memory_space<vmem>>, vector<128x128xf32>
    %cst_10 = arith.constant dense<0.000000e+00> : vector<8x128xf32>
    %16 = tpu.matmul %14, %15, %cst_10 {dimension_numbers = #tpu.dot_dimension_numbers<[1], [0], [0], [1], [0, 0, 1, 1], [], []>} : vector<8x128xf32>, vector<128x128xf32>, vector<8x128xf32> -> vector<8x128xf32>
    %17 = arith.addf %13, %16 : vector<8x128xf32>
    %18 = vector.extract_strided_slice %8 {offsets = [16, 0], sizes = [8, 128], strides = [1, 1]} : vector<128x128xf32> to vector<8x128xf32>
    %c1664 = arith.constant 1664 : index
    %c0_11 = arith.constant 0 : index
    %19 = vector.load %arg4[%c1664, %c0_11] : memref<2048x128xf32, #tpu.memory_space<vmem>>, vector<128x128xf32>
    %cst_12 = arith.constant dense<0.000000e+00> : vector<8x128xf32>
    %20 = tpu.matmul %18, %19, %cst_12 {dimension_numbers = #tpu.dot_dimension_numbers<[1], [0], [0], [1], [0, 0, 1, 1], [], []>} : vector<8x128xf32>, vector<128x128xf32>, vector<8x128xf32> -> vector<8x128xf32>
    %21 = arith.addf %17, %20 : vector<8x128xf32>
    %22 = vector.extract_strided_slice %8 {offsets = [24, 0], sizes = [8, 128], strides = [1, 1]} : vector<128x128xf32> to vector<8x128xf32>
    %c1536 = arith.constant 1536 : index
    %c0_13 = arith.constant 0 : index
    %23 = vector.load %arg4[%c1536, %c0_13] : memref<2048x128xf32, #tpu.memory_space<vmem>>, vector<128x128xf32>
    %cst_14 = arith.constant dense<0.000000e+00> : vector<8x128xf32>
    %24 = tpu.matmul %22, %23, %cst_14 {dimension_numbers = #tpu.dot_dimension_numbers<[1], [0], [0], [1], [0, 0, 1, 1], [], []>} : vector<8x128xf32>, vector<128x128xf32>, vector<8x128xf32> -> vector<8x128xf32>
    %25 = arith.addf %21, %24 : vector<8x128xf32>
    %26 = vector.extract_strided_slice %8 {offsets = [32, 0], sizes = [8, 128], strides = [1, 1]} : vector<128x128xf32> to vector<8x128xf32>
    %c1408 = arith.constant 1408 : index
    %c0_15 = arith.constant 0 : index
    %27 = vector.load %arg4[%c1408, %c0_15] : memref<2048x128xf32, #tpu.memory_space<vmem>>, vector<128x128xf32>
    %cst_16 = arith.constant dense<0.000000e+00> : vector<8x128xf32>
    %28 = tpu.matmul %26, %27, %cst_16 {dimension_numbers = #tpu.dot_dimension_numbers<[1], [0], [0], [1], [0, 0, 1, 1], [], []>} : vector<8x128xf32>, vector<128x128xf32>, vector<8x128xf32> -> vector<8x128xf32>
    %29 = arith.addf %25, %28 : vector<8x128xf32>
    %30 = vector.extract_strided_slice %8 {offsets = [40, 0], sizes = [8, 128], strides = [1, 1]} : vector<128x128xf32> to vector<8x128xf32>
    %c1280 = arith.constant 1280 : index
    %c0_17 = arith.constant 0 : index
    %31 = vector.load %arg4[%c1280, %c0_17] : memref<2048x128xf32, #tpu.memory_space<vmem>>, vector<128x128xf32>
    %cst_18 = arith.constant dense<0.000000e+00> : vector<8x128xf32>
    %32 = tpu.matmul %30, %31, %cst_18 {dimension_numbers = #tpu.dot_dimension_numbers<[1], [0], [0], [1], [0, 0, 1, 1], [], []>} : vector<8x128xf32>, vector<128x128xf32>, vector<8x128xf32> -> vector<8x128xf32>
    %33 = arith.addf %29, %32 : vector<8x128xf32>
    %34 = vector.extract_strided_slice %8 {offsets = [48, 0], sizes = [8, 128], strides = [1, 1]} : vector<128x128xf32> to vector<8x128xf32>
    %c1152 = arith.constant 1152 : index
    %c0_19 = arith.constant 0 : index
    %35 = vector.load %arg4[%c1152, %c0_19] : memref<2048x128xf32, #tpu.memory_space<vmem>>, vector<128x128xf32>
    %cst_20 = arith.constant dense<0.000000e+00> : vector<8x128xf32>
    %36 = tpu.matmul %34, %35, %cst_20 {dimension_numbers = #tpu.dot_dimension_numbers<[1], [0], [0], [1], [0, 0, 1, 1], [], []>} : vector<8x128xf32>, vector<128x128xf32>, vector<8x128xf32> -> vector<8x128xf32>
    %37 = arith.addf %33, %36 : vector<8x128xf32>
    %38 = vector.extract_strided_slice %8 {offsets = [56, 0], sizes = [8, 128], strides = [1, 1]} : vector<128x128xf32> to vector<8x128xf32>
    %c1024 = arith.constant 1024 : index
    %c0_21 = arith.constant 0 : index
    %39 = vector.load %arg4[%c1024, %c0_21] : memref<2048x128xf32, #tpu.memory_space<vmem>>, vector<128x128xf32>
    %cst_22 = arith.constant dense<0.000000e+00> : vector<8x128xf32>
    %40 = tpu.matmul %38, %39, %cst_22 {dimension_numbers = #tpu.dot_dimension_numbers<[1], [0], [0], [1], [0, 0, 1, 1], [], []>} : vector<8x128xf32>, vector<128x128xf32>, vector<8x128xf32> -> vector<8x128xf32>
    %41 = arith.addf %37, %40 : vector<8x128xf32>
    %42 = vector.extract_strided_slice %8 {offsets = [64, 0], sizes = [8, 128], strides = [1, 1]} : vector<128x128xf32> to vector<8x128xf32>
    %c896 = arith.constant 896 : index
    %c0_23 = arith.constant 0 : index
    %43 = vector.load %arg4[%c896, %c0_23] : memref<2048x128xf32, #tpu.memory_space<vmem>>, vector<128x128xf32>
    %cst_24 = arith.constant dense<0.000000e+00> : vector<8x128xf32>
    %44 = tpu.matmul %42, %43, %cst_24 {dimension_numbers = #tpu.dot_dimension_numbers<[1], [0], [0], [1], [0, 0, 1, 1], [], []>} : vector<8x128xf32>, vector<128x128xf32>, vector<8x128xf32> -> vector<8x128xf32>
    %45 = arith.addf %41, %44 : vector<8x128xf32>
    %46 = vector.extract_strided_slice %8 {offsets = [72, 0], sizes = [8, 128], strides = [1, 1]} : vector<128x128xf32> to vector<8x128xf32>
    %c768 = arith.constant 768 : index
    %c0_25 = arith.constant 0 : index
    %47 = vector.load %arg4[%c768, %c0_25] : memref<2048x128xf32, #tpu.memory_space<vmem>>, vector<128x128xf32>
    %cst_26 = arith.constant dense<0.000000e+00> : vector<8x128xf32>
    %48 = tpu.matmul %46, %47, %cst_26 {dimension_numbers = #tpu.dot_dimension_numbers<[1], [0], [0], [1], [0, 0, 1, 1], [], []>} : vector<8x128xf32>, vector<128x128xf32>, vector<8x128xf32> -> vector<8x128xf32>
    %49 = arith.addf %45, %48 : vector<8x128xf32>
    %50 = vector.extract_strided_slice %8 {offsets = [80, 0], sizes = [8, 128], strides = [1, 1]} : vector<128x128xf32> to vector<8x128xf32>
    %c640 = arith.constant 640 : index
    %c0_27 = arith.constant 0 : index
    %51 = vector.load %arg4[%c640, %c0_27] : memref<2048x128xf32, #tpu.memory_space<vmem>>, vector<128x128xf32>
    %cst_28 = arith.constant dense<0.000000e+00> : vector<8x128xf32>
    %52 = tpu.matmul %50, %51, %cst_28 {dimension_numbers = #tpu.dot_dimension_numbers<[1], [0], [0], [1], [0, 0, 1, 1], [], []>} : vector<8x128xf32>, vector<128x128xf32>, vector<8x128xf32> -> vector<8x128xf32>
    %53 = arith.addf %49, %52 : vector<8x128xf32>
    %54 = vector.extract_strided_slice %8 {offsets = [88, 0], sizes = [8, 128], strides = [1, 1]} : vector<128x128xf32> to vector<8x128xf32>
    %c512 = arith.constant 512 : index
    %c0_29 = arith.constant 0 : index
    %55 = vector.load %arg4[%c512, %c0_29] : memref<2048x128xf32, #tpu.memory_space<vmem>>, vector<128x128xf32>
    %cst_30 = arith.constant dense<0.000000e+00> : vector<8x128xf32>
    %56 = tpu.matmul %54, %55, %cst_30 {dimension_numbers = #tpu.dot_dimension_numbers<[1], [0], [0], [1], [0, 0, 1, 1], [], []>} : vector<8x128xf32>, vector<128x128xf32>, vector<8x128xf32> -> vector<8x128xf32>
    %57 = arith.addf %53, %56 : vector<8x128xf32>
    %58 = vector.extract_strided_slice %8 {offsets = [96, 0], sizes = [8, 128], strides = [1, 1]} : vector<128x128xf32> to vector<8x128xf32>
    %c384 = arith.constant 384 : index
    %c0_31 = arith.constant 0 : index
    %59 = vector.load %arg4[%c384, %c0_31] : memref<2048x128xf32, #tpu.memory_space<vmem>>, vector<128x128xf32>
    %cst_32 = arith.constant dense<0.000000e+00> : vector<8x128xf32>
    %60 = tpu.matmul %58, %59, %cst_32 {dimension_numbers = #tpu.dot_dimension_numbers<[1], [0], [0], [1], [0, 0, 1, 1], [], []>} : vector<8x128xf32>, vector<128x128xf32>, vector<8x128xf32> -> vector<8x128xf32>
    %61 = arith.addf %57, %60 : vector<8x128xf32>
    %62 = vector.extract_strided_slice %8 {offsets = [104, 0], sizes = [8, 128], strides = [1, 1]} : vector<128x128xf32> to vector<8x128xf32>
    %c256 = arith.constant 256 : index
    %c0_33 = arith.constant 0 : index
    %63 = vector.load %arg4[%c256, %c0_33] : memref<2048x128xf32, #tpu.memory_space<vmem>>, vector<128x128xf32>
    %cst_34 = arith.constant dense<0.000000e+00> : vector<8x128xf32>
    %64 = tpu.matmul %62, %63, %cst_34 {dimension_numbers = #tpu.dot_dimension_numbers<[1], [0], [0], [1], [0, 0, 1, 1], [], []>} : vector<8x128xf32>, vector<128x128xf32>, vector<8x128xf32> -> vector<8x128xf32>
    %65 = arith.addf %61, %64 : vector<8x128xf32>
    %66 = vector.extract_strided_slice %8 {offsets = [112, 0], sizes = [8, 128], strides = [1, 1]} : vector<128x128xf32> to vector<8x128xf32>
    %c128 = arith.constant 128 : index
    %c0_35 = arith.constant 0 : index
    %67 = vector.load %arg4[%c128, %c0_35] : memref<2048x128xf32, #tpu.memory_space<vmem>>, vector<128x128xf32>
    %cst_36 = arith.constant dense<0.000000e+00> : vector<8x128xf32>
    %68 = tpu.matmul %66, %67, %cst_36 {dimension_numbers = #tpu.dot_dimension_numbers<[1], [0], [0], [1], [0, 0, 1, 1], [], []>} : vector<8x128xf32>, vector<128x128xf32>, vector<8x128xf32> -> vector<8x128xf32>
    %69 = arith.addf %65, %68 : vector<8x128xf32>
    %70 = vector.extract_strided_slice %8 {offsets = [120, 0], sizes = [8, 128], strides = [1, 1]} : vector<128x128xf32> to vector<8x128xf32>
    %c0_37 = arith.constant 0 : index
    %c0_38 = arith.constant 0 : index
    %71 = vector.load %arg4[%c0_37, %c0_38] : memref<2048x128xf32, #tpu.memory_space<vmem>>, vector<128x128xf32>
    %cst_39 = arith.constant dense<0.000000e+00> : vector<8x128xf32>
    %72 = tpu.matmul %70, %71, %cst_39 {dimension_numbers = #tpu.dot_dimension_numbers<[1], [0], [0], [1], [0, 0, 1, 1], [], []>} : vector<8x128xf32>, vector<128x128xf32>, vector<8x128xf32> -> vector<8x128xf32>
    %73 = arith.addf %69, %72 : vector<8x128xf32>
    %cst_40 = arith.constant 0.000000e+00 : f32
    %74 = vector.broadcast %cst_40 : f32 to vector<1x128xf32>
    %c896_41 = arith.constant 896 : index
    %c0_42 = arith.constant 0 : index
    %75 = vector.load %arg5[%c896_41, %c0_42] : memref<1024x128xf32, #tpu.memory_space<vmem>>, vector<128x128xf32>
    %76 = vector.extract_strided_slice %73 {offsets = [0, 0], sizes = [1, 128], strides = [1, 1]} : vector<8x128xf32> to vector<1x128xf32>
    %cst_43 = arith.constant dense<0.000000e+00> : vector<1x128xf32>
    %77 = tpu.matmul %76, %75, %cst_43 {dimension_numbers = #tpu.dot_dimension_numbers<[1], [0], [0], [1], [0, 0, 1, 1], [], []>} : vector<1x128xf32>, vector<128x128xf32>, vector<1x128xf32> -> vector<1x128xf32>
    %78 = arith.addf %74, %77 : vector<1x128xf32>
    %c768_44 = arith.constant 768 : index
    %c0_45 = arith.constant 0 : index
    %79 = vector.load %arg5[%c768_44, %c0_45] : memref<1024x128xf32, #tpu.memory_space<vmem>>, vector<128x128xf32>
    %80 = vector.extract_strided_slice %73 {offsets = [1, 0], sizes = [1, 128], strides = [1, 1]} : vector<8x128xf32> to vector<1x128xf32>
    %cst_46 = arith.constant dense<0.000000e+00> : vector<1x128xf32>
    %81 = tpu.matmul %80, %79, %cst_46 {dimension_numbers = #tpu.dot_dimension_numbers<[1], [0], [0], [1], [0, 0, 1, 1], [], []>} : vector<1x128xf32>, vector<128x128xf32>, vector<1x128xf32> -> vector<1x128xf32>
    %82 = arith.addf %78, %81 : vector<1x128xf32>
    %c640_47 = arith.constant 640 : index
    %c0_48 = arith.constant 0 : index
    %83 = vector.load %arg5[%c640_47, %c0_48] : memref<1024x128xf32, #tpu.memory_space<vmem>>, vector<128x128xf32>
    %84 = vector.extract_strided_slice %73 {offsets = [2, 0], sizes = [1, 128], strides = [1, 1]} : vector<8x128xf32> to vector<1x128xf32>
    %cst_49 = arith.constant dense<0.000000e+00> : vector<1x128xf32>
    %85 = tpu.matmul %84, %83, %cst_49 {dimension_numbers = #tpu.dot_dimension_numbers<[1], [0], [0], [1], [0, 0, 1, 1], [], []>} : vector<1x128xf32>, vector<128x128xf32>, vector<1x128xf32> -> vector<1x128xf32>
    %86 = arith.addf %82, %85 : vector<1x128xf32>
    %c512_50 = arith.constant 512 : index
    %c0_51 = arith.constant 0 : index
    %87 = vector.load %arg5[%c512_50, %c0_51] : memref<1024x128xf32, #tpu.memory_space<vmem>>, vector<128x128xf32>
    %88 = vector.extract_strided_slice %73 {offsets = [3, 0], sizes = [1, 128], strides = [1, 1]} : vector<8x128xf32> to vector<1x128xf32>
    %cst_52 = arith.constant dense<0.000000e+00> : vector<1x128xf32>
    %89 = tpu.matmul %88, %87, %cst_52 {dimension_numbers = #tpu.dot_dimension_numbers<[1], [0], [0], [1], [0, 0, 1, 1], [], []>} : vector<1x128xf32>, vector<128x128xf32>, vector<1x128xf32> -> vector<1x128xf32>
    %90 = arith.addf %86, %89 : vector<1x128xf32>
    %c384_53 = arith.constant 384 : index
    %c0_54 = arith.constant 0 : index
    %91 = vector.load %arg5[%c384_53, %c0_54] : memref<1024x128xf32, #tpu.memory_space<vmem>>, vector<128x128xf32>
    %92 = vector.extract_strided_slice %73 {offsets = [4, 0], sizes = [1, 128], strides = [1, 1]} : vector<8x128xf32> to vector<1x128xf32>
    %cst_55 = arith.constant dense<0.000000e+00> : vector<1x128xf32>
    %93 = tpu.matmul %92, %91, %cst_55 {dimension_numbers = #tpu.dot_dimension_numbers<[1], [0], [0], [1], [0, 0, 1, 1], [], []>} : vector<1x128xf32>, vector<128x128xf32>, vector<1x128xf32> -> vector<1x128xf32>
    %94 = arith.addf %90, %93 : vector<1x128xf32>
    %c256_56 = arith.constant 256 : index
    %c0_57 = arith.constant 0 : index
    %95 = vector.load %arg5[%c256_56, %c0_57] : memref<1024x128xf32, #tpu.memory_space<vmem>>, vector<128x128xf32>
    %96 = vector.extract_strided_slice %73 {offsets = [5, 0], sizes = [1, 128], strides = [1, 1]} : vector<8x128xf32> to vector<1x128xf32>
    %cst_58 = arith.constant dense<0.000000e+00> : vector<1x128xf32>
    %97 = tpu.matmul %96, %95, %cst_58 {dimension_numbers = #tpu.dot_dimension_numbers<[1], [0], [0], [1], [0, 0, 1, 1], [], []>} : vector<1x128xf32>, vector<128x128xf32>, vector<1x128xf32> -> vector<1x128xf32>
    %98 = arith.addf %94, %97 : vector<1x128xf32>
    %c128_59 = arith.constant 128 : index
    %c0_60 = arith.constant 0 : index
    %99 = vector.load %arg5[%c128_59, %c0_60] : memref<1024x128xf32, #tpu.memory_space<vmem>>, vector<128x128xf32>
    %100 = vector.extract_strided_slice %73 {offsets = [6, 0], sizes = [1, 128], strides = [1, 1]} : vector<8x128xf32> to vector<1x128xf32>
    %cst_61 = arith.constant dense<0.000000e+00> : vector<1x128xf32>
    %101 = tpu.matmul %100, %99, %cst_61 {dimension_numbers = #tpu.dot_dimension_numbers<[1], [0], [0], [1], [0, 0, 1, 1], [], []>} : vector<1x128xf32>, vector<128x128xf32>, vector<1x128xf32> -> vector<1x128xf32>
    %102 = arith.addf %98, %101 : vector<1x128xf32>
    %c0_62 = arith.constant 0 : index
    %c0_63 = arith.constant 0 : index
    %103 = vector.load %arg5[%c0_62, %c0_63] : memref<1024x128xf32, #tpu.memory_space<vmem>>, vector<128x128xf32>
    %104 = vector.extract_strided_slice %73 {offsets = [7, 0], sizes = [1, 128], strides = [1, 1]} : vector<8x128xf32> to vector<1x128xf32>
    %cst_64 = arith.constant dense<0.000000e+00> : vector<1x128xf32>
    %105 = tpu.matmul %104, %103, %cst_64 {dimension_numbers = #tpu.dot_dimension_numbers<[1], [0], [0], [1], [0, 0, 1, 1], [], []>} : vector<1x128xf32>, vector<128x128xf32>, vector<1x128xf32> -> vector<1x128xf32>
    %106 = arith.addf %102, %105 : vector<1x128xf32>
    %c0_65 = arith.constant 0 : index
    %c0_66 = arith.constant 0 : index
    %107 = vector.load %arg10[%c0_65, %c0_66] : memref<1x128xf32, #tpu.memory_space<vmem>>, vector<1x128xf32>
    %c0_67 = arith.constant 0 : index
    %c0_68 = arith.constant 0 : index
    %108 = vector.load %arg6[%c0_67, %c0_68] : memref<128x128xf32, #tpu.memory_space<vmem>>, vector<128x128xf32>
    %cst_69 = arith.constant dense<0.000000e+00> : vector<1x128xf32>
    %109 = tpu.matmul %107, %108, %cst_69 {dimension_numbers = #tpu.dot_dimension_numbers<[1], [0], [0], [1], [0, 0, 1, 1], [], []>} : vector<1x128xf32>, vector<128x128xf32>, vector<1x128xf32> -> vector<1x128xf32>
    %110 = arith.addf %109, %106 : vector<1x128xf32>
    %c0_70 = arith.constant 0 : index
    %c0_71 = arith.constant 0 : index
    %111 = vector.load %arg10[%c0_70, %c0_71] : memref<1x128xf32, #tpu.memory_space<vmem>>, vector<1x128xf32>
    tpu.vector_store %arg10[%c0_70, %c0_71], %110 {strides = array<i32>} : memref<1x128xf32, #tpu.memory_space<vmem>>, vector<1x128xf32>,
    %c0_72 = arith.constant 0 : index
    %c0_73 = arith.constant 0 : index
    %112 = vector.load %arg7[%c0_72, %c0_73] : memref<128x2xf32, #tpu.memory_space<vmem>>, vector<128x2xf32>
    %cst_74 = arith.constant dense<0.000000e+00> : vector<1x2xf32>
    %113 = tpu.matmul %110, %112, %cst_74 {dimension_numbers = #tpu.dot_dimension_numbers<[1], [0], [0], [1], [0, 0, 1, 1], [], []>} : vector<1x128xf32>, vector<128x2xf32>, vector<1x2xf32> -> vector<1x2xf32>
    %c0_75 = arith.constant 0 : index
    %c0_76 = arith.constant 0 : index
    %114 = vector.load %arg8[%c0_75, %c0_76] : memref<1x2xf32, #tpu.memory_space<vmem>>, vector<1x2xf32>
    %115 = arith.addf %113, %114 : vector<1x2xf32>
    %c0_77 = arith.constant 0 : index
    %c0_78 = arith.constant 0 : index
    %116 = vector.load %arg9[%c0_77, %c0_78] : memref<1x2xf32, #tpu.memory_space<vmem>>, vector<1x2xf32>
    tpu.vector_store %arg9[%c0_77, %c0_78], %115 {strides = array<i32>} : memref<1x2xf32, #tpu.memory_space<vmem>>, vector<1x2xf32>,
    return
  }
  func.func @transform_0(%arg0: i32) -> (i32, i32) {
    %c0_i32 = arith.constant 0 : i32
    %c0_i32_0 = arith.constant 0 : i32
    return %arg0, %c0_i32 : i32, i32
  }
  func.func @transform_1(%arg0: i32) -> (i32, i32) {
    %c0_i32 = arith.constant 0 : i32
    %c0_i32_0 = arith.constant 0 : i32
    %c0_i32_1 = arith.constant 0 : i32
    return %c0_i32, %c0_i32_0 : i32, i32
  }
  func.func @transform_2(%arg0: i32) -> (i32, i32) {
    %c0_i32 = arith.constant 0 : i32
    %c0_i32_0 = arith.constant 0 : i32
    %c0_i32_1 = arith.constant 0 : i32
    return %c0_i32, %c0_i32_0 : i32, i32
  }
  func.func @transform_3(%arg0: i32) -> (i32, i32) {
    %c0_i32 = arith.constant 0 : i32
    %c0_i32_0 = arith.constant 0 : i32
    %c0_i32_1 = arith.constant 0 : i32
    return %c0_i32, %c0_i32_0 : i32, i32
  }
  func.func @transform_4(%arg0: i32) -> (i32, i32) {
    %c0_i32 = arith.constant 0 : i32
    %c0_i32_0 = arith.constant 0 : i32
    %c0_i32_1 = arith.constant 0 : i32
    return %c0_i32, %c0_i32_0 : i32, i32
  }
  func.func @transform_5(%arg0: i32) -> (i32, i32) {
    %c0_i32 = arith.constant 0 : i32
    %c0_i32_0 = arith.constant 0 : i32
    %c0_i32_1 = arith.constant 0 : i32
    return %c0_i32, %c0_i32_0 : i32, i32
  }
  func.func @transform_6(%arg0: i32) -> (i32, i32) {
    %c0_i32 = arith.constant 0 : i32
    %c0_i32_0 = arith.constant 0 : i32
    %c0_i32_1 = arith.constant 0 : i32
    return %c0_i32, %c0_i32_0 : i32, i32
  }
  func.func @transform_7(%arg0: i32) -> (i32, i32) {
    %c0_i32 = arith.constant 0 : i32
    %c0_i32_0 = arith.constant 0 : i32
    %c0_i32_1 = arith.constant 0 : i32
    return %c0_i32, %c0_i32_0 : i32, i32
  }
  func.func @transform_8(%arg0: i32) -> (i32, i32) {
    %c0_i32 = arith.constant 0 : i32
    %c0_i32_0 = arith.constant 0 : i32
    %c0_i32_1 = arith.constant 0 : i32
    return %c0_i32, %c0_i32_0 : i32, i32
  }
}

</mosaic_0001>

<llo_original>
// kernel: tpu_custom_call.1
$region0: #{tpu_custom_call.1}
  #allocation0 [shape = 'u32[]', space=smem, size = 0x4, offset = 0x4, fixed_abs, tag = 'smem constant byte address 0x4 - core index']
  #allocation1 [shape = 'u32[144,128]{1,0:T(1,128)}', space=vmem, size = 0x12000, scoped, tag = 'internal scratch']
  #allocation2 [shape = 'f32[1,128]{1,0:T(1,128)}', space=vmem, size = 0x200, scoped, tag = 'scratch operand']
  %s0 = inlined_call_operand.hbm [shape: bf16[256,256], index: 0, kind: input, shape index: {}]
  %s1 = inlined_call_operand.vmem [shape: bf16[256,128], index: 1, kind: input, shape index: {}]
  %s2 = inlined_call_operand.vmem [shape: f32[1,128], index: 2, kind: input, shape index: {}]
  %s3 = inlined_call_operand.hbm [shape: f32[2048,128], index: 3, kind: input, shape index: {}]
  %s4 = inlined_call_operand.hbm [shape: f32[1024,128], index: 4, kind: input, shape index: {}]
  %s5 = inlined_call_operand.hbm [shape: f32[128,128], index: 5, kind: input, shape index: {}]
  %s6 = inlined_call_operand.vmem [shape: f32[128,2], index: 6, kind: input, shape index: {}]
  %s7 = inlined_call_operand.vmem [shape: f32[1,2], index: 7, kind: input, shape index: {}]
  %s8 = inlined_call_operand.hbm [shape: f32[1,2], index: 8, kind: output, shape index: {}]
  %s9 = sld [smem:[#allocation0]]
  $region85: #{tpu_custom_call.1} parent=0
    _
  %s11 = ssub.s32 1, %s9
  %s12 = scalar_select 0, %s11, %s9
  $region1: #{tpu_custom_call.1} parent=0
    #allocation3 [shape = 'u8[131072]{0}', space=vmem, size = 0x20000, scoped, tag = 'input window, operand 0']
    #allocation4 [shape = 's32[2]{0}', space=sflag, size = 0x8, scoped, tag = 'scoped memory for tpu_custom_call.1']
    #allocation5 [shape = 's32[2]{0}', space=sflag, size = 0x8, scoped, tag = 'scoped memory for tpu_custom_call.1']
    #allocation6 [shape = 'u8[1048576]{0}', space=vmem, size = 0x100000, scoped, tag = 'input window, operand 3, single buffered']
    #allocation7 [shape = 's32[1]{0}', space=sflag, size = 0x4, scoped, tag = 'scoped memory for tpu_custom_call.1']
    #allocation8 [shape = 'u8[524288]{0}', space=vmem, size = 0x80000, scoped, tag = 'input window, operand 4, single buffered']
    #allocation9 [shape = 'u8[65536]{0}', space=vmem, size = 0x10000, scoped, tag = 'input window, operand 5, single buffered']
    #allocation10 [shape = 's32[1]{0}', space=sflag, size = 0x4, scoped, tag = 'scoped memory for tpu_custom_call.1']
    #allocation11 [shape = 'u8[512]{0}', space=vmem, size = 0x400, scoped, tag = 'output window, operand 0, single buffered']
    %13 = vsyncpa [#allocation4], 0
    %s14 = scalar_lea.sflag [#allocation4], 1
    %15 = vsyncpa %s14, 0
    %16 = vsyncpa [#allocation7], 0
    %17 = vsyncpa [#allocation10], 0
    %18 = vsyncpa [#allocation5], 0
    loop: start=0, step=1, limit=4
    $region2: #{tpu_custom_call.1} parent=1 // loop_pre_header
      _
    $region3: #{tpu_custom_call.1} parent=1 // loop_header
      %s20 = sphi 0, %s24
      %p21 = scmp.ge.s32.totalorder %s20, 4
      %s30 = sphi 0, %s32
      %s33 = sphi 0, %s30
      %s34 = sphi 0, %s33
      %s50 = sphi 0, %s34
      %s54 = sphi 0, %s54
      %s56 = sphi 0, %s54
      %s57 = sphi 0, %s56
      %s71 = sphi 0, %s57
      %s75 = sphi 0, %s75
      %s77 = sphi 0, %s75
      %s78 = sphi 0, %s77
      %s92 = sphi 0, %s78
      %s96 = sphi 0, %s96
      %s98 = sphi 0, %s96
      %s99 = sphi 0, %s98
      %s113 = sphi 0, %s99
      %s117 = sphi 0, %s117
      %s119 = sphi 0, %s117
      %s120 = sphi 0, %s119
      %s134 = sphi 0, %s120
      %s138 = sphi 0, %s138
      %s140 = sphi 0, %s138
      %s141 = sphi 0, %s140
      %s155 = sphi 0, %s141
      %s159 = sphi 0, %s159
      %s161 = sphi 0, %s159
      %s162 = sphi 0, %s161
      %s176 = sphi 0, %s162
      %s180 = sphi 0, %s180
      %s182 = sphi 0, %s180
      %s183 = sphi 0, %s182
      %s197 = sphi 0, %s183
      %s201 = sphi 0, %s201
      %s203 = sphi 0, %s201
      %s204 = sphi 0, %s203
      %s218 = sphi 0, %s204
    $region4: #{tpu_custom_call.1} parent=1 // loop_header_branch
      %23 = sbr.rel (%p21) target = $region8
    $region5: #{tpu_custom_call.1} parent=1 // loop_body
      %s25 = ssub.s32 %s20, 1
      %s26 = ssub.s32 %s20, 2
      %s27 = sadd.s32 %s20, 1
      %s28 = ssub.s32 %s20, %s27
      %p29 = scmp.eq.s32.totalorder %s28, 0
      %s31 = sadd.s32 %s30, 1
      %s32 = scalar_select %p29, %s30, %s31
      %p35 = pneg %p29
      %p36 = scmp.eq.s32.totalorder %s20, 1
      %p37 = por %p35, %p36
      %p38 = scmp.ne.s32.totalorder %s30, %s33
      %p39 = scmp.eq.s32.totalorder %s20, 0
      %p40 = por %p38, %p39
      %p41 = scmp.ne.s32.totalorder %s30, %s33
      %p42 = scmp.eq.s32.totalorder %s25, 1
      %p43 = por %p41, %p42
      %p44 = scmp.ne.s32.totalorder %s33, %s34
      %p45 = scmp.eq.s32.totalorder %s25, 0
      %p46 = por %p44, %p45
      %p47 = scmp.ne.s32.totalorder %s33, %s34
      %p48 = scmp.eq.s32.totalorder %s26, 1
      %p49 = por %p47, %p48
      %p51 = scmp.ne.s32.totalorder %s34, %s50
      %p52 = scmp.eq.s32.totalorder %s26, 0
      %p53 = por %p51, %p52
      %s55 = sadd.s32 %s54, 1
      %p58 = scmp.eq.s32.totalorder %s20, 1
      %p59 = scmp.ne.s32.totalorder %s54, %s56
      %p60 = scmp.eq.s32.totalorder %s20, 0
      %p61 = por %p59, %p60
      %p62 = scmp.ne.s32.totalorder %s54, %s56
      %p63 = scmp.eq.s32.totalorder %s25, 1
      %p64 = por %p62, %p63
      %p65 = scmp.ne.s32.totalorder %s56, %s57
      %p66 = scmp.eq.s32.totalorder %s25, 0
      %p67 = por %p65, %p66
      %p68 = scmp.ne.s32.totalorder %s56, %s57
      %p69 = scmp.eq.s32.totalorder %s26, 1
      %p70 = por %p68, %p69
      %p72 = scmp.ne.s32.totalorder %s57, %s71
      %p73 = scmp.eq.s32.totalorder %s26, 0
      %p74 = por %p72, %p73
      %s76 = sadd.s32 %s75, 1
      %p79 = scmp.eq.s32.totalorder %s20, 1
      %p80 = scmp.ne.s32.totalorder %s75, %s77
      %p81 = scmp.eq.s32.totalorder %s20, 0
      %p82 = por %p80, %p81
      %p83 = scmp.ne.s32.totalorder %s75, %s77
      %p84 = scmp.eq.s32.totalorder %s25, 1
      %p85 = por %p83, %p84
      %p86 = scmp.ne.s32.totalorder %s77, %s78
      %p87 = scmp.eq.s32.totalorder %s25, 0
      %p88 = por %p86, %p87
      %p89 = scmp.ne.s32.totalorder %s77, %s78
      %p90 = scmp.eq.s32.totalorder %s26, 1
      %p91 = por %p89, %p90
      %p93 = scmp.ne.s32.totalorder %s78, %s92
      %p94 = scmp.eq.s32.totalorder %s26, 0
      %p95 = por %p93, %p94
      %s97 = sadd.s32 %s96, 1
      %p100 = scmp.eq.s32.totalorder %s20, 1
      %p101 = scmp.ne.s32.totalorder %s96, %s98
      %p102 = scmp.eq.s32.totalorder %s20, 0
      %p103 = por %p101, %p102
      %p104 = scmp.ne.s32.totalorder %s96, %s98
      %p105 = scmp.eq.s32.totalorder %s25, 1
      %p106 = por %p104, %p105
      %p107 = scmp.ne.s32.totalorder %s98, %s99
      %p108 = scmp.eq.s32.totalorder %s25, 0
      %p109 = por %p107, %p108
      %p110 = scmp.ne.s32.totalorder %s98, %s99
      %p111 = scmp.eq.s32.totalorder %s26, 1
      %p112 = por %p110, %p111
      %p114 = scmp.ne.s32.totalorder %s99, %s113
      %p115 = scmp.eq.s32.totalorder %s26, 0
      %p116 = por %p114, %p115
      %s118 = sadd.s32 %s117, 1
      %p121 = scmp.eq.s32.totalorder %s20, 1
      %p122 = scmp.ne.s32.totalorder %s117, %s119
      %p123 = scmp.eq.s32.totalorder %s20, 0
      %p124 = por %p122, %p123
      %p125 = scmp.ne.s32.totalorder %s117, %s119
      %p126 = scmp.eq.s32.totalorder %s25, 1
      %p127 = por %p125, %p126
      %p128 = scmp.ne.s32.totalorder %s119, %s120
      %p129 = scmp.eq.s32.totalorder %s25, 0
      %p130 = por %p128, %p129
      %p131 = scmp.ne.s32.totalorder %s119, %s120
      %p132 = scmp.eq.s32.totalorder %s26, 1
      %p133 = por %p131, %p132
      %p135 = scmp.ne.s32.totalorder %s120, %s134
      %p136 = scmp.eq.s32.totalorder %s26, 0
      %p137 = por %p135, %p136
      %s139 = sadd.s32 %s138, 1
      %p142 = scmp.eq.s32.totalorder %s20, 1
      %p143 = scmp.ne.s32.totalorder %s138, %s140
      %p144 = scmp.eq.s32.totalorder %s20, 0
      %p145 = por %p143, %p144
      %p146 = scmp.ne.s32.totalorder %s138, %s140
      %p147 = scmp.eq.s32.totalorder %s25, 1
      %p148 = por %p146, %p147
      %p149 = scmp.ne.s32.totalorder %s140, %s141
      %p150 = scmp.eq.s32.totalorder %s25, 0
      %p151 = por %p149, %p150
      %p152 = scmp.ne.s32.totalorder %s140, %s141
      %p153 = scmp.eq.s32.totalorder %s26, 1
      %p154 = por %p152, %p153
      %p156 = scmp.ne.s32.totalorder %s141, %s155
      %p157 = scmp.eq.s32.totalorder %s26, 0
      %p158 = por %p156, %p157
      %s160 = sadd.s32 %s159, 1
      %p163 = scmp.eq.s32.totalorder %s20, 1
      %p164 = scmp.ne.s32.totalorder %s159, %s161
      %p165 = scmp.eq.s32.totalorder %s20, 0
      %p166 = por %p164, %p165
      %p167 = scmp.ne.s32.totalorder %s159, %s161
      %p168 = scmp.eq.s32.totalorder %s25, 1
      %p169 = por %p167, %p168
      %p170 = scmp.ne.s32.totalorder %s161, %s162
      %p171 = scmp.eq.s32.totalorder %s25, 0
      %p172 = por %p170, %p171
      %p173 = scmp.ne.s32.totalorder %s161, %s162
      %p174 = scmp.eq.s32.totalorder %s26, 1
      %p175 = por %p173, %p174
      %p177 = scmp.ne.s32.totalorder %s162, %s176
      %p178 = scmp.eq.s32.totalorder %s26, 0
      %p179 = por %p177, %p178
      %s181 = sadd.s32 %s180, 1
      %p184 = scmp.eq.s32.totalorder %s20, 1
      %p185 = scmp.ne.s32.totalorder %s180, %s182
      %p186 = scmp.eq.s32.totalorder %s20, 0
      %p187 = por %p185, %p186
      %p188 = scmp.ne.s32.totalorder %s180, %s182
      %p189 = scmp.eq.s32.totalorder %s25, 1
      %p190 = por %p188, %p189
      %p191 = scmp.ne.s32.totalorder %s182, %s183
      %p192 = scmp.eq.s32.totalorder %s25, 0
      %p193 = por %p191, %p192
      %p194 = scmp.ne.s32.totalorder %s182, %s183
      %p195 = scmp.eq.s32.totalorder %s26, 1
      %p196 = por %p194, %p195
      %p198 = scmp.ne.s32.totalorder %s183, %s197
      %p199 = scmp.eq.s32.totalorder %s26, 0
      %p200 = por %p198, %p199
      %s202 = sadd.s32 %s201, 1
      %p205 = scmp.eq.s32.totalorder %s20, 1
      %p206 = scmp.ne.s32.totalorder %s201, %s203
      %p207 = scmp.eq.s32.totalorder %s20, 0
      %p208 = por %p206, %p207
      %p209 = scmp.ne.s32.totalorder %s201, %s203
      %p210 = scmp.eq.s32.totalorder %s25, 1
      %p211 = por %p209, %p210
      %p212 = scmp.ne.s32.totalorder %s203, %s204
      %p213 = scmp.eq.s32.totalorder %s25, 0
      %p214 = por %p212, %p213
      %p215 = scmp.ne.s32.totalorder %s203, %s204
      %p216 = scmp.eq.s32.totalorder %s26, 1
      %p217 = por %p215, %p216
      %p219 = scmp.ne.s32.totalorder %s204, %s218
      %p220 = scmp.eq.s32.totalorder %s26, 0
      %p221 = por %p219, %p220
      %p222 = scmp.le.s32.totalorder 1, %s20
      %p223 = scmp.lt.s32.totalorder %s20, 3
      %p224 = pnand %p222, %p223
      %p225 = pneg %p224
      // Predicated region
      $region9: #{tpu_custom_call.1} parent=5 // pred_check
        _
      $region10: #{tpu_custom_call.1} parent=5 // pred_check_branch
        %227 = sbr.rel (%p224) target = $region12
      $region11: #{tpu_custom_call.1} parent=5 // pred_region
        %s228 = ssub.s32 %s20, 1
        // Predicated region
        $region13: #{tpu_custom_call.1} parent=11 // pred_check
          %p229 = pneg %p67
        $region14: #{tpu_custom_call.1} parent=11 // pred_check_branch
          %231 = sbr.rel (%p229) target = $region16
        $region15: #{tpu_custom_call.1} parent=11 // pred_region
          _
        $region16: #{tpu_custom_call.1} parent=11 // pred_fallthru
          _
        // Predicated region
        $region17: #{tpu_custom_call.1} parent=11 // pred_check
          %p232 = pneg %p88
        $region18: #{tpu_custom_call.1} parent=11 // pred_check_branch
          %234 = sbr.rel (%p232) target = $region20
        $region19: #{tpu_custom_call.1} parent=11 // pred_region
          _
        $region20: #{tpu_custom_call.1} parent=11 // pred_fallthru
          _
        // Predicated region
        $region21: #{tpu_custom_call.1} parent=11 // pred_check
          %p235 = pneg %p109
        $region22: #{tpu_custom_call.1} parent=11 // pred_check_branch
          %237 = sbr.rel (%p235) target = $region24
        $region23: #{tpu_custom_call.1} parent=11 // pred_region
          %s239 = ssub.s32 32768, 32768
          %240 = vsyncadd [#allocation7], %s239
          %s241 = sshll.u32 [#allocation6], 4
          %s242 = int_to_ptr.vmem [resolvable:$true] %s241
          %247 = dma.hbm_to_vmem [thread:$0]  %s3, 32768, %s242, [#allocation7], 128, 128, 8
        $region24: #{tpu_custom_call.1} parent=11 // pred_fallthru
          _
        // Predicated region
        $region25: #{tpu_custom_call.1} parent=11 // pred_check
          %p248 = pneg %p130
        $region26: #{tpu_custom_call.1} parent=11 // pred_check_branch
          %250 = sbr.rel (%p248) target = $region28
        $region27: #{tpu_custom_call.1} parent=11 // pred_region
          %s252 = ssub.s32 16384, 16384
          %253 = vsyncadd [#allocation7], %s252
          %s254 = sshll.u32 [#allocation8], 4
          %s255 = int_to_ptr.vmem [resolvable:$true] %s254
          %260 = dma.hbm_to_vmem [thread:$0]  %s4, 16384, %s255, [#allocation7], 128, 128, 8
        $region28: #{tpu_custom_call.1} parent=11 // pred_fallthru
          _
        // Predicated region
        $region29: #{tpu_custom_call.1} parent=11 // pred_check
          %p261 = pneg %p151
        $region30: #{tpu_custom_call.1} parent=11 // pred_check_branch
          %263 = sbr.rel (%p261) target = $region32
        $region31: #{tpu_custom_call.1} parent=11 // pred_region
          %s265 = ssub.s32 2048, 2048
          %266 = vsyncadd [#allocation10], %s265
          %s267 = sshll.u32 [#allocation9], 4
          %s268 = int_to_ptr.vmem [resolvable:$true] %s267
          %273 = dma.hbm_to_vmem [thread:$0]  %s5, 2048, %s268, [#allocation10], 128, 128, 8
        $region32: #{tpu_custom_call.1} parent=11 // pred_fallthru
          _
        // Predicated region
        $region33: #{tpu_custom_call.1} parent=11 // pred_check
          %p274 = pneg %p172
        $region34: #{tpu_custom_call.1} parent=11 // pred_check_branch
          %276 = sbr.rel (%p274) target = $region36
        $region35: #{tpu_custom_call.1} parent=11 // pred_region
          _
        $region36: #{tpu_custom_call.1} parent=11 // pred_fallthru
          _
        // Predicated region
        $region37: #{tpu_custom_call.1} parent=11 // pred_check
          %p277 = pneg %p193
        $region38: #{tpu_custom_call.1} parent=11 // pred_check_branch
          %279 = sbr.rel (%p277) target = $region40
        $region39: #{tpu_custom_call.1} parent=11 // pred_region
          _
        $region40: #{tpu_custom_call.1} parent=11 // pred_fallthru
          _
      $region12: #{tpu_custom_call.1} parent=5 // pred_fallthru
        _
      %p280 = scmp.lt.s32.totalorder %s20, 2
      // Predicated region
      $region41: #{tpu_custom_call.1} parent=5 // pred_check
        %p281 = pneg %p280
      $region42: #{tpu_custom_call.1} parent=5 // pred_check_branch
        %283 = sbr.rel (%p281) target = $region44
      $region43: #{tpu_custom_call.1} parent=5 // pred_region
        // Predicated region
        $region45: #{tpu_custom_call.1} parent=43 // pred_check
          %p284 = pneg %p40
        $region46: #{tpu_custom_call.1} parent=43 // pred_check_branch
          %286 = sbr.rel (%p284) target = $region48
        $region47: #{tpu_custom_call.1} parent=43 // pred_region
          %s287 = sand.u32 %s30, 1
          %s288 = scalar_lea.sflag [#allocation4], %s287
          %s289 = sand.u32 %s30, 1
          %s290 = smul.addr %s289, 128
          %s291 = scalar_lea.vmem [#allocation3], %s290
          %s292 = smul.u32 16, %s20
          %s294 = ssub.s32 2048, 2048
          %295 = vsyncadd %s288, %s294
          %s296 = smul.addr %s292, 2
          %s297 = smul.addr %s296, 64
          %s298 = scalar_lea.hbm %s0, %s297
          %s299 = sshll.u32 %s291, 4
          %s300 = int_to_ptr.vmem [resolvable:$true] %s299
          %305 = dma.hbm_to_vmem [thread:$0]  %s298, 2048, %s300, %s288, 128, 128, 8
        $region48: #{tpu_custom_call.1} parent=43 // pred_fallthru
          _
      $region44: #{tpu_custom_call.1} parent=5 // pred_fallthru
        _
      %p306 = scmp.le.s32.totalorder 1, %s20
      %p307 = scmp.lt.s32.totalorder %s20, 3
      %p308 = pnand %p306, %p307
      %p309 = pneg %p308
      // Predicated region
      $region49: #{tpu_custom_call.1} parent=5 // pred_check
        _
      $region50: #{tpu_custom_call.1} parent=5 // pred_check_branch
        %311 = sbr.rel (%p308) target = $region52
      $region51: #{tpu_custom_call.1} parent=5 // pred_region
        %s312 = ssub.s32 %s20, 1
        %s313 = sand.u32 %s33, 1
        %s314 = scalar_lea.sflag [#allocation4], %s313
        %s315 = sand.u32 %s33, 1
        %s316 = smul.addr %s315, 128
        %s317 = scalar_lea.vmem [#allocation3], %s316
        // Predicated region
        $region53: #{tpu_custom_call.1} parent=51 // pred_check
          %p318 = pneg %p46
        $region54: #{tpu_custom_call.1} parent=51 // pred_check_branch
          %320 = sbr.rel (%p318) target = $region56
        $region55: #{tpu_custom_call.1} parent=51 // pred_region
          %321 = dma.done %s314, 2048
        $region56: #{tpu_custom_call.1} parent=51 // pred_fallthru
          _
        // Predicated region
        $region57: #{tpu_custom_call.1} parent=51 // pred_check
          %p322 = pneg %p109
        $region58: #{tpu_custom_call.1} parent=51 // pred_check_branch
          %324 = sbr.rel (%p322) target = $region60
        $region59: #{tpu_custom_call.1} parent=51 // pred_region
          %325 = dma.done [#allocation7], 32768
        $region60: #{tpu_custom_call.1} parent=51 // pred_fallthru
          _
        // Predicated region
        $region61: #{tpu_custom_call.1} parent=51 // pred_check
          %p326 = pneg %p130
        $region62: #{tpu_custom_call.1} parent=51 // pred_check_branch
          %328 = sbr.rel (%p326) target = $region64
        $region63: #{tpu_custom_call.1} parent=51 // pred_region
          %329 = dma.done [#allocation7], 16384
        $region64: #{tpu_custom_call.1} parent=51 // pred_fallthru
          _
        // Predicated region
        $region65: #{tpu_custom_call.1} parent=51 // pred_check
          %p330 = pneg %p151
        $region66: #{tpu_custom_call.1} parent=51 // pred_check_branch
          %332 = sbr.rel (%p330) target = $region68
        $region67: #{tpu_custom_call.1} parent=51 // pred_region
          %333 = dma.done [#allocation10], 2048
        $region68: #{tpu_custom_call.1} parent=51 // pred_fallthru
          _
        %s334 = sand.u32 %s33, 1
        %s335 = scalar_lea.sflag [#allocation4], %s334
        %s336 = sand.u32 %s33, 1
        %s337 = smul.addr %s336, 128
        %s338 = scalar_lea.vmem [#allocation3], %s337
        %p339 = pneg %p46
        %p340 = pneg %p43
        %p341 = pneg %p67
        %p342 = pneg %p64
        %p343 = pneg %p88
        %p344 = pneg %p85
        %p345 = pneg %p109
        %p346 = pneg %p106
        %p347 = pneg %p130
        %p348 = pneg %p127
        %p349 = pneg %p151
        %p350 = pneg %p148
        %p351 = pneg %p172
        %p352 = pneg %p169
        %p353 = pneg %p193
        %p354 = pneg %p190
        %p355 = pneg %p214
        %p356 = pneg %p211
        %s357 = smul.u32 16, %s25
        %p359 = scmp.eq.s32.totalorder %s25, 0
        // Predicated region
        $region69: #{tpu_custom_call.1} parent=51 // pred_check
          %p360 = pneg %p359
        $region70: #{tpu_custom_call.1} parent=51 // pred_check_branch
          %362 = sbr.rel (%p360) target = $region72
        $region71: #{tpu_custom_call.1} parent=51 // pred_region
          %363 = vst [vmem:[#allocation2] sm:$0x1] 0.0
        $region72: #{tpu_custom_call.1} parent=51 // pred_fallthru
          _
        %v364 = vld [vmem:[%s317] sm:$0xff]
        %v365 = vld [vmem:[%s317 + $0x8] sm:$0xff]
        %v366 = vld [vmem:[%s317 + $0x10] sm:$0xff]
        %v367 = vld [vmem:[%s317 + $0x18] sm:$0xff]
        %v368 = vld [vmem:[%s317 + $0x20] sm:$0xff]
        %v369 = vld [vmem:[%s317 + $0x28] sm:$0xff]
        %v370 = vld [vmem:[%s317 + $0x30] sm:$0xff]
        %v371 = vld [vmem:[%s317 + $0x38] sm:$0xff]
        %v372 = vld [vmem:[%s317 + $0x40] sm:$0xff]
        %v373 = vld [vmem:[%s317 + $0x48] sm:$0xff]
        %v374 = vld [vmem:[%s317 + $0x50] sm:$0xff]
        %v375 = vld [vmem:[%s317 + $0x58] sm:$0xff]
        %v376 = vld [vmem:[%s317 + $0x60] sm:$0xff]
        %v377 = vld [vmem:[%s317 + $0x68] sm:$0xff]
        %v378 = vld [vmem:[%s317 + $0x70] sm:$0xff]
        %v379 = vld [vmem:[%s317 + $0x78] sm:$0xff]
        %v380 = vld [vmem:[%s1] sm:$0xf]
        %v381 = vld [vmem:[%s1 + $0x4] sm:$0xf]
        %v382 = vld [vmem:[%s1 + $0x8] sm:$0xf]
        %v383 = vld [vmem:[%s1 + $0xc] sm:$0xf]
        %v384 = vld [vmem:[%s1 + $0x10] sm:$0xf]
        %v385 = vld [vmem:[%s1 + $0x14] sm:$0xf]
        %v386 = vld [vmem:[%s1 + $0x18] sm:$0xf]
        %v387 = vld [vmem:[%s1 + $0x1c] sm:$0xf]
        %v388 = vld [vmem:[%s1 + $0x20] sm:$0xf]
        %v389 = vld [vmem:[%s1 + $0x24] sm:$0xf]
        %v390 = vld [vmem:[%s1 + $0x28] sm:$0xf]
        %v391 = vld [vmem:[%s1 + $0x2c] sm:$0xf]
        %v392 = vld [vmem:[%s1 + $0x30] sm:$0xf]
        %v393 = vld [vmem:[%s1 + $0x34] sm:$0xf]
        %v394 = vld [vmem:[%s1 + $0x38] sm:$0xf]
        %v395 = vld [vmem:[%s1 + $0x3c] sm:$0xf]
        %v396 = vld [vmem:[%s1 + $0x40] sm:$0xf]
        %v397 = vld [vmem:[%s1 + $0x44] sm:$0xf]
        %v398 = vld [vmem:[%s1 + $0x48] sm:$0xf]
        %v399 = vld [vmem:[%s1 + $0x4c] sm:$0xf]
        %v400 = vld [vmem:[%s1 + $0x50] sm:$0xf]
        %v401 = vld [vmem:[%s1 + $0x54] sm:$0xf]
        %v402 = vld [vmem:[%s1 + $0x58] sm:$0xf]
        %v403 = vld [vmem:[%s1 + $0x5c] sm:$0xf]
        %v404 = vld [vmem:[%s1 + $0x60] sm:$0xf]
        %v405 = vld [vmem:[%s1 + $0x64] sm:$0xf]
        %v406 = vld [vmem:[%s1 + $0x68] sm:$0xf]
        %v407 = vld [vmem:[%s1 + $0x6c] sm:$0xf]
        %v408 = vld [vmem:[%s1 + $0x70] sm:$0xf]
        %v409 = vld [vmem:[%s1 + $0x74] sm:$0xf]
        %v410 = vld [vmem:[%s1 + $0x78] sm:$0xf]
        %v411 = vld [vmem:[%s1 + $0x7c] sm:$0xf]
        %v412 = vld [vmem:[%s2] sm:$0x1]
        %v414 = vlaneseq
        %v415 = vshrl.u32 %v414, 7
        %v416 = vsub.s32 0, %v415
        %v417 = vrot.slane %v412, %v416
        %v435 = vunpack.c.l.b16 %v364
        %v436 = vunpack.c.h.b16 %v364
        %v437 = vunpack.c.l.b16 %v365
        %v438 = vunpack.c.h.b16 %v365
        %v439 = vunpack.c.l.b16 %v366
        %v440 = vunpack.c.h.b16 %v366
        %v441 = vunpack.c.l.b16 %v367
        %v442 = vunpack.c.h.b16 %v367
        %v443 = vunpack.c.l.b16 %v368
        %v444 = vunpack.c.h.b16 %v368
        %v445 = vunpack.c.l.b16 %v369
        %v446 = vunpack.c.h.b16 %v369
        %v447 = vunpack.c.l.b16 %v370
        %v448 = vunpack.c.h.b16 %v370
        %v449 = vunpack.c.l.b16 %v371
        %v450 = vunpack.c.h.b16 %v371
        %v451 = vunpack.c.l.b16 %v372
        %v452 = vunpack.c.h.b16 %v372
        %v453 = vunpack.c.l.b16 %v373
        %v454 = vunpack.c.h.b16 %v373
        %v455 = vunpack.c.l.b16 %v374
        %v456 = vunpack.c.h.b16 %v374
        %v457 = vunpack.c.l.b16 %v375
        %v458 = vunpack.c.h.b16 %v375
        %v459 = vunpack.c.l.b16 %v376
        %v460 = vunpack.c.h.b16 %v376
        %v461 = vunpack.c.l.b16 %v377
        %v462 = vunpack.c.h.b16 %v377
        %v463 = vunpack.c.l.b16 %v378
        %v464 = vunpack.c.h.b16 %v378
        %v465 = vunpack.c.l.b16 %v379
        %v466 = vunpack.c.h.b16 %v379
        %v467 = vpack.c.b16 %v437, %v435
        %v468 = vpack.c.b16 %v438, %v436
        %v469 = vpack.c.b16 %v441, %v439
        %v470 = vpack.c.b16 %v442, %v440
        %v471 = vpack.c.b16 %v445, %v443
        %v472 = vpack.c.b16 %v446, %v444
        %v473 = vpack.c.b16 %v449, %v447
        %v474 = vpack.c.b16 %v450, %v448
        %v475 = vpack.c.b16 %v453, %v451
        %v476 = vpack.c.b16 %v454, %v452
        %v477 = vpack.c.b16 %v457, %v455
        %v478 = vpack.c.b16 %v458, %v456
        %v479 = vpack.c.b16 %v461, %v459
        %v480 = vpack.c.b16 %v462, %v460
        %v481 = vpack.c.b16 %v465, %v463
        %v482 = vpack.c.b16 %v466, %v464
        %v531 = vunpack.c.l.b16 %v380
        %v532 = vunpack.c.l.b16 %v381
        %v533 = vunpack.c.l.b16 %v382
        %v534 = vunpack.c.l.b16 %v383
        %v535 = vunpack.c.l.b16 %v384
        %v536 = vunpack.c.l.b16 %v385
        %v537 = vunpack.c.l.b16 %v386
        %v538 = vunpack.c.l.b16 %v387
        %v539 = vunpack.c.l.b16 %v388
        %v540 = vunpack.c.l.b16 %v389
        %v541 = vunpack.c.l.b16 %v390
        %v542 = vunpack.c.l.b16 %v391
        %v543 = vunpack.c.l.b16 %v392
        %v544 = vunpack.c.l.b16 %v393
        %v545 = vunpack.c.l.b16 %v394
        %v546 = vunpack.c.l.b16 %v395
        %v547 = vunpack.c.l.b16 %v396
        %v548 = vunpack.c.l.b16 %v397
        %v549 = vunpack.c.l.b16 %v398
        %v550 = vunpack.c.l.b16 %v399
        %v551 = vunpack.c.l.b16 %v400
        %v552 = vunpack.c.l.b16 %v401
        %v553 = vunpack.c.l.b16 %v402
        %v554 = vunpack.c.l.b16 %v403
        %v555 = vunpack.c.l.b16 %v404
        %v556 = vunpack.c.l.b16 %v405
        %v557 = vunpack.c.l.b16 %v406
        %v558 = vunpack.c.l.b16 %v407
        %v559 = vunpack.c.l.b16 %v408
        %v560 = vunpack.c.l.b16 %v409
        %v561 = vunpack.c.l.b16 %v410
        %v562 = vunpack.c.l.b16 %v411
        %v563 = vpack.c.b16 %v532, %v531
        %v564 = vpack.c.b16 %v534, %v533
        %v565 = vpack.c.b16 %v536, %v535
        %v566 = vpack.c.b16 %v538, %v537
        %v567 = vpack.c.b16 %v540, %v539
        %v568 = vpack.c.b16 %v542, %v541
        %v569 = vpack.c.b16 %v544, %v543
        %v570 = vpack.c.b16 %v546, %v545
        %v571 = vpack.c.b16 %v548, %v547
        %v572 = vpack.c.b16 %v550, %v549
        %v573 = vpack.c.b16 %v552, %v551
        %v574 = vpack.c.b16 %v554, %v553
        %v575 = vpack.c.b16 %v556, %v555
        %v576 = vpack.c.b16 %v558, %v557
        %v577 = vpack.c.b16 %v560, %v559
        %v578 = vpack.c.b16 %v562, %v561
        %595 = vmatprep.subr.bf16.mxu0 0
        %596 = vmatpush1.bf16.msra.mxu0 %v570
        %597 = vmatprep.subr.bf16.mxu0 0
        %598 = vmatpush1.bf16.msra.mxu0 %v569
        %599 = vmatprep.subr.bf16.mxu0 0
        %600 = vmatpush1.bf16.msra.mxu0 %v568
        %601 = vmatprep.subr.bf16.mxu0 0
        %602 = vmatpush1.bf16.msra.mxu0 %v567
        %603 = vmatprep.subr.bf16.mxu0 0
        %604 = vmatpush1.bf16.msra.mxu0 %v566
        %605 = vmatprep.subr.bf16.mxu0 0
        %606 = vmatpush1.bf16.msra.mxu0 %v565
        %607 = vmatprep.subr.bf16.mxu0 0
        %608 = vmatpush1.bf16.msra.mxu0 %v564
        %609 = vmatprep.subr.bf16.mxu0 0
        %610 = vmatpush1.bf16.msra.mxu0 %v563
        %611 = vmatprep.subr.bf16.mxu0 0
        %612 = vmatpush2.bf16.msra.mxu0 %v578
        %613 = vmatprep.subr.bf16.mxu0 0
        %614 = vmatpush2.bf16.msra.mxu0 %v577
        %615 = vmatprep.subr.bf16.mxu0 0
        %616 = vmatpush2.bf16.msra.mxu0 %v576
        %617 = vmatprep.subr.bf16.mxu0 0
        %618 = vmatpush2.bf16.msra.mxu0 %v575
        %619 = vmatprep.subr.bf16.mxu0 0
        %620 = vmatpush2.bf16.msra.mxu0 %v574
        %621 = vmatprep.subr.bf16.mxu0 0
        %622 = vmatpush2.bf16.msra.mxu0 %v573
        %623 = vmatprep.subr.bf16.mxu0 0
        %624 = vmatpush2.bf16.msra.mxu0 %v572
        %625 = vmatprep.subr.bf16.mxu0 0
        %626 = vmatpush2.bf16.msra.mxu0 %v571
        %627 = vmatprep.mubr.bf16.mxu0 %v468
        %628 = vmatmul.mubr.bf16.gmra.mxu0 %v467
        %v629 = vpop.f32.mrf.mxu0
        %v630 = vadd.f32 %v417, %v629
        %v631 = vpop.f32.mrf.mxu0
        %v632 = vpop.f32.mrf.mxu0
        %v633 = vadd.f32 %v417, %v632
        %v634 = vpop.f32.mrf.mxu0
        %635 = vmatprep.mubr.bf16.mxu0 %v470
        %636 = vmatmul.mubr.bf16.gmra.mxu0 %v469
        %v637 = vpop.f32.mrf.mxu0
        %v638 = vadd.f32 %v417, %v637
        %v639 = vpop.f32.mrf.mxu0
        %v640 = vpop.f32.mrf.mxu0
        %v641 = vadd.f32 %v417, %v640
        %v642 = vpop.f32.mrf.mxu0
        %643 = vmatprep.mubr.bf16.mxu0 %v472
        %644 = vmatmul.mubr.bf16.gmra.mxu0 %v471
        %v645 = vpop.f32.mrf.mxu0
        %v646 = vadd.f32 %v417, %v645
        %v647 = vpop.f32.mrf.mxu0
        %v648 = vpop.f32.mrf.mxu0
        %v649 = vadd.f32 %v417, %v648
        %v650 = vpop.f32.mrf.mxu0
        %651 = vmatprep.mubr.bf16.mxu0 %v474
        %652 = vmatmul.mubr.bf16.gmra.mxu0 %v473
        %v653 = vpop.f32.mrf.mxu0
        %v654 = vadd.f32 %v417, %v653
        %v655 = vpop.f32.mrf.mxu0
        %v656 = vpop.f32.mrf.mxu0
        %v657 = vadd.f32 %v417, %v656
        %v658 = vpop.f32.mrf.mxu0
        %659 = vmatprep.mubr.bf16.mxu0 %v476
        %660 = vmatmul.mubr.bf16.gmra.mxu0 %v475
        %v661 = vpop.f32.mrf.mxu0
        %v662 = vadd.f32 %v417, %v661
        %v663 = vpop.f32.mrf.mxu0
        %v664 = vpop.f32.mrf.mxu0
        %v665 = vadd.f32 %v417, %v664
        %v666 = vpop.f32.mrf.mxu0
        %667 = vmatprep.mubr.bf16.mxu0 %v478
        %668 = vmatmul.mubr.bf16.gmra.mxu0 %v477
        %v669 = vpop.f32.mrf.mxu0
        %v670 = vadd.f32 %v417, %v669
        %v671 = vpop.f32.mrf.mxu0
        %v672 = vpop.f32.mrf.mxu0
        %v673 = vadd.f32 %v417, %v672
        %v674 = vpop.f32.mrf.mxu0
        %675 = vmatprep.mubr.bf16.mxu0 %v480
        %676 = vmatmul.mubr.bf16.gmra.mxu0 %v479
        %v677 = vpop.f32.mrf.mxu0
        %v678 = vadd.f32 %v417, %v677
        %v679 = vpop.f32.mrf.mxu0
        %v680 = vpop.f32.mrf.mxu0
        %v681 = vadd.f32 %v417, %v680
        %v682 = vpop.f32.mrf.mxu0
        %683 = vmatprep.mubr.bf16.mxu0 %v482
        %684 = vmatmul.mubr.bf16.gmra.mxu0 %v481
        %v685 = vpop.f32.mrf.mxu0
        %v686 = vadd.f32 %v417, %v685
        %v687 = vpop.f32.mrf.mxu0
        %v688 = vpop.f32.mrf.mxu0
        %v689 = vadd.f32 %v417, %v688
        %v690 = vpop.f32.mrf.mxu0
        %691 = vdwg.mxu0
        %v692 = vld [vmem:[#allocation6 + $0x780] sm:$0xff]
        %v693 = vld [vmem:[#allocation6 + $0x788] sm:$0xff]
        %v694 = vld [vmem:[#allocation6 + $0x790] sm:$0xff]
        %v695 = vld [vmem:[#allocation6 + $0x798] sm:$0xff]
        %v696 = vld [vmem:[#allocation6 + $0x7a0] sm:$0xff]
        %v697 = vld [vmem:[#allocation6 + $0x7a8] sm:$0xff]
        %v698 = vld [vmem:[#allocation6 + $0x7b0] sm:$0xff]
        %v699 = vld [vmem:[#allocation6 + $0x7b8] sm:$0xff]
        %v700 = vld [vmem:[#allocation6 + $0x7c0] sm:$0xff]
        %v701 = vld [vmem:[#allocation6 + $0x7c8] sm:$0xff]
        %v702 = vld [vmem:[#allocation6 + $0x7d0] sm:$0xff]
        %v703 = vld [vmem:[#allocation6 + $0x7d8] sm:$0xff]
        %v704 = vld [vmem:[#allocation6 + $0x7e0] sm:$0xff]
        %v705 = vld [vmem:[#allocation6 + $0x7e8] sm:$0xff]
        %v706 = vld [vmem:[#allocation6 + $0x7f0] sm:$0xff]
        %v707 = vld [vmem:[#allocation6 + $0x7f8] sm:$0xff]
        %v708 = vld [vmem:[#allocation6 + $0x700] sm:$0xff]
        %v709 = vld [vmem:[#allocation6 + $0x708] sm:$0xff]
        %v710 = vld [vmem:[#allocation6 + $0x710] sm:$0xff]
        %v711 = vld [vmem:[#allocation6 + $0x718] sm:$0xff]
        %v712 = vld [vmem:[#allocation6 + $0x720] sm:$0xff]
        %v713 = vld [vmem:[#allocation6 + $0x728] sm:$0xff]
        %v714 = vld [vmem:[#allocation6 + $0x730] sm:$0xff]
        %v715 = vld [vmem:[#allocation6 + $0x738] sm:$0xff]
        %v716 = vld [vmem:[#allocation6 + $0x740] sm:$0xff]
        %v717 = vld [vmem:[#allocation6 + $0x748] sm:$0xff]
        %v718 = vld [vmem:[#allocation6 + $0x750] sm:$0xff]
        %v719 = vld [vmem:[#allocation6 + $0x758] sm:$0xff]
        %v720 = vld [vmem:[#allocation6 + $0x760] sm:$0xff]
        %v721 = vld [vmem:[#allocation6 + $0x768] sm:$0xff]
        %v722 = vld [vmem:[#allocation6 + $0x770] sm:$0xff]
        %v723 = vld [vmem:[#allocation6 + $0x778] sm:$0xff]
        %724 = vmatprep.subr.mxu0 0.0
        %725 = vmatpush1.msra.mxu0 %v723
        %726 = vmatprep.subr.mxu0 0.0
        %727 = vmatpush1.msra.mxu0 %v722
        %728 = vmatprep.subr.mxu0 0.0
        %729 = vmatpush1.msra.mxu0 %v721
        %730 = vmatprep.subr.mxu0 0.0
        %731 = vmatpush1.msra.mxu0 %v720
        %732 = vmatprep.subr.mxu0 0.0
        %733 = vmatpush1.msra.mxu0 %v719
        %734 = vmatprep.subr.mxu0 0.0
        %735 = vmatpush1.msra.mxu0 %v718
        %736 = vmatprep.subr.mxu0 0.0
        %737 = vmatpush1.msra.mxu0 %v717
        %738 = vmatprep.subr.mxu0 0.0
        %739 = vmatpush1.msra.mxu0 %v716
        %740 = vmatprep.subr.mxu0 0.0
        %741 = vmatpush1.msra.mxu0 %v715
        %742 = vmatprep.subr.mxu0 0.0
        %743 = vmatpush1.msra.mxu0 %v714
        %744 = vmatprep.subr.mxu0 0.0
        %745 = vmatpush1.msra.mxu0 %v713
        %746 = vmatprep.subr.mxu0 0.0
        %747 = vmatpush1.msra.mxu0 %v712
        %748 = vmatprep.subr.mxu0 0.0
        %749 = vmatpush1.msra.mxu0 %v711
        %750 = vmatprep.subr.mxu0 0.0
        %751 = vmatpush1.msra.mxu0 %v710
        %752 = vmatprep.subr.mxu0 0.0
        %753 = vmatpush1.msra.mxu0 %v709
        %754 = vmatprep.subr.mxu0 0.0
        %755 = vmatpush1.msra.mxu0 %v708
        %756 = vmatprep.subr.mxu0 0.0
        %757 = vmatpush2.msra.mxu0 0.0
        %758 = vmatprep.subr.mxu0 0.0
        %759 = vmatpush2.msra.mxu0 0.0
        %760 = vmatprep.subr.mxu0 0.0
        %761 = vmatpush2.msra.mxu0 0.0
        %762 = vmatprep.subr.mxu0 0.0
        %763 = vmatpush2.msra.mxu0 0.0
        %764 = vmatprep.subr.mxu0 0.0
        %765 = vmatpush2.msra.mxu0 0.0
        %766 = vmatprep.subr.mxu0 0.0
        %767 = vmatpush2.msra.mxu0 0.0
        %768 = vmatprep.subr.mxu0 0.0
        %769 = vmatpush2.msra.mxu0 0.0
        %770 = vmatprep.subr.mxu0 0.0
        %771 = vmatpush2.msra.mxu0 0.0
        %772 = vmatprep.subr.mxu0 0.0
        %773 = vmatpush2.msra.mxu0 0.0
        %774 = vmatprep.subr.mxu0 0.0
        %775 = vmatpush2.msra.mxu0 0.0
        %776 = vmatprep.subr.mxu0 0.0
        %777 = vmatpush2.msra.mxu0 0.0
        %778 = vmatprep.subr.mxu0 0.0
        %779 = vmatpush2.msra.mxu0 0.0
        %780 = vmatprep.subr.mxu0 0.0
        %781 = vmatpush2.msra.mxu0 0.0
        %782 = vmatprep.subr.mxu0 0.0
        %783 = vmatpush2.msra.mxu0 0.0
        %784 = vmatprep.subr.mxu0 0.0
        %785 = vmatpush2.msra.mxu0 0.0
        %786 = vmatprep.subr.mxu0 0.0
        %787 = vmatpush2.msra.mxu0 0.0
        %788 = vmatprep.mubr.f32.mxu0 0.0
        %789 = vmatmul.mubr.f32.gmra.mxu0 %v633
        %v790 = vpop.f32.mrf.mxu0
        %v791 = vadd.f32 0.0, %v790
        %v792 = vpop.f32.mrf.mxu0
        %793 = vdwg.mxu0
        %794 = vmatprep.subr.mxu0 0.0
        %795 = vmatpush1.msra.mxu0 %v707
        %796 = vmatprep.subr.mxu0 0.0
        %797 = vmatpush1.msra.mxu0 %v706
        %798 = vmatprep.subr.mxu0 0.0
        %799 = vmatpush1.msra.mxu0 %v705
        %800 = vmatprep.subr.mxu0 0.0
        %801 = vmatpush1.msra.mxu0 %v704
        %802 = vmatprep.subr.mxu0 0.0
        %803 = vmatpush1.msra.mxu0 %v703
        %804 = vmatprep.subr.mxu0 0.0
        %805 = vmatpush1.msra.mxu0 %v702
        %806 = vmatprep.subr.mxu0 0.0
        %807 = vmatpush1.msra.mxu0 %v701
        %808 = vmatprep.subr.mxu0 0.0
        %809 = vmatpush1.msra.mxu0 %v700
        %810 = vmatprep.subr.mxu0 0.0
        %811 = vmatpush1.msra.mxu0 %v699
        %812 = vmatprep.subr.mxu0 0.0
        %813 = vmatpush1.msra.mxu0 %v698
        %814 = vmatprep.subr.mxu0 0.0
        %815 = vmatpush1.msra.mxu0 %v697
        %816 = vmatprep.subr.mxu0 0.0
        %817 = vmatpush1.msra.mxu0 %v696
        %818 = vmatprep.subr.mxu0 0.0
        %819 = vmatpush1.msra.mxu0 %v695
        %820 = vmatprep.subr.mxu0 0.0
        %821 = vmatpush1.msra.mxu0 %v694
        %822 = vmatprep.subr.mxu0 0.0
        %823 = vmatpush1.msra.mxu0 %v693
        %824 = vmatprep.subr.mxu0 0.0
        %825 = vmatpush1.msra.mxu0 %v692
        %826 = vmatprep.subr.mxu0 0.0
        %827 = vmatpush2.msra.mxu0 0.0
        %828 = vmatprep.subr.mxu0 0.0
        %829 = vmatpush2.msra.mxu0 0.0
        %830 = vmatprep.subr.mxu0 0.0
        %831 = vmatpush2.msra.mxu0 0.0
        %832 = vmatprep.subr.mxu0 0.0
        %833 = vmatpush2.msra.mxu0 0.0
        %834 = vmatprep.subr.mxu0 0.0
        %835 = vmatpush2.msra.mxu0 0.0
        %836 = vmatprep.subr.mxu0 0.0
        %837 = vmatpush2.msra.mxu0 0.0
        %838 = vmatprep.subr.mxu0 0.0
        %839 = vmatpush2.msra.mxu0 0.0
        %840 = vmatprep.subr.mxu0 0.0
        %841 = vmatpush2.msra.mxu0 0.0
        %842 = vmatprep.subr.mxu0 0.0
        %843 = vmatpush2.msra.mxu0 0.0
        %844 = vmatprep.subr.mxu0 0.0
        %845 = vmatpush2.msra.mxu0 0.0
        %846 = vmatprep.subr.mxu0 0.0
        %847 = vmatpush2.msra.mxu0 0.0
        %848 = vmatprep.subr.mxu0 0.0
        %849 = vmatpush2.msra.mxu0 0.0
        %850 = vmatprep.subr.mxu0 0.0
        %851 = vmatpush2.msra.mxu0 0.0
        %852 = vmatprep.subr.mxu0 0.0
        %853 = vmatpush2.msra.mxu0 0.0
        %854 = vmatprep.subr.mxu0 0.0
        %855 = vmatpush2.msra.mxu0 0.0
        %856 = vmatprep.subr.mxu0 0.0
        %857 = vmatpush2.msra.mxu0 0.0
        %858 = vmatprep.mubr.f32.mxu0 0.0
        %859 = vmatmul.mubr.f32.gmra.mxu0 %v630
        %v860 = vpop.f32.mrf.mxu0
        %v861 = vadd.f32 %v791, %v860
        %v862 = vpop.f32.mrf.mxu0
        %863 = vdwg.mxu0
        %v864 = vld [vmem:[#allocation6 + $0x680] sm:$0xff]
        %v865 = vld [vmem:[#allocation6 + $0x688] sm:$0xff]
        %v866 = vld [vmem:[#allocation6 + $0x690] sm:$0xff]
        %v867 = vld [vmem:[#allocation6 + $0x698] sm:$0xff]
        %v868 = vld [vmem:[#allocation6 + $0x6a0] sm:$0xff]
        %v869 = vld [vmem:[#allocation6 + $0x6a8] sm:$0xff]
        %v870 = vld [vmem:[#allocation6 + $0x6b0] sm:$0xff]
        %v871 = vld [vmem:[#allocation6 + $0x6b8] sm:$0xff]
        %v872 = vld [vmem:[#allocation6 + $0x6c0] sm:$0xff]
        %v873 = vld [vmem:[#allocation6 + $0x6c8] sm:$0xff]
        %v874 = vld [vmem:[#allocation6 + $0x6d0] sm:$0xff]
        %v875 = vld [vmem:[#allocation6 + $0x6d8] sm:$0xff]
        %v876 = vld [vmem:[#allocation6 + $0x6e0] sm:$0xff]
        %v877 = vld [vmem:[#allocation6 + $0x6e8] sm:$0xff]
        %v878 = vld [vmem:[#allocation6 + $0x6f0] sm:$0xff]
        %v879 = vld [vmem:[#allocation6 + $0x6f8] sm:$0xff]
        %880 = vmatprep.subr.mxu0 0.0
        %881 = vmatpush1.msra.mxu0 %v879
        %882 = vmatprep.subr.mxu0 0.0
        %883 = vmatpush1.msra.mxu0 %v878
        %884 = vmatprep.subr.mxu0 0.0
        %885 = vmatpush1.msra.mxu0 %v877
        %886 = vmatprep.subr.mxu0 0.0
        %887 = vmatpush1.msra.mxu0 %v876
        %888 = vmatprep.subr.mxu0 0.0
        %889 = vmatpush1.msra.mxu0 %v875
        %890 = vmatprep.subr.mxu0 0.0
        %891 = vmatpush1.msra.mxu0 %v874
        %892 = vmatprep.subr.mxu0 0.0
        %893 = vmatpush1.msra.mxu0 %v873
        %894 = vmatprep.subr.mxu0 0.0
        %895 = vmatpush1.msra.mxu0 %v872
        %896 = vmatprep.subr.mxu0 0.0
        %897 = vmatpush1.msra.mxu0 %v871
        %898 = vmatprep.subr.mxu0 0.0
        %899 = vmatpush1.msra.mxu0 %v870
        %900 = vmatprep.subr.mxu0 0.0
        %901 = vmatpush1.msra.mxu0 %v869
        %902 = vmatprep.subr.mxu0 0.0
        %903 = vmatpush1.msra.mxu0 %v868
        %904 = vmatprep.subr.mxu0 0.0
        %905 = vmatpush1.msra.mxu0 %v867
        %906 = vmatprep.subr.mxu0 0.0
        %907 = vmatpush1.msra.mxu0 %v866
        %908 = vmatprep.subr.mxu0 0.0
        %909 = vmatpush1.msra.mxu0 %v865
        %910 = vmatprep.subr.mxu0 0.0
        %911 = vmatpush1.msra.mxu0 %v864
        %912 = vmatprep.subr.mxu0 0.0
        %913 = vmatpush2.msra.mxu0 0.0
        %914 = vmatprep.subr.mxu0 0.0
        %915 = vmatpush2.msra.mxu0 0.0
        %916 = vmatprep.subr.mxu0 0.0
        %917 = vmatpush2.msra.mxu0 0.0
        %918 = vmatprep.subr.mxu0 0.0
        %919 = vmatpush2.msra.mxu0 0.0
        %920 = vmatprep.subr.mxu0 0.0
        %921 = vmatpush2.msra.mxu0 0.0
        %922 = vmatprep.subr.mxu0 0.0
        %923 = vmatpush2.msra.mxu0 0.0
        %924 = vmatprep.subr.mxu0 0.0
        %925 = vmatpush2.msra.mxu0 0.0
        %926 = vmatprep.subr.mxu0 0.0
        %927 = vmatpush2.msra.mxu0 0.0
        %928 = vmatprep.subr.mxu0 0.0
        %929 = vmatpush2.msra.mxu0 0.0
        %930 = vmatprep.subr.mxu0 0.0
        %931 = vmatpush2.msra.mxu0 0.0
        %932 = vmatprep.subr.mxu0 0.0
        %933 = vmatpush2.msra.mxu0 0.0
        %934 = vmatprep.subr.mxu0 0.0
        %935 = vmatpush2.msra.mxu0 0.0
        %936 = vmatprep.subr.mxu0 0.0
        %937 = vmatpush2.msra.mxu0 0.0
        %938 = vmatprep.subr.mxu0 0.0
        %939 = vmatpush2.msra.mxu0 0.0
        %940 = vmatprep.subr.mxu0 0.0
        %941 = vmatpush2.msra.mxu0 0.0
        %942 = vmatprep.subr.mxu0 0.0
        %943 = vmatpush2.msra.mxu0 0.0
        %944 = vmatprep.mubr.f32.mxu0 0.0
        %945 = vmatmul.mubr.f32.gmra.mxu0 %v638
        %v946 = vpop.f32.mrf.mxu0
        %v947 = vadd.f32 0.0, %v946
        %v948 = vpop.f32.mrf.mxu0
        %949 = vdwg.mxu0
        %v950 = vadd.f32 %v861, %v947
        %v951 = vld [vmem:[#allocation6 + $0x600] sm:$0xff]
        %v952 = vld [vmem:[#allocation6 + $0x608] sm:$0xff]
        %v953 = vld [vmem:[#allocation6 + $0x610] sm:$0xff]
        %v954 = vld [vmem:[#allocation6 + $0x618] sm:$0xff]
        %v955 = vld [vmem:[#allocation6 + $0x620] sm:$0xff]
        %v956 = vld [vmem:[#allocation6 + $0x628] sm:$0xff]
        %v957 = vld [vmem:[#allocation6 + $0x630] sm:$0xff]
        %v958 = vld [vmem:[#allocation6 + $0x638] sm:$0xff]
        %v959 = vld [vmem:[#allocation6 + $0x640] sm:$0xff]
        %v960 = vld [vmem:[#allocation6 + $0x648] sm:$0xff]
        %v961 = vld [vmem:[#allocation6 + $0x650] sm:$0xff]
        %v962 = vld [vmem:[#allocation6 + $0x658] sm:$0xff]
        %v963 = vld [vmem:[#allocation6 + $0x660] sm:$0xff]
        %v964 = vld [vmem:[#allocation6 + $0x668] sm:$0xff]
        %v965 = vld [vmem:[#allocation6 + $0x670] sm:$0xff]
        %v966 = vld [vmem:[#allocation6 + $0x678] sm:$0xff]
        %967 = vmatprep.subr.mxu0 0.0
        %968 = vmatpush1.msra.mxu0 %v966
        %969 = vmatprep.subr.mxu0 0.0
        %970 = vmatpush1.msra.mxu0 %v965
        %971 = vmatprep.subr.mxu0 0.0
        %972 = vmatpush1.msra.mxu0 %v964
        %973 = vmatprep.subr.mxu0 0.0
        %974 = vmatpush1.msra.mxu0 %v963
        %975 = vmatprep.subr.mxu0 0.0
        %976 = vmatpush1.msra.mxu0 %v962
        %977 = vmatprep.subr.mxu0 0.0
        %978 = vmatpush1.msra.mxu0 %v961
        %979 = vmatprep.subr.mxu0 0.0
        %980 = vmatpush1.msra.mxu0 %v960
        %981 = vmatprep.subr.mxu0 0.0
        %982 = vmatpush1.msra.mxu0 %v959
        %983 = vmatprep.subr.mxu0 0.0
        %984 = vmatpush1.msra.mxu0 %v958
        %985 = vmatprep.subr.mxu0 0.0
        %986 = vmatpush1.msra.mxu0 %v957
        %987 = vmatprep.subr.mxu0 0.0
        %988 = vmatpush1.msra.mxu0 %v956
        %989 = vmatprep.subr.mxu0 0.0
        %990 = vmatpush1.msra.mxu0 %v955
        %991 = vmatprep.subr.mxu0 0.0
        %992 = vmatpush1.msra.mxu0 %v954
        %993 = vmatprep.subr.mxu0 0.0
        %994 = vmatpush1.msra.mxu0 %v953
        %995 = vmatprep.subr.mxu0 0.0
        %996 = vmatpush1.msra.mxu0 %v952
        %997 = vmatprep.subr.mxu0 0.0
        %998 = vmatpush1.msra.mxu0 %v951
        %999 = vmatprep.subr.mxu0 0.0
        %1000 = vmatpush2.msra.mxu0 0.0
        %1001 = vmatprep.subr.mxu0 0.0
        %1002 = vmatpush2.msra.mxu0 0.0
        %1003 = vmatprep.subr.mxu0 0.0
        %1004 = vmatpush2.msra.mxu0 0.0
        %1005 = vmatprep.subr.mxu0 0.0
        %1006 = vmatpush2.msra.mxu0 0.0
        %1007 = vmatprep.subr.mxu0 0.0
        %1008 = vmatpush2.msra.mxu0 0.0
        %1009 = vmatprep.subr.mxu0 0.0
        %1010 = vmatpush2.msra.mxu0 0.0
        %1011 = vmatprep.subr.mxu0 0.0
        %1012 = vmatpush2.msra.mxu0 0.0
        %1013 = vmatprep.subr.mxu0 0.0
        %1014 = vmatpush2.msra.mxu0 0.0
        %1015 = vmatprep.subr.mxu0 0.0
        %1016 = vmatpush2.msra.mxu0 0.0
        %1017 = vmatprep.subr.mxu0 0.0
        %1018 = vmatpush2.msra.mxu0 0.0
        %1019 = vmatprep.subr.mxu0 0.0
        %1020 = vmatpush2.msra.mxu0 0.0
        %1021 = vmatprep.subr.mxu0 0.0
        %1022 = vmatpush2.msra.mxu0 0.0
        %1023 = vmatprep.subr.mxu0 0.0
        %1024 = vmatpush2.msra.mxu0 0.0
        %1025 = vmatprep.subr.mxu0 0.0
        %1026 = vmatpush2.msra.mxu0 0.0
        %1027 = vmatprep.subr.mxu0 0.0
        %1028 = vmatpush2.msra.mxu0 0.0
        %1029 = vmatprep.subr.mxu0 0.0
        %1030 = vmatpush2.msra.mxu0 0.0
        %1031 = vmatprep.mubr.f32.mxu0 0.0
        %1032 = vmatmul.mubr.f32.gmra.mxu0 %v641
        %v1033 = vpop.f32.mrf.mxu0
        %v1034 = vadd.f32 0.0, %v1033
        %v1035 = vpop.f32.mrf.mxu0
        %1036 = vdwg.mxu0
        %v1037 = vadd.f32 %v950, %v1034
        %v1038 = vld [vmem:[#allocation6 + $0x580] sm:$0xff]
        %v1039 = vld [vmem:[#allocation6 + $0x588] sm:$0xff]
        %v1040 = vld [vmem:[#allocation6 + $0x590] sm:$0xff]
        %v1041 = vld [vmem:[#allocation6 + $0x598] sm:$0xff]
        %v1042 = vld [vmem:[#allocation6 + $0x5a0] sm:$0xff]
        %v1043 = vld [vmem:[#allocation6 + $0x5a8] sm:$0xff]
        %v1044 = vld [vmem:[#allocation6 + $0x5b0] sm:$0xff]
        %v1045 = vld [vmem:[#allocation6 + $0x5b8] sm:$0xff]
        %v1046 = vld [vmem:[#allocation6 + $0x5c0] sm:$0xff]
        %v1047 = vld [vmem:[#allocation6 + $0x5c8] sm:$0xff]
        %v1048 = vld [vmem:[#allocation6 + $0x5d0] sm:$0xff]
        %v1049 = vld [vmem:[#allocation6 + $0x5d8] sm:$0xff]
        %v1050 = vld [vmem:[#allocation6 + $0x5e0] sm:$0xff]
        %v1051 = vld [vmem:[#allocation6 + $0x5e8] sm:$0xff]
        %v1052 = vld [vmem:[#allocation6 + $0x5f0] sm:$0xff]
        %v1053 = vld [vmem:[#allocation6 + $0x5f8] sm:$0xff]
        %1054 = vmatprep.subr.mxu0 0.0
        %1055 = vmatpush1.msra.mxu0 %v1053
        %1056 = vmatprep.subr.mxu0 0.0
        %1057 = vmatpush1.msra.mxu0 %v1052
        %1058 = vmatprep.subr.mxu0 0.0
        %1059 = vmatpush1.msra.mxu0 %v1051
        %1060 = vmatprep.subr.mxu0 0.0
        %1061 = vmatpush1.msra.mxu0 %v1050
        %1062 = vmatprep.subr.mxu0 0.0
        %1063 = vmatpush1.msra.mxu0 %v1049
        %1064 = vmatprep.subr.mxu0 0.0
        %1065 = vmatpush1.msra.mxu0 %v1048
        %1066 = vmatprep.subr.mxu0 0.0
        %1067 = vmatpush1.msra.mxu0 %v1047
        %1068 = vmatprep.subr.mxu0 0.0
        %1069 = vmatpush1.msra.mxu0 %v1046
        %1070 = vmatprep.subr.mxu0 0.0
        %1071 = vmatpush1.msra.mxu0 %v1045
        %1072 = vmatprep.subr.mxu0 0.0
        %1073 = vmatpush1.msra.mxu0 %v1044
        %1074 = vmatprep.subr.mxu0 0.0
        %1075 = vmatpush1.msra.mxu0 %v1043
        %1076 = vmatprep.subr.mxu0 0.0
        %1077 = vmatpush1.msra.mxu0 %v1042
        %1078 = vmatprep.subr.mxu0 0.0
        %1079 = vmatpush1.msra.mxu0 %v1041
        %1080 = vmatprep.subr.mxu0 0.0
        %1081 = vmatpush1.msra.mxu0 %v1040
        %1082 = vmatprep.subr.mxu0 0.0
        %1083 = vmatpush1.msra.mxu0 %v1039
        %1084 = vmatprep.subr.mxu0 0.0
        %1085 = vmatpush1.msra.mxu0 %v1038
        %1086 = vmatprep.subr.mxu0 0.0
        %1087 = vmatpush2.msra.mxu0 0.0
        %1088 = vmatprep.subr.mxu0 0.0
        %1089 = vmatpush2.msra.mxu0 0.0
        %1090 = vmatprep.subr.mxu0 0.0
        %1091 = vmatpush2.msra.mxu0 0.0
        %1092 = vmatprep.subr.mxu0 0.0
        %1093 = vmatpush2.msra.mxu0 0.0
        %1094 = vmatprep.subr.mxu0 0.0
        %1095 = vmatpush2.msra.mxu0 0.0
        %1096 = vmatprep.subr.mxu0 0.0
        %1097 = vmatpush2.msra.mxu0 0.0
        %1098 = vmatprep.subr.mxu0 0.0
        %1099 = vmatpush2.msra.mxu0 0.0
        %1100 = vmatprep.subr.mxu0 0.0
        %1101 = vmatpush2.msra.mxu0 0.0
        %1102 = vmatprep.subr.mxu0 0.0
        %1103 = vmatpush2.msra.mxu0 0.0
        %1104 = vmatprep.subr.mxu0 0.0
        %1105 = vmatpush2.msra.mxu0 0.0
        %1106 = vmatprep.subr.mxu0 0.0
        %1107 = vmatpush2.msra.mxu0 0.0
        %1108 = vmatprep.subr.mxu0 0.0
        %1109 = vmatpush2.msra.mxu0 0.0
        %1110 = vmatprep.subr.mxu0 0.0
        %1111 = vmatpush2.msra.mxu0 0.0
        %1112 = vmatprep.subr.mxu0 0.0
        %1113 = vmatpush2.msra.mxu0 0.0
        %1114 = vmatprep.subr.mxu0 0.0
        %1115 = vmatpush2.msra.mxu0 0.0
        %1116 = vmatprep.subr.mxu0 0.0
        %1117 = vmatpush2.msra.mxu0 0.0
        %1118 = vmatprep.mubr.f32.mxu0 0.0
        %1119 = vmatmul.mubr.f32.gmra.mxu0 %v646
        %v1120 = vpop.f32.mrf.mxu0
        %v1121 = vadd.f32 0.0, %v1120
        %v1122 = vpop.f32.mrf.mxu0
        %1123 = vdwg.mxu0
        %v1124 = vadd.f32 %v1037, %v1121
        %v1125 = vld [vmem:[#allocation6 + $0x500] sm:$0xff]
        %v1126 = vld [vmem:[#allocation6 + $0x508] sm:$0xff]
        %v1127 = vld [vmem:[#allocation6 + $0x510] sm:$0xff]
        %v1128 = vld [vmem:[#allocation6 + $0x518] sm:$0xff]
        %v1129 = vld [vmem:[#allocation6 + $0x520] sm:$0xff]
        %v1130 = vld [vmem:[#allocation6 + $0x528] sm:$0xff]
        %v1131 = vld [vmem:[#allocation6 + $0x530] sm:$0xff]
        %v1132 = vld [vmem:[#allocation6 + $0x538] sm:$0xff]
        %v1133 = vld [vmem:[#allocation6 + $0x540] sm:$0xff]
        %v1134 = vld [vmem:[#allocation6 + $0x548] sm:$0xff]
        %v1135 = vld [vmem:[#allocation6 + $0x550] sm:$0xff]
        %v1136 = vld [vmem:[#allocation6 + $0x558] sm:$0xff]
        %v1137 = vld [vmem:[#allocation6 + $0x560] sm:$0xff]
        %v1138 = vld [vmem:[#allocation6 + $0x568] sm:$0xff]
        %v1139 = vld [vmem:[#allocation6 + $0x570] sm:$0xff]
        %v1140 = vld [vmem:[#allocation6 + $0x578] sm:$0xff]
        %1141 = vmatprep.subr.mxu0 0.0
        %1142 = vmatpush1.msra.mxu0 %v1140
        %1143 = vmatprep.subr.mxu0 0.0
        %1144 = vmatpush1.msra.mxu0 %v1139
        %1145 = vmatprep.subr.mxu0 0.0
        %1146 = vmatpush1.msra.mxu0 %v1138
        %1147 = vmatprep.subr.mxu0 0.0
        %1148 = vmatpush1.msra.mxu0 %v1137
        %1149 = vmatprep.subr.mxu0 0.0
        %1150 = vmatpush1.msra.mxu0 %v1136
        %1151 = vmatprep.subr.mxu0 0.0
        %1152 = vmatpush1.msra.mxu0 %v1135
        %1153 = vmatprep.subr.mxu0 0.0
        %1154 = vmatpush1.msra.mxu0 %v1134
        %1155 = vmatprep.subr.mxu0 0.0
        %1156 = vmatpush1.msra.mxu0 %v1133
        %1157 = vmatprep.subr.mxu0 0.0
        %1158 = vmatpush1.msra.mxu0 %v1132
        %1159 = vmatprep.subr.mxu0 0.0
        %1160 = vmatpush1.msra.mxu0 %v1131
        %1161 = vmatprep.subr.mxu0 0.0
        %1162 = vmatpush1.msra.mxu0 %v1130
        %1163 = vmatprep.subr.mxu0 0.0
        %1164 = vmatpush1.msra.mxu0 %v1129
        %1165 = vmatprep.subr.mxu0 0.0
        %1166 = vmatpush1.msra.mxu0 %v1128
        %1167 = vmatprep.subr.mxu0 0.0
        %1168 = vmatpush1.msra.mxu0 %v1127
        %1169 = vmatprep.subr.mxu0 0.0
        %1170 = vmatpush1.msra.mxu0 %v1126
        %1171 = vmatprep.subr.mxu0 0.0
        %1172 = vmatpush1.msra.mxu0 %v1125
        %1173 = vmatprep.subr.mxu0 0.0
        %1174 = vmatpush2.msra.mxu0 0.0
        %1175 = vmatprep.subr.mxu0 0.0
        %1176 = vmatpush2.msra.mxu0 0.0
        %1177 = vmatprep.subr.mxu0 0.0
        %1178 = vmatpush2.msra.mxu0 0.0
        %1179 = vmatprep.subr.mxu0 0.0
        %1180 = vmatpush2.msra.mxu0 0.0
        %1181 = vmatprep.subr.mxu0 0.0
        %1182 = vmatpush2.msra.mxu0 0.0
        %1183 = vmatprep.subr.mxu0 0.0
        %1184 = vmatpush2.msra.mxu0 0.0
        %1185 = vmatprep.subr.mxu0 0.0
        %1186 = vmatpush2.msra.mxu0 0.0
        %1187 = vmatprep.subr.mxu0 0.0
        %1188 = vmatpush2.msra.mxu0 0.0
        %1189 = vmatprep.subr.mxu0 0.0
        %1190 = vmatpush2.msra.mxu0 0.0
        %1191 = vmatprep.subr.mxu0 0.0
        %1192 = vmatpush2.msra.mxu0 0.0
        %1193 = vmatprep.subr.mxu0 0.0
        %1194 = vmatpush2.msra.mxu0 0.0
        %1195 = vmatprep.subr.mxu0 0.0
        %1196 = vmatpush2.msra.mxu0 0.0
        %1197 = vmatprep.subr.mxu0 0.0
        %1198 = vmatpush2.msra.mxu0 0.0
        %1199 = vmatprep.subr.mxu0 0.0
        %1200 = vmatpush2.msra.mxu0 0.0
        %1201 = vmatprep.subr.mxu0 0.0
        %1202 = vmatpush2.msra.mxu0 0.0
        %1203 = vmatprep.subr.mxu0 0.0
        %1204 = vmatpush2.msra.mxu0 0.0
        %1205 = vmatprep.mubr.f32.mxu0 0.0
        %1206 = vmatmul.mubr.f32.gmra.mxu0 %v649
        %v1207 = vpop.f32.mrf.mxu0
        %v1208 = vadd.f32 0.0, %v1207
        %v1209 = vpop.f32.mrf.mxu0
        %1210 = vdwg.mxu0
        %v1211 = vadd.f32 %v1124, %v1208
        %v1212 = vld [vmem:[#allocation6 + $0x480] sm:$0xff]
        %v1213 = vld [vmem:[#allocation6 + $0x488] sm:$0xff]
        %v1214 = vld [vmem:[#allocation6 + $0x490] sm:$0xff]
        %v1215 = vld [vmem:[#allocation6 + $0x498] sm:$0xff]
        %v1216 = vld [vmem:[#allocation6 + $0x4a0] sm:$0xff]
        %v1217 = vld [vmem:[#allocation6 + $0x4a8] sm:$0xff]
        %v1218 = vld [vmem:[#allocation6 + $0x4b0] sm:$0xff]
        %v1219 = vld [vmem:[#allocation6 + $0x4b8] sm:$0xff]
        %v1220 = vld [vmem:[#allocation6 + $0x4c0] sm:$0xff]
        %v1221 = vld [vmem:[#allocation6 + $0x4c8] sm:$0xff]
        %v1222 = vld [vmem:[#allocation6 + $0x4d0] sm:$0xff]
        %v1223 = vld [vmem:[#allocation6 + $0x4d8] sm:$0xff]
        %v1224 = vld [vmem:[#allocation6 + $0x4e0] sm:$0xff]
        %v1225 = vld [vmem:[#allocation6 + $0x4e8] sm:$0xff]
        %v1226 = vld [vmem:[#allocation6 + $0x4f0] sm:$0xff]
        %v1227 = vld [vmem:[#allocation6 + $0x4f8] sm:$0xff]
        %1228 = vmatprep.subr.mxu0 0.0
        %1229 = vmatpush1.msra.mxu0 %v1227
        %1230 = vmatprep.subr.mxu0 0.0
        %1231 = vmatpush1.msra.mxu0 %v1226
        %1232 = vmatprep.subr.mxu0 0.0
        %1233 = vmatpush1.msra.mxu0 %v1225
        %1234 = vmatprep.subr.mxu0 0.0
        %1235 = vmatpush1.msra.mxu0 %v1224
        %1236 = vmatprep.subr.mxu0 0.0
        %1237 = vmatpush1.msra.mxu0 %v1223
        %1238 = vmatprep.subr.mxu0 0.0
        %1239 = vmatpush1.msra.mxu0 %v1222
        %1240 = vmatprep.subr.mxu0 0.0
        %1241 = vmatpush1.msra.mxu0 %v1221
        %1242 = vmatprep.subr.mxu0 0.0
        %1243 = vmatpush1.msra.mxu0 %v1220
        %1244 = vmatprep.subr.mxu0 0.0
        %1245 = vmatpush1.msra.mxu0 %v1219
        %1246 = vmatprep.subr.mxu0 0.0
        %1247 = vmatpush1.msra.mxu0 %v1218
        %1248 = vmatprep.subr.mxu0 0.0
        %1249 = vmatpush1.msra.mxu0 %v1217
        %1250 = vmatprep.subr.mxu0 0.0
        %1251 = vmatpush1.msra.mxu0 %v1216
        %1252 = vmatprep.subr.mxu0 0.0
        %1253 = vmatpush1.msra.mxu0 %v1215
        %1254 = vmatprep.subr.mxu0 0.0
        %1255 = vmatpush1.msra.mxu0 %v1214
        %1256 = vmatprep.subr.mxu0 0.0
        %1257 = vmatpush1.msra.mxu0 %v1213
        %1258 = vmatprep.subr.mxu0 0.0
        %1259 = vmatpush1.msra.mxu0 %v1212
        %1260 = vmatprep.subr.mxu0 0.0
        %1261 = vmatpush2.msra.mxu0 0.0
        %1262 = vmatprep.subr.mxu0 0.0
        %1263 = vmatpush2.msra.mxu0 0.0
        %1264 = vmatprep.subr.mxu0 0.0
        %1265 = vmatpush2.msra.mxu0 0.0
        %1266 = vmatprep.subr.mxu0 0.0
        %1267 = vmatpush2.msra.mxu0 0.0
        %1268 = vmatprep.subr.mxu0 0.0
        %1269 = vmatpush2.msra.mxu0 0.0
        %1270 = vmatprep.subr.mxu0 0.0
        %1271 = vmatpush2.msra.mxu0 0.0
        %1272 = vmatprep.subr.mxu0 0.0
        %1273 = vmatpush2.msra.mxu0 0.0
        %1274 = vmatprep.subr.mxu0 0.0
        %1275 = vmatpush2.msra.mxu0 0.0
        %1276 = vmatprep.subr.mxu0 0.0
        %1277 = vmatpush2.msra.mxu0 0.0
        %1278 = vmatprep.subr.mxu0 0.0
        %1279 = vmatpush2.msra.mxu0 0.0
        %1280 = vmatprep.subr.mxu0 0.0
        %1281 = vmatpush2.msra.mxu0 0.0
        %1282 = vmatprep.subr.mxu0 0.0
        %1283 = vmatpush2.msra.mxu0 0.0
        %1284 = vmatprep.subr.mxu0 0.0
        %1285 = vmatpush2.msra.mxu0 0.0
        %1286 = vmatprep.subr.mxu0 0.0
        %1287 = vmatpush2.msra.mxu0 0.0
        %1288 = vmatprep.subr.mxu0 0.0
        %1289 = vmatpush2.msra.mxu0 0.0
        %1290 = vmatprep.subr.mxu0 0.0
        %1291 = vmatpush2.msra.mxu0 0.0
        %1292 = vmatprep.mubr.f32.mxu0 0.0
        %1293 = vmatmul.mubr.f32.gmra.mxu0 %v654
        %v1294 = vpop.f32.mrf.mxu0
        %v1295 = vadd.f32 0.0, %v1294
        %v1296 = vpop.f32.mrf.mxu0
        %1297 = vdwg.mxu0
        %v1298 = vadd.f32 %v1211, %v1295
        %v1299 = vld [vmem:[#allocation6 + $0x400] sm:$0xff]
        %v1300 = vld [vmem:[#allocation6 + $0x408] sm:$0xff]
        %v1301 = vld [vmem:[#allocation6 + $0x410] sm:$0xff]
        %v1302 = vld [vmem:[#allocation6 + $0x418] sm:$0xff]
        %v1303 = vld [vmem:[#allocation6 + $0x420] sm:$0xff]
        %v1304 = vld [vmem:[#allocation6 + $0x428] sm:$0xff]
        %v1305 = vld [vmem:[#allocation6 + $0x430] sm:$0xff]
        %v1306 = vld [vmem:[#allocation6 + $0x438] sm:$0xff]
        %v1307 = vld [vmem:[#allocation6 + $0x440] sm:$0xff]
        %v1308 = vld [vmem:[#allocation6 + $0x448] sm:$0xff]
        %v1309 = vld [vmem:[#allocation6 + $0x450] sm:$0xff]
        %v1310 = vld [vmem:[#allocation6 + $0x458] sm:$0xff]
        %v1311 = vld [vmem:[#allocation6 + $0x460] sm:$0xff]
        %v1312 = vld [vmem:[#allocation6 + $0x468] sm:$0xff]
        %v1313 = vld [vmem:[#allocation6 + $0x470] sm:$0xff]
        %v1314 = vld [vmem:[#allocation6 + $0x478] sm:$0xff]
        %1315 = vmatprep.subr.mxu0 0.0
        %1316 = vmatpush1.msra.mxu0 %v1314
        %1317 = vmatprep.subr.mxu0 0.0
        %1318 = vmatpush1.msra.mxu0 %v1313
        %1319 = vmatprep.subr.mxu0 0.0
        %1320 = vmatpush1.msra.mxu0 %v1312
        %1321 = vmatprep.subr.mxu0 0.0
        %1322 = vmatpush1.msra.mxu0 %v1311
        %1323 = vmatprep.subr.mxu0 0.0
        %1324 = vmatpush1.msra.mxu0 %v1310
        %1325 = vmatprep.subr.mxu0 0.0
        %1326 = vmatpush1.msra.mxu0 %v1309
        %1327 = vmatprep.subr.mxu0 0.0
        %1328 = vmatpush1.msra.mxu0 %v1308
        %1329 = vmatprep.subr.mxu0 0.0
        %1330 = vmatpush1.msra.mxu0 %v1307
        %1331 = vmatprep.subr.mxu0 0.0
        %1332 = vmatpush1.msra.mxu0 %v1306
        %1333 = vmatprep.subr.mxu0 0.0
        %1334 = vmatpush1.msra.mxu0 %v1305
        %1335 = vmatprep.subr.mxu0 0.0
        %1336 = vmatpush1.msra.mxu0 %v1304
        %1337 = vmatprep.subr.mxu0 0.0
        %1338 = vmatpush1.msra.mxu0 %v1303
        %1339 = vmatprep.subr.mxu0 0.0
        %1340 = vmatpush1.msra.mxu0 %v1302
        %1341 = vmatprep.subr.mxu0 0.0
        %1342 = vmatpush1.msra.mxu0 %v1301
        %1343 = vmatprep.subr.mxu0 0.0
        %1344 = vmatpush1.msra.mxu0 %v1300
        %1345 = vmatprep.subr.mxu0 0.0
        %1346 = vmatpush1.msra.mxu0 %v1299
        %1347 = vmatprep.subr.mxu0 0.0
        %1348 = vmatpush2.msra.mxu0 0.0
        %1349 = vmatprep.subr.mxu0 0.0
        %1350 = vmatpush2.msra.mxu0 0.0
        %1351 = vmatprep.subr.mxu0 0.0
        %1352 = vmatpush2.msra.mxu0 0.0
        %1353 = vmatprep.subr.mxu0 0.0
        %1354 = vmatpush2.msra.mxu0 0.0
        %1355 = vmatprep.subr.mxu0 0.0
        %1356 = vmatpush2.msra.mxu0 0.0
        %1357 = vmatprep.subr.mxu0 0.0
        %1358 = vmatpush2.msra.mxu0 0.0
        %1359 = vmatprep.subr.mxu0 0.0
        %1360 = vmatpush2.msra.mxu0 0.0
        %1361 = vmatprep.subr.mxu0 0.0
        %1362 = vmatpush2.msra.mxu0 0.0
        %1363 = vmatprep.subr.mxu0 0.0
        %1364 = vmatpush2.msra.mxu0 0.0
        %1365 = vmatprep.subr.mxu0 0.0
        %1366 = vmatpush2.msra.mxu0 0.0
        %1367 = vmatprep.subr.mxu0 0.0
        %1368 = vmatpush2.msra.mxu0 0.0
        %1369 = vmatprep.subr.mxu0 0.0
        %1370 = vmatpush2.msra.mxu0 0.0
        %1371 = vmatprep.subr.mxu0 0.0
        %1372 = vmatpush2.msra.mxu0 0.0
        %1373 = vmatprep.subr.mxu0 0.0
        %1374 = vmatpush2.msra.mxu0 0.0
        %1375 = vmatprep.subr.mxu0 0.0
        %1376 = vmatpush2.msra.mxu0 0.0
        %1377 = vmatprep.subr.mxu0 0.0
        %1378 = vmatpush2.msra.mxu0 0.0
        %1379 = vmatprep.mubr.f32.mxu0 0.0
        %1380 = vmatmul.mubr.f32.gmra.mxu0 %v657
        %v1381 = vpop.f32.mrf.mxu0
        %v1382 = vadd.f32 0.0, %v1381
        %v1383 = vpop.f32.mrf.mxu0
        %1384 = vdwg.mxu0
        %v1385 = vadd.f32 %v1298, %v1382
        %v1386 = vld [vmem:[#allocation6 + $0x380] sm:$0xff]
        %v1387 = vld [vmem:[#allocation6 + $0x388] sm:$0xff]
        %v1388 = vld [vmem:[#allocation6 + $0x390] sm:$0xff]
        %v1389 = vld [vmem:[#allocation6 + $0x398] sm:$0xff]
        %v1390 = vld [vmem:[#allocation6 + $0x3a0] sm:$0xff]
        %v1391 = vld [vmem:[#allocation6 + $0x3a8] sm:$0xff]
        %v1392 = vld [vmem:[#allocation6 + $0x3b0] sm:$0xff]
        %v1393 = vld [vmem:[#allocation6 + $0x3b8] sm:$0xff]
        %v1394 = vld [vmem:[#allocation6 + $0x3c0] sm:$0xff]
        %v1395 = vld [vmem:[#allocation6 + $0x3c8] sm:$0xff]
        %v1396 = vld [vmem:[#allocation6 + $0x3d0] sm:$0xff]
        %v1397 = vld [vmem:[#allocation6 + $0x3d8] sm:$0xff]
        %v1398 = vld [vmem:[#allocation6 + $0x3e0] sm:$0xff]
        %v1399 = vld [vmem:[#allocation6 + $0x3e8] sm:$0xff]
        %v1400 = vld [vmem:[#allocation6 + $0x3f0] sm:$0xff]
        %v1401 = vld [vmem:[#allocation6 + $0x3f8] sm:$0xff]
        %1402 = vmatprep.subr.mxu0 0.0
        %1403 = vmatpush1.msra.mxu0 %v1401
        %1404 = vmatprep.subr.mxu0 0.0
        %1405 = vmatpush1.msra.mxu0 %v1400
        %1406 = vmatprep.subr.mxu0 0.0
        %1407 = vmatpush1.msra.mxu0 %v1399
        %1408 = vmatprep.subr.mxu0 0.0
        %1409 = vmatpush1.msra.mxu0 %v1398
        %1410 = vmatprep.subr.mxu0 0.0
        %1411 = vmatpush1.msra.mxu0 %v1397
        %1412 = vmatprep.subr.mxu0 0.0
        %1413 = vmatpush1.msra.mxu0 %v1396
        %1414 = vmatprep.subr.mxu0 0.0
        %1415 = vmatpush1.msra.mxu0 %v1395
        %1416 = vmatprep.subr.mxu0 0.0
        %1417 = vmatpush1.msra.mxu0 %v1394
        %1418 = vmatprep.subr.mxu0 0.0
        %1419 = vmatpush1.msra.mxu0 %v1393
        %1420 = vmatprep.subr.mxu0 0.0
        %1421 = vmatpush1.msra.mxu0 %v1392
        %1422 = vmatprep.subr.mxu0 0.0
        %1423 = vmatpush1.msra.mxu0 %v1391
        %1424 = vmatprep.subr.mxu0 0.0
        %1425 = vmatpush1.msra.mxu0 %v1390
        %1426 = vmatprep.subr.mxu0 0.0
        %1427 = vmatpush1.msra.mxu0 %v1389
        %1428 = vmatprep.subr.mxu0 0.0
        %1429 = vmatpush1.msra.mxu0 %v1388
        %1430 = vmatprep.subr.mxu0 0.0
        %1431 = vmatpush1.msra.mxu0 %v1387
        %1432 = vmatprep.subr.mxu0 0.0
        %1433 = vmatpush1.msra.mxu0 %v1386
        %1434 = vmatprep.subr.mxu0 0.0
        %1435 = vmatpush2.msra.mxu0 0.0
        %1436 = vmatprep.subr.mxu0 0.0
        %1437 = vmatpush2.msra.mxu0 0.0
        %1438 = vmatprep.subr.mxu0 0.0
        %1439 = vmatpush2.msra.mxu0 0.0
        %1440 = vmatprep.subr.mxu0 0.0
        %1441 = vmatpush2.msra.mxu0 0.0
        %1442 = vmatprep.subr.mxu0 0.0
        %1443 = vmatpush2.msra.mxu0 0.0
        %1444 = vmatprep.subr.mxu0 0.0
        %1445 = vmatpush2.msra.mxu0 0.0
        %1446 = vmatprep.subr.mxu0 0.0
        %1447 = vmatpush2.msra.mxu0 0.0
        %1448 = vmatprep.subr.mxu0 0.0
        %1449 = vmatpush2.msra.mxu0 0.0
        %1450 = vmatprep.subr.mxu0 0.0
        %1451 = vmatpush2.msra.mxu0 0.0
        %1452 = vmatprep.subr.mxu0 0.0
        %1453 = vmatpush2.msra.mxu0 0.0
        %1454 = vmatprep.subr.mxu0 0.0
        %1455 = vmatpush2.msra.mxu0 0.0
        %1456 = vmatprep.subr.mxu0 0.0
        %1457 = vmatpush2.msra.mxu0 0.0
        %1458 = vmatprep.subr.mxu0 0.0
        %1459 = vmatpush2.msra.mxu0 0.0
        %1460 = vmatprep.subr.mxu0 0.0
        %1461 = vmatpush2.msra.mxu0 0.0
        %1462 = vmatprep.subr.mxu0 0.0
        %1463 = vmatpush2.msra.mxu0 0.0
        %1464 = vmatprep.subr.mxu0 0.0
        %1465 = vmatpush2.msra.mxu0 0.0
        %1466 = vmatprep.mubr.f32.mxu0 0.0
        %1467 = vmatmul.mubr.f32.gmra.mxu0 %v662
        %v1468 = vpop.f32.mrf.mxu0
        %v1469 = vadd.f32 0.0, %v1468
        %v1470 = vpop.f32.mrf.mxu0
        %1471 = vdwg.mxu0
        %v1472 = vadd.f32 %v1385, %v1469
        %v1473 = vld [vmem:[#allocation6 + $0x300] sm:$0xff]
        %v1474 = vld [vmem:[#allocation6 + $0x308] sm:$0xff]
        %v1475 = vld [vmem:[#allocation6 + $0x310] sm:$0xff]
        %v1476 = vld [vmem:[#allocation6 + $0x318] sm:$0xff]
        %v1477 = vld [vmem:[#allocation6 + $0x320] sm:$0xff]
        %v1478 = vld [vmem:[#allocation6 + $0x328] sm:$0xff]
        %v1479 = vld [vmem:[#allocation6 + $0x330] sm:$0xff]
        %v1480 = vld [vmem:[#allocation6 + $0x338] sm:$0xff]
        %v1481 = vld [vmem:[#allocation6 + $0x340] sm:$0xff]
        %v1482 = vld [vmem:[#allocation6 + $0x348] sm:$0xff]
        %v1483 = vld [vmem:[#allocation6 + $0x350] sm:$0xff]
        %v1484 = vld [vmem:[#allocation6 + $0x358] sm:$0xff]
        %v1485 = vld [vmem:[#allocation6 + $0x360] sm:$0xff]
        %v1486 = vld [vmem:[#allocation6 + $0x368] sm:$0xff]
        %v1487 = vld [vmem:[#allocation6 + $0x370] sm:$0xff]
        %v1488 = vld [vmem:[#allocation6 + $0x378] sm:$0xff]
        %1489 = vmatprep.subr.mxu0 0.0
        %1490 = vmatpush1.msra.mxu0 %v1488
        %1491 = vmatprep.subr.mxu0 0.0
        %1492 = vmatpush1.msra.mxu0 %v1487
        %1493 = vmatprep.subr.mxu0 0.0
        %1494 = vmatpush1.msra.mxu0 %v1486
        %1495 = vmatprep.subr.mxu0 0.0
        %1496 = vmatpush1.msra.mxu0 %v1485
        %1497 = vmatprep.subr.mxu0 0.0
        %1498 = vmatpush1.msra.mxu0 %v1484
        %1499 = vmatprep.subr.mxu0 0.0
        %1500 = vmatpush1.msra.mxu0 %v1483
        %1501 = vmatprep.subr.mxu0 0.0
        %1502 = vmatpush1.msra.mxu0 %v1482
        %1503 = vmatprep.subr.mxu0 0.0
        %1504 = vmatpush1.msra.mxu0 %v1481
        %1505 = vmatprep.subr.mxu0 0.0
        %1506 = vmatpush1.msra.mxu0 %v1480
        %1507 = vmatprep.subr.mxu0 0.0
        %1508 = vmatpush1.msra.mxu0 %v1479
        %1509 = vmatprep.subr.mxu0 0.0
        %1510 = vmatpush1.msra.mxu0 %v1478
        %1511 = vmatprep.subr.mxu0 0.0
        %1512 = vmatpush1.msra.mxu0 %v1477
        %1513 = vmatprep.subr.mxu0 0.0
        %1514 = vmatpush1.msra.mxu0 %v1476
        %1515 = vmatprep.subr.mxu0 0.0
        %1516 = vmatpush1.msra.mxu0 %v1475
        %1517 = vmatprep.subr.mxu0 0.0
        %1518 = vmatpush1.msra.mxu0 %v1474
        %1519 = vmatprep.subr.mxu0 0.0
        %1520 = vmatpush1.msra.mxu0 %v1473
        %1521 = vmatprep.subr.mxu0 0.0
        %1522 = vmatpush2.msra.mxu0 0.0
        %1523 = vmatprep.subr.mxu0 0.0
        %1524 = vmatpush2.msra.mxu0 0.0
        %1525 = vmatprep.subr.mxu0 0.0
        %1526 = vmatpush2.msra.mxu0 0.0
        %1527 = vmatprep.subr.mxu0 0.0
        %1528 = vmatpush2.msra.mxu0 0.0
        %1529 = vmatprep.subr.mxu0 0.0
        %1530 = vmatpush2.msra.mxu0 0.0
        %1531 = vmatprep.subr.mxu0 0.0
        %1532 = vmatpush2.msra.mxu0 0.0
        %1533 = vmatprep.subr.mxu0 0.0
        %1534 = vmatpush2.msra.mxu0 0.0
        %1535 = vmatprep.subr.mxu0 0.0
        %1536 = vmatpush2.msra.mxu0 0.0
        %1537 = vmatprep.subr.mxu0 0.0
        %1538 = vmatpush2.msra.mxu0 0.0
        %1539 = vmatprep.subr.mxu0 0.0
        %1540 = vmatpush2.msra.mxu0 0.0
        %1541 = vmatprep.subr.mxu0 0.0
        %1542 = vmatpush2.msra.mxu0 0.0
        %1543 = vmatprep.subr.mxu0 0.0
        %1544 = vmatpush2.msra.mxu0 0.0
        %1545 = vmatprep.subr.mxu0 0.0
        %1546 = vmatpush2.msra.mxu0 0.0
        %1547 = vmatprep.subr.mxu0 0.0
        %1548 = vmatpush2.msra.mxu0 0.0
        %1549 = vmatprep.subr.mxu0 0.0
        %1550 = vmatpush2.msra.mxu0 0.0
        %1551 = vmatprep.subr.mxu0 0.0
        %1552 = vmatpush2.msra.mxu0 0.0
        %1553 = vmatprep.mubr.f32.mxu0 0.0
        %1554 = vmatmul.mubr.f32.gmra.mxu0 %v665
        %v1555 = vpop.f32.mrf.mxu0
        %v1556 = vadd.f32 0.0, %v1555
        %v1557 = vpop.f32.mrf.mxu0
        %1558 = vdwg.mxu0
        %v1559 = vadd.f32 %v1472, %v1556
        %v1560 = vld [vmem:[#allocation6 + $0x280] sm:$0xff]
        %v1561 = vld [vmem:[#allocation6 + $0x288] sm:$0xff]
        %v1562 = vld [vmem:[#allocation6 + $0x290] sm:$0xff]
        %v1563 = vld [vmem:[#allocation6 + $0x298] sm:$0xff]
        %v1564 = vld [vmem:[#allocation6 + $0x2a0] sm:$0xff]
        %v1565 = vld [vmem:[#allocation6 + $0x2a8] sm:$0xff]
        %v1566 = vld [vmem:[#allocation6 + $0x2b0] sm:$0xff]
        %v1567 = vld [vmem:[#allocation6 + $0x2b8] sm:$0xff]
        %v1568 = vld [vmem:[#allocation6 + $0x2c0] sm:$0xff]
        %v1569 = vld [vmem:[#allocation6 + $0x2c8] sm:$0xff]
        %v1570 = vld [vmem:[#allocation6 + $0x2d0] sm:$0xff]
        %v1571 = vld [vmem:[#allocation6 + $0x2d8] sm:$0xff]
        %v1572 = vld [vmem:[#allocation6 + $0x2e0] sm:$0xff]
        %v1573 = vld [vmem:[#allocation6 + $0x2e8] sm:$0xff]
        %v1574 = vld [vmem:[#allocation6 + $0x2f0] sm:$0xff]
        %v1575 = vld [vmem:[#allocation6 + $0x2f8] sm:$0xff]
        %1576 = vmatprep.subr.mxu0 0.0
        %1577 = vmatpush1.msra.mxu0 %v1575
        %1578 = vmatprep.subr.mxu0 0.0
        %1579 = vmatpush1.msra.mxu0 %v1574
        %1580 = vmatprep.subr.mxu0 0.0
        %1581 = vmatpush1.msra.mxu0 %v1573
        %1582 = vmatprep.subr.mxu0 0.0
        %1583 = vmatpush1.msra.mxu0 %v1572
        %1584 = vmatprep.subr.mxu0 0.0
        %1585 = vmatpush1.msra.mxu0 %v1571
        %1586 = vmatprep.subr.mxu0 0.0
        %1587 = vmatpush1.msra.mxu0 %v1570
        %1588 = vmatprep.subr.mxu0 0.0
        %1589 = vmatpush1.msra.mxu0 %v1569
        %1590 = vmatprep.subr.mxu0 0.0
        %1591 = vmatpush1.msra.mxu0 %v1568
        %1592 = vmatprep.subr.mxu0 0.0
        %1593 = vmatpush1.msra.mxu0 %v1567
        %1594 = vmatprep.subr.mxu0 0.0
        %1595 = vmatpush1.msra.mxu0 %v1566
        %1596 = vmatprep.subr.mxu0 0.0
        %1597 = vmatpush1.msra.mxu0 %v1565
        %1598 = vmatprep.subr.mxu0 0.0
        %1599 = vmatpush1.msra.mxu0 %v1564
        %1600 = vmatprep.subr.mxu0 0.0
        %1601 = vmatpush1.msra.mxu0 %v1563
        %1602 = vmatprep.subr.mxu0 0.0
        %1603 = vmatpush1.msra.mxu0 %v1562
        %1604 = vmatprep.subr.mxu0 0.0
        %1605 = vmatpush1.msra.mxu0 %v1561
        %1606 = vmatprep.subr.mxu0 0.0
        %1607 = vmatpush1.msra.mxu0 %v1560
        %1608 = vmatprep.subr.mxu0 0.0
        %1609 = vmatpush2.msra.mxu0 0.0
        %1610 = vmatprep.subr.mxu0 0.0
        %1611 = vmatpush2.msra.mxu0 0.0
        %1612 = vmatprep.subr.mxu0 0.0
        %1613 = vmatpush2.msra.mxu0 0.0
        %1614 = vmatprep.subr.mxu0 0.0
        %1615 = vmatpush2.msra.mxu0 0.0
        %1616 = vmatprep.subr.mxu0 0.0
        %1617 = vmatpush2.msra.mxu0 0.0
        %1618 = vmatprep.subr.mxu0 0.0
        %1619 = vmatpush2.msra.mxu0 0.0
        %1620 = vmatprep.subr.mxu0 0.0
        %1621 = vmatpush2.msra.mxu0 0.0
        %1622 = vmatprep.subr.mxu0 0.0
        %1623 = vmatpush2.msra.mxu0 0.0
        %1624 = vmatprep.subr.mxu0 0.0
        %1625 = vmatpush2.msra.mxu0 0.0
        %1626 = vmatprep.subr.mxu0 0.0
        %1627 = vmatpush2.msra.mxu0 0.0
        %1628 = vmatprep.subr.mxu0 0.0
        %1629 = vmatpush2.msra.mxu0 0.0
        %1630 = vmatprep.subr.mxu0 0.0
        %1631 = vmatpush2.msra.mxu0 0.0
        %1632 = vmatprep.subr.mxu0 0.0
        %1633 = vmatpush2.msra.mxu0 0.0
        %1634 = vmatprep.subr.mxu0 0.0
        %1635 = vmatpush2.msra.mxu0 0.0
        %1636 = vmatprep.subr.mxu0 0.0
        %1637 = vmatpush2.msra.mxu0 0.0
        %1638 = vmatprep.subr.mxu0 0.0
        %1639 = vmatpush2.msra.mxu0 0.0
        %1640 = vmatprep.mubr.f32.mxu0 0.0
        %1641 = vmatmul.mubr.f32.gmra.mxu0 %v670
        %v1642 = vpop.f32.mrf.mxu0
        %v1643 = vadd.f32 0.0, %v1642
        %v1644 = vpop.f32.mrf.mxu0
        %1645 = vdwg.mxu0
        %v1646 = vadd.f32 %v1559, %v1643
        %v1647 = vld [vmem:[#allocation6 + $0x200] sm:$0xff]
        %v1648 = vld [vmem:[#allocation6 + $0x208] sm:$0xff]
        %v1649 = vld [vmem:[#allocation6 + $0x210] sm:$0xff]
        %v1650 = vld [vmem:[#allocation6 + $0x218] sm:$0xff]
        %v1651 = vld [vmem:[#allocation6 + $0x220] sm:$0xff]
        %v1652 = vld [vmem:[#allocation6 + $0x228] sm:$0xff]
        %v1653 = vld [vmem:[#allocation6 + $0x230] sm:$0xff]
        %v1654 = vld [vmem:[#allocation6 + $0x238] sm:$0xff]
        %v1655 = vld [vmem:[#allocation6 + $0x240] sm:$0xff]
        %v1656 = vld [vmem:[#allocation6 + $0x248] sm:$0xff]
        %v1657 = vld [vmem:[#allocation6 + $0x250] sm:$0xff]
        %v1658 = vld [vmem:[#allocation6 + $0x258] sm:$0xff]
        %v1659 = vld [vmem:[#allocation6 + $0x260] sm:$0xff]
        %v1660 = vld [vmem:[#allocation6 + $0x268] sm:$0xff]
        %v1661 = vld [vmem:[#allocation6 + $0x270] sm:$0xff]
        %v1662 = vld [vmem:[#allocation6 + $0x278] sm:$0xff]
        %1663 = vmatprep.subr.mxu0 0.0
        %1664 = vmatpush1.msra.mxu0 %v1662
        %1665 = vmatprep.subr.mxu0 0.0
        %1666 = vmatpush1.msra.mxu0 %v1661
        %1667 = vmatprep.subr.mxu0 0.0
        %1668 = vmatpush1.msra.mxu0 %v1660
        %1669 = vmatprep.subr.mxu0 0.0
        %1670 = vmatpush1.msra.mxu0 %v1659
        %1671 = vmatprep.subr.mxu0 0.0
        %1672 = vmatpush1.msra.mxu0 %v1658
        %1673 = vmatprep.subr.mxu0 0.0
        %1674 = vmatpush1.msra.mxu0 %v1657
        %1675 = vmatprep.subr.mxu0 0.0
        %1676 = vmatpush1.msra.mxu0 %v1656
        %1677 = vmatprep.subr.mxu0 0.0
        %1678 = vmatpush1.msra.mxu0 %v1655
        %1679 = vmatprep.subr.mxu0 0.0
        %1680 = vmatpush1.msra.mxu0 %v1654
        %1681 = vmatprep.subr.mxu0 0.0
        %1682 = vmatpush1.msra.mxu0 %v1653
        %1683 = vmatprep.subr.mxu0 0.0
        %1684 = vmatpush1.msra.mxu0 %v1652
        %1685 = vmatprep.subr.mxu0 0.0
        %1686 = vmatpush1.msra.mxu0 %v1651
        %1687 = vmatprep.subr.mxu0 0.0
        %1688 = vmatpush1.msra.mxu0 %v1650
        %1689 = vmatprep.subr.mxu0 0.0
        %1690 = vmatpush1.msra.mxu0 %v1649
        %1691 = vmatprep.subr.mxu0 0.0
        %1692 = vmatpush1.msra.mxu0 %v1648
        %1693 = vmatprep.subr.mxu0 0.0
        %1694 = vmatpush1.msra.mxu0 %v1647
        %1695 = vmatprep.subr.mxu0 0.0
        %1696 = vmatpush2.msra.mxu0 0.0
        %1697 = vmatprep.subr.mxu0 0.0
        %1698 = vmatpush2.msra.mxu0 0.0
        %1699 = vmatprep.subr.mxu0 0.0
        %1700 = vmatpush2.msra.mxu0 0.0
        %1701 = vmatprep.subr.mxu0 0.0
        %1702 = vmatpush2.msra.mxu0 0.0
        %1703 = vmatprep.subr.mxu0 0.0
        %1704 = vmatpush2.msra.mxu0 0.0
        %1705 = vmatprep.subr.mxu0 0.0
        %1706 = vmatpush2.msra.mxu0 0.0
        %1707 = vmatprep.subr.mxu0 0.0
        %1708 = vmatpush2.msra.mxu0 0.0
        %1709 = vmatprep.subr.mxu0 0.0
        %1710 = vmatpush2.msra.mxu0 0.0
        %1711 = vmatprep.subr.mxu0 0.0
        %1712 = vmatpush2.msra.mxu0 0.0
        %1713 = vmatprep.subr.mxu0 0.0
        %1714 = vmatpush2.msra.mxu0 0.0
        %1715 = vmatprep.subr.mxu0 0.0
        %1716 = vmatpush2.msra.mxu0 0.0
        %1717 = vmatprep.subr.mxu0 0.0
        %1718 = vmatpush2.msra.mxu0 0.0
        %1719 = vmatprep.subr.mxu0 0.0
        %1720 = vmatpush2.msra.mxu0 0.0
        %1721 = vmatprep.subr.mxu0 0.0
        %1722 = vmatpush2.msra.mxu0 0.0
        %1723 = vmatprep.subr.mxu0 0.0
        %1724 = vmatpush2.msra.mxu0 0.0
        %1725 = vmatprep.subr.mxu0 0.0
        %1726 = vmatpush2.msra.mxu0 0.0
        %1727 = vmatprep.mubr.f32.mxu0 0.0
        %1728 = vmatmul.mubr.f32.gmra.mxu0 %v673
        %v1729 = vpop.f32.mrf.mxu0
        %v1730 = vadd.f32 0.0, %v1729
        %v1731 = vpop.f32.mrf.mxu0
        %1732 = vdwg.mxu0
        %v1733 = vadd.f32 %v1646, %v1730
        %v1734 = vld [vmem:[#allocation6 + $0x180] sm:$0xff]
        %v1735 = vld [vmem:[#allocation6 + $0x188] sm:$0xff]
        %v1736 = vld [vmem:[#allocation6 + $0x190] sm:$0xff]
        %v1737 = vld [vmem:[#allocation6 + $0x198] sm:$0xff]
        %v1738 = vld [vmem:[#allocation6 + $0x1a0] sm:$0xff]
        %v1739 = vld [vmem:[#allocation6 + $0x1a8] sm:$0xff]
        %v1740 = vld [vmem:[#allocation6 + $0x1b0] sm:$0xff]
        %v1741 = vld [vmem:[#allocation6 + $0x1b8] sm:$0xff]
        %v1742 = vld [vmem:[#allocation6 + $0x1c0] sm:$0xff]
        %v1743 = vld [vmem:[#allocation6 + $0x1c8] sm:$0xff]
        %v1744 = vld [vmem:[#allocation6 + $0x1d0] sm:$0xff]
        %v1745 = vld [vmem:[#allocation6 + $0x1d8] sm:$0xff]
        %v1746 = vld [vmem:[#allocation6 + $0x1e0] sm:$0xff]
        %v1747 = vld [vmem:[#allocation6 + $0x1e8] sm:$0xff]
        %v1748 = vld [vmem:[#allocation6 + $0x1f0] sm:$0xff]
        %v1749 = vld [vmem:[#allocation6 + $0x1f8] sm:$0xff]
        %1750 = vmatprep.subr.mxu0 0.0
        %1751 = vmatpush1.msra.mxu0 %v1749
        %1752 = vmatprep.subr.mxu0 0.0
        %1753 = vmatpush1.msra.mxu0 %v1748
        %1754 = vmatprep.subr.mxu0 0.0
        %1755 = vmatpush1.msra.mxu0 %v1747
        %1756 = vmatprep.subr.mxu0 0.0
        %1757 = vmatpush1.msra.mxu0 %v1746
        %1758 = vmatprep.subr.mxu0 0.0
        %1759 = vmatpush1.msra.mxu0 %v1745
        %1760 = vmatprep.subr.mxu0 0.0
        %1761 = vmatpush1.msra.mxu0 %v1744
        %1762 = vmatprep.subr.mxu0 0.0
        %1763 = vmatpush1.msra.mxu0 %v1743
        %1764 = vmatprep.subr.mxu0 0.0
        %1765 = vmatpush1.msra.mxu0 %v1742
        %1766 = vmatprep.subr.mxu0 0.0
        %1767 = vmatpush1.msra.mxu0 %v1741
        %1768 = vmatprep.subr.mxu0 0.0
        %1769 = vmatpush1.msra.mxu0 %v1740
        %1770 = vmatprep.subr.mxu0 0.0
        %1771 = vmatpush1.msra.mxu0 %v1739
        %1772 = vmatprep.subr.mxu0 0.0
        %1773 = vmatpush1.msra.mxu0 %v1738
        %1774 = vmatprep.subr.mxu0 0.0
        %1775 = vmatpush1.msra.mxu0 %v1737
        %1776 = vmatprep.subr.mxu0 0.0
        %1777 = vmatpush1.msra.mxu0 %v1736
        %1778 = vmatprep.subr.mxu0 0.0
        %1779 = vmatpush1.msra.mxu0 %v1735
        %1780 = vmatprep.subr.mxu0 0.0
        %1781 = vmatpush1.msra.mxu0 %v1734
        %1782 = vmatprep.subr.mxu0 0.0
        %1783 = vmatpush2.msra.mxu0 0.0
        %1784 = vmatprep.subr.mxu0 0.0
        %1785 = vmatpush2.msra.mxu0 0.0
        %1786 = vmatprep.subr.mxu0 0.0
        %1787 = vmatpush2.msra.mxu0 0.0
        %1788 = vmatprep.subr.mxu0 0.0
        %1789 = vmatpush2.msra.mxu0 0.0
        %1790 = vmatprep.subr.mxu0 0.0
        %1791 = vmatpush2.msra.mxu0 0.0
        %1792 = vmatprep.subr.mxu0 0.0
        %1793 = vmatpush2.msra.mxu0 0.0
        %1794 = vmatprep.subr.mxu0 0.0
        %1795 = vmatpush2.msra.mxu0 0.0
        %1796 = vmatprep.subr.mxu0 0.0
        %1797 = vmatpush2.msra.mxu0 0.0
        %1798 = vmatprep.subr.mxu0 0.0
        %1799 = vmatpush2.msra.mxu0 0.0
        %1800 = vmatprep.subr.mxu0 0.0
        %1801 = vmatpush2.msra.mxu0 0.0
        %1802 = vmatprep.subr.mxu0 0.0
        %1803 = vmatpush2.msra.mxu0 0.0
        %1804 = vmatprep.subr.mxu0 0.0
        %1805 = vmatpush2.msra.mxu0 0.0
        %1806 = vmatprep.subr.mxu0 0.0
        %1807 = vmatpush2.msra.mxu0 0.0
        %1808 = vmatprep.subr.mxu0 0.0
        %1809 = vmatpush2.msra.mxu0 0.0
        %1810 = vmatprep.subr.mxu0 0.0
        %1811 = vmatpush2.msra.mxu0 0.0
        %1812 = vmatprep.subr.mxu0 0.0
        %1813 = vmatpush2.msra.mxu0 0.0
        %1814 = vmatprep.mubr.f32.mxu0 0.0
        %1815 = vmatmul.mubr.f32.gmra.mxu0 %v678
        %v1816 = vpop.f32.mrf.mxu0
        %v1817 = vadd.f32 0.0, %v1816
        %v1818 = vpop.f32.mrf.mxu0
        %1819 = vdwg.mxu0
        %v1820 = vadd.f32 %v1733, %v1817
        %v1821 = vld [vmem:[#allocation6 + $0x100] sm:$0xff]
        %v1822 = vld [vmem:[#allocation6 + $0x108] sm:$0xff]
        %v1823 = vld [vmem:[#allocation6 + $0x110] sm:$0xff]
        %v1824 = vld [vmem:[#allocation6 + $0x118] sm:$0xff]
        %v1825 = vld [vmem:[#allocation6 + $0x120] sm:$0xff]
        %v1826 = vld [vmem:[#allocation6 + $0x128] sm:$0xff]
        %v1827 = vld [vmem:[#allocation6 + $0x130] sm:$0xff]
        %v1828 = vld [vmem:[#allocation6 + $0x138] sm:$0xff]
        %v1829 = vld [vmem:[#allocation6 + $0x140] sm:$0xff]
        %v1830 = vld [vmem:[#allocation6 + $0x148] sm:$0xff]
        %v1831 = vld [vmem:[#allocation6 + $0x150] sm:$0xff]
        %v1832 = vld [vmem:[#allocation6 + $0x158] sm:$0xff]
        %v1833 = vld [vmem:[#allocation6 + $0x160] sm:$0xff]
        %v1834 = vld [vmem:[#allocation6 + $0x168] sm:$0xff]
        %v1835 = vld [vmem:[#allocation6 + $0x170] sm:$0xff]
        %v1836 = vld [vmem:[#allocation6 + $0x178] sm:$0xff]
        %1837 = vmatprep.subr.mxu0 0.0
        %1838 = vmatpush1.msra.mxu0 %v1836
        %1839 = vmatprep.subr.mxu0 0.0
        %1840 = vmatpush1.msra.mxu0 %v1835
        %1841 = vmatprep.subr.mxu0 0.0
        %1842 = vmatpush1.msra.mxu0 %v1834
        %1843 = vmatprep.subr.mxu0 0.0
        %1844 = vmatpush1.msra.mxu0 %v1833
        %1845 = vmatprep.subr.mxu0 0.0
        %1846 = vmatpush1.msra.mxu0 %v1832
        %1847 = vmatprep.subr.mxu0 0.0
        %1848 = vmatpush1.msra.mxu0 %v1831
        %1849 = vmatprep.subr.mxu0 0.0
        %1850 = vmatpush1.msra.mxu0 %v1830
        %1851 = vmatprep.subr.mxu0 0.0
        %1852 = vmatpush1.msra.mxu0 %v1829
        %1853 = vmatprep.subr.mxu0 0.0
        %1854 = vmatpush1.msra.mxu0 %v1828
        %1855 = vmatprep.subr.mxu0 0.0
        %1856 = vmatpush1.msra.mxu0 %v1827
        %1857 = vmatprep.subr.mxu0 0.0
        %1858 = vmatpush1.msra.mxu0 %v1826
        %1859 = vmatprep.subr.mxu0 0.0
        %1860 = vmatpush1.msra.mxu0 %v1825
        %1861 = vmatprep.subr.mxu0 0.0
        %1862 = vmatpush1.msra.mxu0 %v1824
        %1863 = vmatprep.subr.mxu0 0.0
        %1864 = vmatpush1.msra.mxu0 %v1823
        %1865 = vmatprep.subr.mxu0 0.0
        %1866 = vmatpush1.msra.mxu0 %v1822
        %1867 = vmatprep.subr.mxu0 0.0
        %1868 = vmatpush1.msra.mxu0 %v1821
        %1869 = vmatprep.subr.mxu0 0.0
        %1870 = vmatpush2.msra.mxu0 0.0
        %1871 = vmatprep.subr.mxu0 0.0
        %1872 = vmatpush2.msra.mxu0 0.0
        %1873 = vmatprep.subr.mxu0 0.0
        %1874 = vmatpush2.msra.mxu0 0.0
        %1875 = vmatprep.subr.mxu0 0.0
        %1876 = vmatpush2.msra.mxu0 0.0
        %1877 = vmatprep.subr.mxu0 0.0
        %1878 = vmatpush2.msra.mxu0 0.0
        %1879 = vmatprep.subr.mxu0 0.0
        %1880 = vmatpush2.msra.mxu0 0.0
        %1881 = vmatprep.subr.mxu0 0.0
        %1882 = vmatpush2.msra.mxu0 0.0
        %1883 = vmatprep.subr.mxu0 0.0
        %1884 = vmatpush2.msra.mxu0 0.0
        %1885 = vmatprep.subr.mxu0 0.0
        %1886 = vmatpush2.msra.mxu0 0.0
        %1887 = vmatprep.subr.mxu0 0.0
        %1888 = vmatpush2.msra.mxu0 0.0
        %1889 = vmatprep.subr.mxu0 0.0
        %1890 = vmatpush2.msra.mxu0 0.0
        %1891 = vmatprep.subr.mxu0 0.0
        %1892 = vmatpush2.msra.mxu0 0.0
        %1893 = vmatprep.subr.mxu0 0.0
        %1894 = vmatpush2.msra.mxu0 0.0
        %1895 = vmatprep.subr.mxu0 0.0
        %1896 = vmatpush2.msra.mxu0 0.0
        %1897 = vmatprep.subr.mxu0 0.0
        %1898 = vmatpush2.msra.mxu0 0.0
        %1899 = vmatprep.subr.mxu0 0.0
        %1900 = vmatpush2.msra.mxu0 0.0
        %1901 = vmatprep.mubr.f32.mxu0 0.0
        %1902 = vmatmul.mubr.f32.gmra.mxu0 %v681
        %v1903 = vpop.f32.mrf.mxu0
        %v1904 = vadd.f32 0.0, %v1903
        %v1905 = vpop.f32.mrf.mxu0
        %1906 = vdwg.mxu0
        %v1907 = vadd.f32 %v1820, %v1904
        %v1908 = vld [vmem:[#allocation6 + $0x80] sm:$0xff]
        %v1909 = vld [vmem:[#allocation6 + $0x88] sm:$0xff]
        %v1910 = vld [vmem:[#allocation6 + $0x90] sm:$0xff]
        %v1911 = vld [vmem:[#allocation6 + $0x98] sm:$0xff]
        %v1912 = vld [vmem:[#allocation6 + $0xa0] sm:$0xff]
        %v1913 = vld [vmem:[#allocation6 + $0xa8] sm:$0xff]
        %v1914 = vld [vmem:[#allocation6 + $0xb0] sm:$0xff]
        %v1915 = vld [vmem:[#allocation6 + $0xb8] sm:$0xff]
        %v1916 = vld [vmem:[#allocation6 + $0xc0] sm:$0xff]
        %v1917 = vld [vmem:[#allocation6 + $0xc8] sm:$0xff]
        %v1918 = vld [vmem:[#allocation6 + $0xd0] sm:$0xff]
        %v1919 = vld [vmem:[#allocation6 + $0xd8] sm:$0xff]
        %v1920 = vld [vmem:[#allocation6 + $0xe0] sm:$0xff]
        %v1921 = vld [vmem:[#allocation6 + $0xe8] sm:$0xff]
        %v1922 = vld [vmem:[#allocation6 + $0xf0] sm:$0xff]
        %v1923 = vld [vmem:[#allocation6 + $0xf8] sm:$0xff]
        %1924 = vmatprep.subr.mxu0 0.0
        %1925 = vmatpush1.msra.mxu0 %v1923
        %1926 = vmatprep.subr.mxu0 0.0
        %1927 = vmatpush1.msra.mxu0 %v1922
        %1928 = vmatprep.subr.mxu0 0.0
        %1929 = vmatpush1.msra.mxu0 %v1921
        %1930 = vmatprep.subr.mxu0 0.0
        %1931 = vmatpush1.msra.mxu0 %v1920
        %1932 = vmatprep.subr.mxu0 0.0
        %1933 = vmatpush1.msra.mxu0 %v1919
        %1934 = vmatprep.subr.mxu0 0.0
        %1935 = vmatpush1.msra.mxu0 %v1918
        %1936 = vmatprep.subr.mxu0 0.0
        %1937 = vmatpush1.msra.mxu0 %v1917
        %1938 = vmatprep.subr.mxu0 0.0
        %1939 = vmatpush1.msra.mxu0 %v1916
        %1940 = vmatprep.subr.mxu0 0.0
        %1941 = vmatpush1.msra.mxu0 %v1915
        %1942 = vmatprep.subr.mxu0 0.0
        %1943 = vmatpush1.msra.mxu0 %v1914
        %1944 = vmatprep.subr.mxu0 0.0
        %1945 = vmatpush1.msra.mxu0 %v1913
        %1946 = vmatprep.subr.mxu0 0.0
        %1947 = vmatpush1.msra.mxu0 %v1912
        %1948 = vmatprep.subr.mxu0 0.0
        %1949 = vmatpush1.msra.mxu0 %v1911
        %1950 = vmatprep.subr.mxu0 0.0
        %1951 = vmatpush1.msra.mxu0 %v1910
        %1952 = vmatprep.subr.mxu0 0.0
        %1953 = vmatpush1.msra.mxu0 %v1909
        %1954 = vmatprep.subr.mxu0 0.0
        %1955 = vmatpush1.msra.mxu0 %v1908
        %1956 = vmatprep.subr.mxu0 0.0
        %1957 = vmatpush2.msra.mxu0 0.0
        %1958 = vmatprep.subr.mxu0 0.0
        %1959 = vmatpush2.msra.mxu0 0.0
        %1960 = vmatprep.subr.mxu0 0.0
        %1961 = vmatpush2.msra.mxu0 0.0
        %1962 = vmatprep.subr.mxu0 0.0
        %1963 = vmatpush2.msra.mxu0 0.0
        %1964 = vmatprep.subr.mxu0 0.0
        %1965 = vmatpush2.msra.mxu0 0.0
        %1966 = vmatprep.subr.mxu0 0.0
        %1967 = vmatpush2.msra.mxu0 0.0
        %1968 = vmatprep.subr.mxu0 0.0
        %1969 = vmatpush2.msra.mxu0 0.0
        %1970 = vmatprep.subr.mxu0 0.0
        %1971 = vmatpush2.msra.mxu0 0.0
        %1972 = vmatprep.subr.mxu0 0.0
        %1973 = vmatpush2.msra.mxu0 0.0
        %1974 = vmatprep.subr.mxu0 0.0
        %1975 = vmatpush2.msra.mxu0 0.0
        %1976 = vmatprep.subr.mxu0 0.0
        %1977 = vmatpush2.msra.mxu0 0.0
        %1978 = vmatprep.subr.mxu0 0.0
        %1979 = vmatpush2.msra.mxu0 0.0
        %1980 = vmatprep.subr.mxu0 0.0
        %1981 = vmatpush2.msra.mxu0 0.0
        %1982 = vmatprep.subr.mxu0 0.0
        %1983 = vmatpush2.msra.mxu0 0.0
        %1984 = vmatprep.subr.mxu0 0.0
        %1985 = vmatpush2.msra.mxu0 0.0
        %1986 = vmatprep.subr.mxu0 0.0
        %1987 = vmatpush2.msra.mxu0 0.0
        %1988 = vmatprep.mubr.f32.mxu0 0.0
        %1989 = vmatmul.mubr.f32.gmra.mxu0 %v686
        %v1990 = vpop.f32.mrf.mxu0
        %v1991 = vadd.f32 0.0, %v1990
        %v1992 = vpop.f32.mrf.mxu0
        %1993 = vdwg.mxu0
        %v1994 = vadd.f32 %v1907, %v1991
        %v1995 = vld [vmem:[#allocation6] sm:$0xff]
        %v1996 = vld [vmem:[#allocation6 + $0x8] sm:$0xff]
        %v1997 = vld [vmem:[#allocation6 + $0x10] sm:$0xff]
        %v1998 = vld [vmem:[#allocation6 + $0x18] sm:$0xff]
        %v1999 = vld [vmem:[#allocation6 + $0x20] sm:$0xff]
        %v2000 = vld [vmem:[#allocation6 + $0x28] sm:$0xff]
        %v2001 = vld [vmem:[#allocation6 + $0x30] sm:$0xff]
        %v2002 = vld [vmem:[#allocation6 + $0x38] sm:$0xff]
        %v2003 = vld [vmem:[#allocation6 + $0x40] sm:$0xff]
        %v2004 = vld [vmem:[#allocation6 + $0x48] sm:$0xff]
        %v2005 = vld [vmem:[#allocation6 + $0x50] sm:$0xff]
        %v2006 = vld [vmem:[#allocation6 + $0x58] sm:$0xff]
        %v2007 = vld [vmem:[#allocation6 + $0x60] sm:$0xff]
        %v2008 = vld [vmem:[#allocation6 + $0x68] sm:$0xff]
        %v2009 = vld [vmem:[#allocation6 + $0x70] sm:$0xff]
        %v2010 = vld [vmem:[#allocation6 + $0x78] sm:$0xff]
        %2011 = vmatprep.subr.mxu0 0.0
        %2012 = vmatpush1.msra.mxu0 %v2010
        %2013 = vmatprep.subr.mxu0 0.0
        %2014 = vmatpush1.msra.mxu0 %v2009
        %2015 = vmatprep.subr.mxu0 0.0
        %2016 = vmatpush1.msra.mxu0 %v2008
        %2017 = vmatprep.subr.mxu0 0.0
        %2018 = vmatpush1.msra.mxu0 %v2007
        %2019 = vmatprep.subr.mxu0 0.0
        %2020 = vmatpush1.msra.mxu0 %v2006
        %2021 = vmatprep.subr.mxu0 0.0
        %2022 = vmatpush1.msra.mxu0 %v2005
        %2023 = vmatprep.subr.mxu0 0.0
        %2024 = vmatpush1.msra.mxu0 %v2004
        %2025 = vmatprep.subr.mxu0 0.0
        %2026 = vmatpush1.msra.mxu0 %v2003
        %2027 = vmatprep.subr.mxu0 0.0
        %2028 = vmatpush1.msra.mxu0 %v2002
        %2029 = vmatprep.subr.mxu0 0.0
        %2030 = vmatpush1.msra.mxu0 %v2001
        %2031 = vmatprep.subr.mxu0 0.0
        %2032 = vmatpush1.msra.mxu0 %v2000
        %2033 = vmatprep.subr.mxu0 0.0
        %2034 = vmatpush1.msra.mxu0 %v1999
        %2035 = vmatprep.subr.mxu0 0.0
        %2036 = vmatpush1.msra.mxu0 %v1998
        %2037 = vmatprep.subr.mxu0 0.0
        %2038 = vmatpush1.msra.mxu0 %v1997
        %2039 = vmatprep.subr.mxu0 0.0
        %2040 = vmatpush1.msra.mxu0 %v1996
        %2041 = vmatprep.subr.mxu0 0.0
        %2042 = vmatpush1.msra.mxu0 %v1995
        %2043 = vmatprep.subr.mxu0 0.0
        %2044 = vmatpush2.msra.mxu0 0.0
        %2045 = vmatprep.subr.mxu0 0.0
        %2046 = vmatpush2.msra.mxu0 0.0
        %2047 = vmatprep.subr.mxu0 0.0
        %2048 = vmatpush2.msra.mxu0 0.0
        %2049 = vmatprep.subr.mxu0 0.0
        %2050 = vmatpush2.msra.mxu0 0.0
        %2051 = vmatprep.subr.mxu0 0.0
        %2052 = vmatpush2.msra.mxu0 0.0
        %2053 = vmatprep.subr.mxu0 0.0
        %2054 = vmatpush2.msra.mxu0 0.0
        %2055 = vmatprep.subr.mxu0 0.0
        %2056 = vmatpush2.msra.mxu0 0.0
        %2057 = vmatprep.subr.mxu0 0.0
        %2058 = vmatpush2.msra.mxu0 0.0
        %2059 = vmatprep.subr.mxu0 0.0
        %2060 = vmatpush2.msra.mxu0 0.0
        %2061 = vmatprep.subr.mxu0 0.0
        %2062 = vmatpush2.msra.mxu0 0.0
        %2063 = vmatprep.subr.mxu0 0.0
        %2064 = vmatpush2.msra.mxu0 0.0
        %2065 = vmatprep.subr.mxu0 0.0
        %2066 = vmatpush2.msra.mxu0 0.0
        %2067 = vmatprep.subr.mxu0 0.0
        %2068 = vmatpush2.msra.mxu0 0.0
        %2069 = vmatprep.subr.mxu0 0.0
        %2070 = vmatpush2.msra.mxu0 0.0
        %2071 = vmatprep.subr.mxu0 0.0
        %2072 = vmatpush2.msra.mxu0 0.0
        %2073 = vmatprep.subr.mxu0 0.0
        %2074 = vmatpush2.msra.mxu0 0.0
        %2075 = vmatprep.mubr.f32.mxu0 0.0
        %2076 = vmatmul.mubr.f32.gmra.mxu0 %v689
        %v2077 = vpop.f32.mrf.mxu0
        %v2078 = vadd.f32 0.0, %v2077
        %v2079 = vpop.f32.mrf.mxu0
        %2080 = vdwg.mxu0
        %v2081 = vadd.f32 %v1994, %v2078
        %v2082 = vld [vmem:[#allocation8 + $0x380] sm:$0xff]
        %v2083 = vld [vmem:[#allocation8 + $0x388] sm:$0xff]
        %v2084 = vld [vmem:[#allocation8 + $0x390] sm:$0xff]
        %v2085 = vld [vmem:[#allocation8 + $0x398] sm:$0xff]
        %v2086 = vld [vmem:[#allocation8 + $0x3a0] sm:$0xff]
        %v2087 = vld [vmem:[#allocation8 + $0x3a8] sm:$0xff]
        %v2088 = vld [vmem:[#allocation8 + $0x3b0] sm:$0xff]
        %v2089 = vld [vmem:[#allocation8 + $0x3b8] sm:$0xff]
        %v2090 = vld [vmem:[#allocation8 + $0x3c0] sm:$0xff]
        %v2091 = vld [vmem:[#allocation8 + $0x3c8] sm:$0xff]
        %v2092 = vld [vmem:[#allocation8 + $0x3d0] sm:$0xff]
        %v2093 = vld [vmem:[#allocation8 + $0x3d8] sm:$0xff]
        %v2094 = vld [vmem:[#allocation8 + $0x3e0] sm:$0xff]
        %v2095 = vld [vmem:[#allocation8 + $0x3e8] sm:$0xff]
        %v2096 = vld [vmem:[#allocation8 + $0x3f0] sm:$0xff]
        %v2097 = vld [vmem:[#allocation8 + $0x3f8] sm:$0xff]
        %v2098 = vld [vmem:[#allocation8 + $0x300] sm:$0xff]
        %v2099 = vld [vmem:[#allocation8 + $0x308] sm:$0xff]
        %v2100 = vld [vmem:[#allocation8 + $0x310] sm:$0xff]
        %v2101 = vld [vmem:[#allocation8 + $0x318] sm:$0xff]
        %v2102 = vld [vmem:[#allocation8 + $0x320] sm:$0xff]
        %v2103 = vld [vmem:[#allocation8 + $0x328] sm:$0xff]
        %v2104 = vld [vmem:[#allocation8 + $0x330] sm:$0xff]
        %v2105 = vld [vmem:[#allocation8 + $0x338] sm:$0xff]
        %v2106 = vld [vmem:[#allocation8 + $0x340] sm:$0xff]
        %v2107 = vld [vmem:[#allocation8 + $0x348] sm:$0xff]
        %v2108 = vld [vmem:[#allocation8 + $0x350] sm:$0xff]
        %v2109 = vld [vmem:[#allocation8 + $0x358] sm:$0xff]
        %v2110 = vld [vmem:[#allocation8 + $0x360] sm:$0xff]
        %v2111 = vld [vmem:[#allocation8 + $0x368] sm:$0xff]
        %v2112 = vld [vmem:[#allocation8 + $0x370] sm:$0xff]
        %v2113 = vld [vmem:[#allocation8 + $0x378] sm:$0xff]
        %v2115 = vrot.slane %v2081, 1
        %2117 = vmatprep.subr.mxu0 0.0
        %2118 = vmatpush1.msra.mxu0 %v2113
        %2119 = vmatprep.subr.mxu0 0.0
        %2120 = vmatpush1.msra.mxu0 %v2112
        %2121 = vmatprep.subr.mxu0 0.0
        %2122 = vmatpush1.msra.mxu0 %v2111
        %2123 = vmatprep.subr.mxu0 0.0
        %2124 = vmatpush1.msra.mxu0 %v2110
        %2125 = vmatprep.subr.mxu0 0.0
        %2126 = vmatpush1.msra.mxu0 %v2109
        %2127 = vmatprep.subr.mxu0 0.0
        %2128 = vmatpush1.msra.mxu0 %v2108
        %2129 = vmatprep.subr.mxu0 0.0
        %2130 = vmatpush1.msra.mxu0 %v2107
        %2131 = vmatprep.subr.mxu0 0.0
        %2132 = vmatpush1.msra.mxu0 %v2106
        %2133 = vmatprep.subr.mxu0 0.0
        %2134 = vmatpush1.msra.mxu0 %v2105
        %2135 = vmatprep.subr.mxu0 0.0
        %2136 = vmatpush1.msra.mxu0 %v2104
        %2137 = vmatprep.subr.mxu0 0.0
        %2138 = vmatpush1.msra.mxu0 %v2103
        %2139 = vmatprep.subr.mxu0 0.0
        %2140 = vmatpush1.msra.mxu0 %v2102
        %2141 = vmatprep.subr.mxu0 0.0
        %2142 = vmatpush1.msra.mxu0 %v2101
        %2143 = vmatprep.subr.mxu0 0.0
        %2144 = vmatpush1.msra.mxu0 %v2100
        %2145 = vmatprep.subr.mxu0 0.0
        %2146 = vmatpush1.msra.mxu0 %v2099
        %2147 = vmatprep.subr.mxu0 0.0
        %2148 = vmatpush1.msra.mxu0 %v2098
        %2149 = vmatprep.subr.mxu0 0.0
        %2150 = vmatpush2.msra.mxu0 0.0
        %2151 = vmatprep.subr.mxu0 0.0
        %2152 = vmatpush2.msra.mxu0 0.0
        %2153 = vmatprep.subr.mxu0 0.0
        %2154 = vmatpush2.msra.mxu0 0.0
        %2155 = vmatprep.subr.mxu0 0.0
        %2156 = vmatpush2.msra.mxu0 0.0
        %2157 = vmatprep.subr.mxu0 0.0
        %2158 = vmatpush2.msra.mxu0 0.0
        %2159 = vmatprep.subr.mxu0 0.0
        %2160 = vmatpush2.msra.mxu0 0.0
        %2161 = vmatprep.subr.mxu0 0.0
        %2162 = vmatpush2.msra.mxu0 0.0
        %2163 = vmatprep.subr.mxu0 0.0
        %2164 = vmatpush2.msra.mxu0 0.0
        %2165 = vmatprep.subr.mxu0 0.0
        %2166 = vmatpush2.msra.mxu0 0.0
        %2167 = vmatprep.subr.mxu0 0.0
        %2168 = vmatpush2.msra.mxu0 0.0
        %2169 = vmatprep.subr.mxu0 0.0
        %2170 = vmatpush2.msra.mxu0 0.0
        %2171 = vmatprep.subr.mxu0 0.0
        %2172 = vmatpush2.msra.mxu0 0.0
        %2173 = vmatprep.subr.mxu0 0.0
        %2174 = vmatpush2.msra.mxu0 0.0
        %2175 = vmatprep.subr.mxu0 0.0
        %2176 = vmatpush2.msra.mxu0 0.0
        %2177 = vmatprep.subr.mxu0 0.0
        %2178 = vmatpush2.msra.mxu0 0.0
        %2179 = vmatprep.subr.mxu0 0.0
        %2180 = vmatpush2.msra.mxu0 0.0
        %2181 = vmatprep.mubr.f32.mxu0 0.0
        %2182 = vmatmul.mubr.f32.gmra.mxu0 %v2115
        %v2183 = vpop.f32.mrf.mxu0
        %v2184 = vadd.f32 0.0, %v2183
        %v2185 = vpop.f32.mrf.mxu0
        %2186 = vdwg.mxu0
        %2187 = vmatprep.subr.mxu0 0.0
        %2188 = vmatpush1.msra.mxu0 %v2097
        %2189 = vmatprep.subr.mxu0 0.0
        %2190 = vmatpush1.msra.mxu0 %v2096
        %2191 = vmatprep.subr.mxu0 0.0
        %2192 = vmatpush1.msra.mxu0 %v2095
        %2193 = vmatprep.subr.mxu0 0.0
        %2194 = vmatpush1.msra.mxu0 %v2094
        %2195 = vmatprep.subr.mxu0 0.0
        %2196 = vmatpush1.msra.mxu0 %v2093
        %2197 = vmatprep.subr.mxu0 0.0
        %2198 = vmatpush1.msra.mxu0 %v2092
        %2199 = vmatprep.subr.mxu0 0.0
        %2200 = vmatpush1.msra.mxu0 %v2091
        %2201 = vmatprep.subr.mxu0 0.0
        %2202 = vmatpush1.msra.mxu0 %v2090
        %2203 = vmatprep.subr.mxu0 0.0
        %2204 = vmatpush1.msra.mxu0 %v2089
        %2205 = vmatprep.subr.mxu0 0.0
        %2206 = vmatpush1.msra.mxu0 %v2088
        %2207 = vmatprep.subr.mxu0 0.0
        %2208 = vmatpush1.msra.mxu0 %v2087
        %2209 = vmatprep.subr.mxu0 0.0
        %2210 = vmatpush1.msra.mxu0 %v2086
        %2211 = vmatprep.subr.mxu0 0.0
        %2212 = vmatpush1.msra.mxu0 %v2085
        %2213 = vmatprep.subr.mxu0 0.0
        %2214 = vmatpush1.msra.mxu0 %v2084
        %2215 = vmatprep.subr.mxu0 0.0
        %2216 = vmatpush1.msra.mxu0 %v2083
        %2217 = vmatprep.subr.mxu0 0.0
        %2218 = vmatpush1.msra.mxu0 %v2082
        %2219 = vmatprep.subr.mxu0 0.0
        %2220 = vmatpush2.msra.mxu0 0.0
        %2221 = vmatprep.subr.mxu0 0.0
        %2222 = vmatpush2.msra.mxu0 0.0
        %2223 = vmatprep.subr.mxu0 0.0
        %2224 = vmatpush2.msra.mxu0 0.0
        %2225 = vmatprep.subr.mxu0 0.0
        %2226 = vmatpush2.msra.mxu0 0.0
        %2227 = vmatprep.subr.mxu0 0.0
        %2228 = vmatpush2.msra.mxu0 0.0
        %2229 = vmatprep.subr.mxu0 0.0
        %2230 = vmatpush2.msra.mxu0 0.0
        %2231 = vmatprep.subr.mxu0 0.0
        %2232 = vmatpush2.msra.mxu0 0.0
        %2233 = vmatprep.subr.mxu0 0.0
        %2234 = vmatpush2.msra.mxu0 0.0
        %2235 = vmatprep.subr.mxu0 0.0
        %2236 = vmatpush2.msra.mxu0 0.0
        %2237 = vmatprep.subr.mxu0 0.0
        %2238 = vmatpush2.msra.mxu0 0.0
        %2239 = vmatprep.subr.mxu0 0.0
        %2240 = vmatpush2.msra.mxu0 0.0
        %2241 = vmatprep.subr.mxu0 0.0
        %2242 = vmatpush2.msra.mxu0 0.0
        %2243 = vmatprep.subr.mxu0 0.0
        %2244 = vmatpush2.msra.mxu0 0.0
        %2245 = vmatprep.subr.mxu0 0.0
        %2246 = vmatpush2.msra.mxu0 0.0
        %2247 = vmatprep.subr.mxu0 0.0
        %2248 = vmatpush2.msra.mxu0 0.0
        %2249 = vmatprep.subr.mxu0 0.0
        %2250 = vmatpush2.msra.mxu0 0.0
        %2251 = vmatprep.mubr.f32.mxu0 0.0
        %2252 = vmatmul.mubr.f32.gmra.mxu0 %v2081
        %v2253 = vpop.f32.mrf.mxu0
        %v2254 = vadd.f32 %v2184, %v2253
        %v2255 = vpop.f32.mrf.mxu0
        %2256 = vdwg.mxu0
        %v2257 = vld [vmem:[#allocation8 + $0x280] sm:$0xff]
        %v2258 = vld [vmem:[#allocation8 + $0x288] sm:$0xff]
        %v2259 = vld [vmem:[#allocation8 + $0x290] sm:$0xff]
        %v2260 = vld [vmem:[#allocation8 + $0x298] sm:$0xff]
        %v2261 = vld [vmem:[#allocation8 + $0x2a0] sm:$0xff]
        %v2262 = vld [vmem:[#allocation8 + $0x2a8] sm:$0xff]
        %v2263 = vld [vmem:[#allocation8 + $0x2b0] sm:$0xff]
        %v2264 = vld [vmem:[#allocation8 + $0x2b8] sm:$0xff]
        %v2265 = vld [vmem:[#allocation8 + $0x2c0] sm:$0xff]
        %v2266 = vld [vmem:[#allocation8 + $0x2c8] sm:$0xff]
        %v2267 = vld [vmem:[#allocation8 + $0x2d0] sm:$0xff]
        %v2268 = vld [vmem:[#allocation8 + $0x2d8] sm:$0xff]
        %v2269 = vld [vmem:[#allocation8 + $0x2e0] sm:$0xff]
        %v2270 = vld [vmem:[#allocation8 + $0x2e8] sm:$0xff]
        %v2271 = vld [vmem:[#allocation8 + $0x2f0] sm:$0xff]
        %v2272 = vld [vmem:[#allocation8 + $0x2f8] sm:$0xff]
        %v2273 = vrot.slane %v2081, 2
        %2275 = vmatprep.subr.mxu0 0.0
        %2276 = vmatpush1.msra.mxu0 %v2272
        %2277 = vmatprep.subr.mxu0 0.0
        %2278 = vmatpush1.msra.mxu0 %v2271
        %2279 = vmatprep.subr.mxu0 0.0
        %2280 = vmatpush1.msra.mxu0 %v2270
        %2281 = vmatprep.subr.mxu0 0.0
        %2282 = vmatpush1.msra.mxu0 %v2269
        %2283 = vmatprep.subr.mxu0 0.0
        %2284 = vmatpush1.msra.mxu0 %v2268
        %2285 = vmatprep.subr.mxu0 0.0
        %2286 = vmatpush1.msra.mxu0 %v2267
        %2287 = vmatprep.subr.mxu0 0.0
        %2288 = vmatpush1.msra.mxu0 %v2266
        %2289 = vmatprep.subr.mxu0 0.0
        %2290 = vmatpush1.msra.mxu0 %v2265
        %2291 = vmatprep.subr.mxu0 0.0
        %2292 = vmatpush1.msra.mxu0 %v2264
        %2293 = vmatprep.subr.mxu0 0.0
        %2294 = vmatpush1.msra.mxu0 %v2263
        %2295 = vmatprep.subr.mxu0 0.0
        %2296 = vmatpush1.msra.mxu0 %v2262
        %2297 = vmatprep.subr.mxu0 0.0
        %2298 = vmatpush1.msra.mxu0 %v2261
        %2299 = vmatprep.subr.mxu0 0.0
        %2300 = vmatpush1.msra.mxu0 %v2260
        %2301 = vmatprep.subr.mxu0 0.0
        %2302 = vmatpush1.msra.mxu0 %v2259
        %2303 = vmatprep.subr.mxu0 0.0
        %2304 = vmatpush1.msra.mxu0 %v2258
        %2305 = vmatprep.subr.mxu0 0.0
        %2306 = vmatpush1.msra.mxu0 %v2257
        %2307 = vmatprep.subr.mxu0 0.0
        %2308 = vmatpush2.msra.mxu0 0.0
        %2309 = vmatprep.subr.mxu0 0.0
        %2310 = vmatpush2.msra.mxu0 0.0
        %2311 = vmatprep.subr.mxu0 0.0
        %2312 = vmatpush2.msra.mxu0 0.0
        %2313 = vmatprep.subr.mxu0 0.0
        %2314 = vmatpush2.msra.mxu0 0.0
        %2315 = vmatprep.subr.mxu0 0.0
        %2316 = vmatpush2.msra.mxu0 0.0
        %2317 = vmatprep.subr.mxu0 0.0
        %2318 = vmatpush2.msra.mxu0 0.0
        %2319 = vmatprep.subr.mxu0 0.0
        %2320 = vmatpush2.msra.mxu0 0.0
        %2321 = vmatprep.subr.mxu0 0.0
        %2322 = vmatpush2.msra.mxu0 0.0
        %2323 = vmatprep.subr.mxu0 0.0
        %2324 = vmatpush2.msra.mxu0 0.0
        %2325 = vmatprep.subr.mxu0 0.0
        %2326 = vmatpush2.msra.mxu0 0.0
        %2327 = vmatprep.subr.mxu0 0.0
        %2328 = vmatpush2.msra.mxu0 0.0
        %2329 = vmatprep.subr.mxu0 0.0
        %2330 = vmatpush2.msra.mxu0 0.0
        %2331 = vmatprep.subr.mxu0 0.0
        %2332 = vmatpush2.msra.mxu0 0.0
        %2333 = vmatprep.subr.mxu0 0.0
        %2334 = vmatpush2.msra.mxu0 0.0
        %2335 = vmatprep.subr.mxu0 0.0
        %2336 = vmatpush2.msra.mxu0 0.0
        %2337 = vmatprep.subr.mxu0 0.0
        %2338 = vmatpush2.msra.mxu0 0.0
        %2339 = vmatprep.mubr.f32.mxu0 0.0
        %2340 = vmatmul.mubr.f32.gmra.mxu0 %v2273
        %v2341 = vpop.f32.mrf.mxu0
        %v2342 = vadd.f32 0.0, %v2341
        %v2343 = vpop.f32.mrf.mxu0
        %2344 = vdwg.mxu0
        %v2345 = vadd.f32 %v2254, %v2342
        %v2346 = vld [vmem:[#allocation8 + $0x200] sm:$0xff]
        %v2347 = vld [vmem:[#allocation8 + $0x208] sm:$0xff]
        %v2348 = vld [vmem:[#allocation8 + $0x210] sm:$0xff]
        %v2349 = vld [vmem:[#allocation8 + $0x218] sm:$0xff]
        %v2350 = vld [vmem:[#allocation8 + $0x220] sm:$0xff]
        %v2351 = vld [vmem:[#allocation8 + $0x228] sm:$0xff]
        %v2352 = vld [vmem:[#allocation8 + $0x230] sm:$0xff]
        %v2353 = vld [vmem:[#allocation8 + $0x238] sm:$0xff]
        %v2354 = vld [vmem:[#allocation8 + $0x240] sm:$0xff]
        %v2355 = vld [vmem:[#allocation8 + $0x248] sm:$0xff]
        %v2356 = vld [vmem:[#allocation8 + $0x250] sm:$0xff]
        %v2357 = vld [vmem:[#allocation8 + $0x258] sm:$0xff]
        %v2358 = vld [vmem:[#allocation8 + $0x260] sm:$0xff]
        %v2359 = vld [vmem:[#allocation8 + $0x268] sm:$0xff]
        %v2360 = vld [vmem:[#allocation8 + $0x270] sm:$0xff]
        %v2361 = vld [vmem:[#allocation8 + $0x278] sm:$0xff]
        %v2362 = vrot.slane %v2081, 3
        %2364 = vmatprep.subr.mxu0 0.0
        %2365 = vmatpush1.msra.mxu0 %v2361
        %2366 = vmatprep.subr.mxu0 0.0
        %2367 = vmatpush1.msra.mxu0 %v2360
        %2368 = vmatprep.subr.mxu0 0.0
        %2369 = vmatpush1.msra.mxu0 %v2359
        %2370 = vmatprep.subr.mxu0 0.0
        %2371 = vmatpush1.msra.mxu0 %v2358
        %2372 = vmatprep.subr.mxu0 0.0
        %2373 = vmatpush1.msra.mxu0 %v2357
        %2374 = vmatprep.subr.mxu0 0.0
        %2375 = vmatpush1.msra.mxu0 %v2356
        %2376 = vmatprep.subr.mxu0 0.0
        %2377 = vmatpush1.msra.mxu0 %v2355
        %2378 = vmatprep.subr.mxu0 0.0
        %2379 = vmatpush1.msra.mxu0 %v2354
        %2380 = vmatprep.subr.mxu0 0.0
        %2381 = vmatpush1.msra.mxu0 %v2353
        %2382 = vmatprep.subr.mxu0 0.0
        %2383 = vmatpush1.msra.mxu0 %v2352
        %2384 = vmatprep.subr.mxu0 0.0
        %2385 = vmatpush1.msra.mxu0 %v2351
        %2386 = vmatprep.subr.mxu0 0.0
        %2387 = vmatpush1.msra.mxu0 %v2350
        %2388 = vmatprep.subr.mxu0 0.0
        %2389 = vmatpush1.msra.mxu0 %v2349
        %2390 = vmatprep.subr.mxu0 0.0
        %2391 = vmatpush1.msra.mxu0 %v2348
        %2392 = vmatprep.subr.mxu0 0.0
        %2393 = vmatpush1.msra.mxu0 %v2347
        %2394 = vmatprep.subr.mxu0 0.0
        %2395 = vmatpush1.msra.mxu0 %v2346
        %2396 = vmatprep.subr.mxu0 0.0
        %2397 = vmatpush2.msra.mxu0 0.0
        %2398 = vmatprep.subr.mxu0 0.0
        %2399 = vmatpush2.msra.mxu0 0.0
        %2400 = vmatprep.subr.mxu0 0.0
        %2401 = vmatpush2.msra.mxu0 0.0
        %2402 = vmatprep.subr.mxu0 0.0
        %2403 = vmatpush2.msra.mxu0 0.0
        %2404 = vmatprep.subr.mxu0 0.0
        %2405 = vmatpush2.msra.mxu0 0.0
        %2406 = vmatprep.subr.mxu0 0.0
        %2407 = vmatpush2.msra.mxu0 0.0
        %2408 = vmatprep.subr.mxu0 0.0
        %2409 = vmatpush2.msra.mxu0 0.0
        %2410 = vmatprep.subr.mxu0 0.0
        %2411 = vmatpush2.msra.mxu0 0.0
        %2412 = vmatprep.subr.mxu0 0.0
        %2413 = vmatpush2.msra.mxu0 0.0
        %2414 = vmatprep.subr.mxu0 0.0
        %2415 = vmatpush2.msra.mxu0 0.0
        %2416 = vmatprep.subr.mxu0 0.0
        %2417 = vmatpush2.msra.mxu0 0.0
        %2418 = vmatprep.subr.mxu0 0.0
        %2419 = vmatpush2.msra.mxu0 0.0
        %2420 = vmatprep.subr.mxu0 0.0
        %2421 = vmatpush2.msra.mxu0 0.0
        %2422 = vmatprep.subr.mxu0 0.0
        %2423 = vmatpush2.msra.mxu0 0.0
        %2424 = vmatprep.subr.mxu0 0.0
        %2425 = vmatpush2.msra.mxu0 0.0
        %2426 = vmatprep.subr.mxu0 0.0
        %2427 = vmatpush2.msra.mxu0 0.0
        %2428 = vmatprep.mubr.f32.mxu0 0.0
        %2429 = vmatmul.mubr.f32.gmra.mxu0 %v2362
        %v2430 = vpop.f32.mrf.mxu0
        %v2431 = vadd.f32 0.0, %v2430
        %v2432 = vpop.f32.mrf.mxu0
        %2433 = vdwg.mxu0
        %v2434 = vadd.f32 %v2345, %v2431
        %v2435 = vld [vmem:[#allocation8 + $0x180] sm:$0xff]
        %v2436 = vld [vmem:[#allocation8 + $0x188] sm:$0xff]
        %v2437 = vld [vmem:[#allocation8 + $0x190] sm:$0xff]
        %v2438 = vld [vmem:[#allocation8 + $0x198] sm:$0xff]
        %v2439 = vld [vmem:[#allocation8 + $0x1a0] sm:$0xff]
        %v2440 = vld [vmem:[#allocation8 + $0x1a8] sm:$0xff]
        %v2441 = vld [vmem:[#allocation8 + $0x1b0] sm:$0xff]
        %v2442 = vld [vmem:[#allocation8 + $0x1b8] sm:$0xff]
        %v2443 = vld [vmem:[#allocation8 + $0x1c0] sm:$0xff]
        %v2444 = vld [vmem:[#allocation8 + $0x1c8] sm:$0xff]
        %v2445 = vld [vmem:[#allocation8 + $0x1d0] sm:$0xff]
        %v2446 = vld [vmem:[#allocation8 + $0x1d8] sm:$0xff]
        %v2447 = vld [vmem:[#allocation8 + $0x1e0] sm:$0xff]
        %v2448 = vld [vmem:[#allocation8 + $0x1e8] sm:$0xff]
        %v2449 = vld [vmem:[#allocation8 + $0x1f0] sm:$0xff]
        %v2450 = vld [vmem:[#allocation8 + $0x1f8] sm:$0xff]
        %v2451 = vrot.slane %v2081, 4
        %2453 = vmatprep.subr.mxu0 0.0
        %2454 = vmatpush1.msra.mxu0 %v2450
        %2455 = vmatprep.subr.mxu0 0.0
        %2456 = vmatpush1.msra.mxu0 %v2449
        %2457 = vmatprep.subr.mxu0 0.0
        %2458 = vmatpush1.msra.mxu0 %v2448
        %2459 = vmatprep.subr.mxu0 0.0
        %2460 = vmatpush1.msra.mxu0 %v2447
        %2461 = vmatprep.subr.mxu0 0.0
        %2462 = vmatpush1.msra.mxu0 %v2446
        %2463 = vmatprep.subr.mxu0 0.0
        %2464 = vmatpush1.msra.mxu0 %v2445
        %2465 = vmatprep.subr.mxu0 0.0
        %2466 = vmatpush1.msra.mxu0 %v2444
        %2467 = vmatprep.subr.mxu0 0.0
        %2468 = vmatpush1.msra.mxu0 %v2443
        %2469 = vmatprep.subr.mxu0 0.0
        %2470 = vmatpush1.msra.mxu0 %v2442
        %2471 = vmatprep.subr.mxu0 0.0
        %2472 = vmatpush1.msra.mxu0 %v2441
        %2473 = vmatprep.subr.mxu0 0.0
        %2474 = vmatpush1.msra.mxu0 %v2440
        %2475 = vmatprep.subr.mxu0 0.0
        %2476 = vmatpush1.msra.mxu0 %v2439
        %2477 = vmatprep.subr.mxu0 0.0
        %2478 = vmatpush1.msra.mxu0 %v2438
        %2479 = vmatprep.subr.mxu0 0.0
        %2480 = vmatpush1.msra.mxu0 %v2437
        %2481 = vmatprep.subr.mxu0 0.0
        %2482 = vmatpush1.msra.mxu0 %v2436
        %2483 = vmatprep.subr.mxu0 0.0
        %2484 = vmatpush1.msra.mxu0 %v2435
        %2485 = vmatprep.subr.mxu0 0.0
        %2486 = vmatpush2.msra.mxu0 0.0
        %2487 = vmatprep.subr.mxu0 0.0
        %2488 = vmatpush2.msra.mxu0 0.0
        %2489 = vmatprep.subr.mxu0 0.0
        %2490 = vmatpush2.msra.mxu0 0.0
        %2491 = vmatprep.subr.mxu0 0.0
        %2492 = vmatpush2.msra.mxu0 0.0
        %2493 = vmatprep.subr.mxu0 0.0
        %2494 = vmatpush2.msra.mxu0 0.0
        %2495 = vmatprep.subr.mxu0 0.0
        %2496 = vmatpush2.msra.mxu0 0.0
        %2497 = vmatprep.subr.mxu0 0.0
        %2498 = vmatpush2.msra.mxu0 0.0
        %2499 = vmatprep.subr.mxu0 0.0
        %2500 = vmatpush2.msra.mxu0 0.0
        %2501 = vmatprep.subr.mxu0 0.0
        %2502 = vmatpush2.msra.mxu0 0.0
        %2503 = vmatprep.subr.mxu0 0.0
        %2504 = vmatpush2.msra.mxu0 0.0
        %2505 = vmatprep.subr.mxu0 0.0
        %2506 = vmatpush2.msra.mxu0 0.0
        %2507 = vmatprep.subr.mxu0 0.0
        %2508 = vmatpush2.msra.mxu0 0.0
        %2509 = vmatprep.subr.mxu0 0.0
        %2510 = vmatpush2.msra.mxu0 0.0
        %2511 = vmatprep.subr.mxu0 0.0
        %2512 = vmatpush2.msra.mxu0 0.0
        %2513 = vmatprep.subr.mxu0 0.0
        %2514 = vmatpush2.msra.mxu0 0.0
        %2515 = vmatprep.subr.mxu0 0.0
        %2516 = vmatpush2.msra.mxu0 0.0
        %2517 = vmatprep.mubr.f32.mxu0 0.0
        %2518 = vmatmul.mubr.f32.gmra.mxu0 %v2451
        %v2519 = vpop.f32.mrf.mxu0
        %v2520 = vadd.f32 0.0, %v2519
        %v2521 = vpop.f32.mrf.mxu0
        %2522 = vdwg.mxu0
        %v2523 = vadd.f32 %v2434, %v2520
        %v2524 = vld [vmem:[#allocation8 + $0x100] sm:$0xff]
        %v2525 = vld [vmem:[#allocation8 + $0x108] sm:$0xff]
        %v2526 = vld [vmem:[#allocation8 + $0x110] sm:$0xff]
        %v2527 = vld [vmem:[#allocation8 + $0x118] sm:$0xff]
        %v2528 = vld [vmem:[#allocation8 + $0x120] sm:$0xff]
        %v2529 = vld [vmem:[#allocation8 + $0x128] sm:$0xff]
        %v2530 = vld [vmem:[#allocation8 + $0x130] sm:$0xff]
        %v2531 = vld [vmem:[#allocation8 + $0x138] sm:$0xff]
        %v2532 = vld [vmem:[#allocation8 + $0x140] sm:$0xff]
        %v2533 = vld [vmem:[#allocation8 + $0x148] sm:$0xff]
        %v2534 = vld [vmem:[#allocation8 + $0x150] sm:$0xff]
        %v2535 = vld [vmem:[#allocation8 + $0x158] sm:$0xff]
        %v2536 = vld [vmem:[#allocation8 + $0x160] sm:$0xff]
        %v2537 = vld [vmem:[#allocation8 + $0x168] sm:$0xff]
        %v2538 = vld [vmem:[#allocation8 + $0x170] sm:$0xff]
        %v2539 = vld [vmem:[#allocation8 + $0x178] sm:$0xff]
        %v2540 = vrot.slane %v2081, 5
        %2542 = vmatprep.subr.mxu0 0.0
        %2543 = vmatpush1.msra.mxu0 %v2539
        %2544 = vmatprep.subr.mxu0 0.0
        %2545 = vmatpush1.msra.mxu0 %v2538
        %2546 = vmatprep.subr.mxu0 0.0
        %2547 = vmatpush1.msra.mxu0 %v2537
        %2548 = vmatprep.subr.mxu0 0.0
        %2549 = vmatpush1.msra.mxu0 %v2536
        %2550 = vmatprep.subr.mxu0 0.0
        %2551 = vmatpush1.msra.mxu0 %v2535
        %2552 = vmatprep.subr.mxu0 0.0
        %2553 = vmatpush1.msra.mxu0 %v2534
        %2554 = vmatprep.subr.mxu0 0.0
        %2555 = vmatpush1.msra.mxu0 %v2533
        %2556 = vmatprep.subr.mxu0 0.0
        %2557 = vmatpush1.msra.mxu0 %v2532
        %2558 = vmatprep.subr.mxu0 0.0
        %2559 = vmatpush1.msra.mxu0 %v2531
        %2560 = vmatprep.subr.mxu0 0.0
        %2561 = vmatpush1.msra.mxu0 %v2530
        %2562 = vmatprep.subr.mxu0 0.0
        %2563 = vmatpush1.msra.mxu0 %v2529
        %2564 = vmatprep.subr.mxu0 0.0
        %2565 = vmatpush1.msra.mxu0 %v2528
        %2566 = vmatprep.subr.mxu0 0.0
        %2567 = vmatpush1.msra.mxu0 %v2527
        %2568 = vmatprep.subr.mxu0 0.0
        %2569 = vmatpush1.msra.mxu0 %v2526
        %2570 = vmatprep.subr.mxu0 0.0
        %2571 = vmatpush1.msra.mxu0 %v2525
        %2572 = vmatprep.subr.mxu0 0.0
        %2573 = vmatpush1.msra.mxu0 %v2524
        %2574 = vmatprep.subr.mxu0 0.0
        %2575 = vmatpush2.msra.mxu0 0.0
        %2576 = vmatprep.subr.mxu0 0.0
        %2577 = vmatpush2.msra.mxu0 0.0
        %2578 = vmatprep.subr.mxu0 0.0
        %2579 = vmatpush2.msra.mxu0 0.0
        %2580 = vmatprep.subr.mxu0 0.0
        %2581 = vmatpush2.msra.mxu0 0.0
        %2582 = vmatprep.subr.mxu0 0.0
        %2583 = vmatpush2.msra.mxu0 0.0
        %2584 = vmatprep.subr.mxu0 0.0
        %2585 = vmatpush2.msra.mxu0 0.0
        %2586 = vmatprep.subr.mxu0 0.0
        %2587 = vmatpush2.msra.mxu0 0.0
        %2588 = vmatprep.subr.mxu0 0.0
        %2589 = vmatpush2.msra.mxu0 0.0
        %2590 = vmatprep.subr.mxu0 0.0
        %2591 = vmatpush2.msra.mxu0 0.0
        %2592 = vmatprep.subr.mxu0 0.0
        %2593 = vmatpush2.msra.mxu0 0.0
        %2594 = vmatprep.subr.mxu0 0.0
        %2595 = vmatpush2.msra.mxu0 0.0
        %2596 = vmatprep.subr.mxu0 0.0
        %2597 = vmatpush2.msra.mxu0 0.0
        %2598 = vmatprep.subr.mxu0 0.0
        %2599 = vmatpush2.msra.mxu0 0.0
        %2600 = vmatprep.subr.mxu0 0.0
        %2601 = vmatpush2.msra.mxu0 0.0
        %2602 = vmatprep.subr.mxu0 0.0
        %2603 = vmatpush2.msra.mxu0 0.0
        %2604 = vmatprep.subr.mxu0 0.0
        %2605 = vmatpush2.msra.mxu0 0.0
        %2606 = vmatprep.mubr.f32.mxu0 0.0
        %2607 = vmatmul.mubr.f32.gmra.mxu0 %v2540
        %v2608 = vpop.f32.mrf.mxu0
        %v2609 = vadd.f32 0.0, %v2608
        %v2610 = vpop.f32.mrf.mxu0
        %2611 = vdwg.mxu0
        %v2612 = vadd.f32 %v2523, %v2609
        %v2613 = vld [vmem:[#allocation8 + $0x80] sm:$0xff]
        %v2614 = vld [vmem:[#allocation8 + $0x88] sm:$0xff]
        %v2615 = vld [vmem:[#allocation8 + $0x90] sm:$0xff]
        %v2616 = vld [vmem:[#allocation8 + $0x98] sm:$0xff]
        %v2617 = vld [vmem:[#allocation8 + $0xa0] sm:$0xff]
        %v2618 = vld [vmem:[#allocation8 + $0xa8] sm:$0xff]
        %v2619 = vld [vmem:[#allocation8 + $0xb0] sm:$0xff]
        %v2620 = vld [vmem:[#allocation8 + $0xb8] sm:$0xff]
        %v2621 = vld [vmem:[#allocation8 + $0xc0] sm:$0xff]
        %v2622 = vld [vmem:[#allocation8 + $0xc8] sm:$0xff]
        %v2623 = vld [vmem:[#allocation8 + $0xd0] sm:$0xff]
        %v2624 = vld [vmem:[#allocation8 + $0xd8] sm:$0xff]
        %v2625 = vld [vmem:[#allocation8 + $0xe0] sm:$0xff]
        %v2626 = vld [vmem:[#allocation8 + $0xe8] sm:$0xff]
        %v2627 = vld [vmem:[#allocation8 + $0xf0] sm:$0xff]
        %v2628 = vld [vmem:[#allocation8 + $0xf8] sm:$0xff]
        %v2629 = vrot.slane %v2081, 6
        %2631 = vmatprep.subr.mxu0 0.0
        %2632 = vmatpush1.msra.mxu0 %v2628
        %2633 = vmatprep.subr.mxu0 0.0
        %2634 = vmatpush1.msra.mxu0 %v2627
        %2635 = vmatprep.subr.mxu0 0.0
        %2636 = vmatpush1.msra.mxu0 %v2626
        %2637 = vmatprep.subr.mxu0 0.0
        %2638 = vmatpush1.msra.mxu0 %v2625
        %2639 = vmatprep.subr.mxu0 0.0
        %2640 = vmatpush1.msra.mxu0 %v2624
        %2641 = vmatprep.subr.mxu0 0.0
        %2642 = vmatpush1.msra.mxu0 %v2623
        %2643 = vmatprep.subr.mxu0 0.0
        %2644 = vmatpush1.msra.mxu0 %v2622
        %2645 = vmatprep.subr.mxu0 0.0
        %2646 = vmatpush1.msra.mxu0 %v2621
        %2647 = vmatprep.subr.mxu0 0.0
        %2648 = vmatpush1.msra.mxu0 %v2620
        %2649 = vmatprep.subr.mxu0 0.0
        %2650 = vmatpush1.msra.mxu0 %v2619
        %2651 = vmatprep.subr.mxu0 0.0
        %2652 = vmatpush1.msra.mxu0 %v2618
        %2653 = vmatprep.subr.mxu0 0.0
        %2654 = vmatpush1.msra.mxu0 %v2617
        %2655 = vmatprep.subr.mxu0 0.0
        %2656 = vmatpush1.msra.mxu0 %v2616
        %2657 = vmatprep.subr.mxu0 0.0
        %2658 = vmatpush1.msra.mxu0 %v2615
        %2659 = vmatprep.subr.mxu0 0.0
        %2660 = vmatpush1.msra.mxu0 %v2614
        %2661 = vmatprep.subr.mxu0 0.0
        %2662 = vmatpush1.msra.mxu0 %v2613
        %2663 = vmatprep.subr.mxu0 0.0
        %2664 = vmatpush2.msra.mxu0 0.0
        %2665 = vmatprep.subr.mxu0 0.0
        %2666 = vmatpush2.msra.mxu0 0.0
        %2667 = vmatprep.subr.mxu0 0.0
        %2668 = vmatpush2.msra.mxu0 0.0
        %2669 = vmatprep.subr.mxu0 0.0
        %2670 = vmatpush2.msra.mxu0 0.0
        %2671 = vmatprep.subr.mxu0 0.0
        %2672 = vmatpush2.msra.mxu0 0.0
        %2673 = vmatprep.subr.mxu0 0.0
        %2674 = vmatpush2.msra.mxu0 0.0
        %2675 = vmatprep.subr.mxu0 0.0
        %2676 = vmatpush2.msra.mxu0 0.0
        %2677 = vmatprep.subr.mxu0 0.0
        %2678 = vmatpush2.msra.mxu0 0.0
        %2679 = vmatprep.subr.mxu0 0.0
        %2680 = vmatpush2.msra.mxu0 0.0
        %2681 = vmatprep.subr.mxu0 0.0
        %2682 = vmatpush2.msra.mxu0 0.0
        %2683 = vmatprep.subr.mxu0 0.0
        %2684 = vmatpush2.msra.mxu0 0.0
        %2685 = vmatprep.subr.mxu0 0.0
        %2686 = vmatpush2.msra.mxu0 0.0
        %2687 = vmatprep.subr.mxu0 0.0
        %2688 = vmatpush2.msra.mxu0 0.0
        %2689 = vmatprep.subr.mxu0 0.0
        %2690 = vmatpush2.msra.mxu0 0.0
        %2691 = vmatprep.subr.mxu0 0.0
        %2692 = vmatpush2.msra.mxu0 0.0
        %2693 = vmatprep.subr.mxu0 0.0
        %2694 = vmatpush2.msra.mxu0 0.0
        %2695 = vmatprep.mubr.f32.mxu0 0.0
        %2696 = vmatmul.mubr.f32.gmra.mxu0 %v2629
        %v2697 = vpop.f32.mrf.mxu0
        %v2698 = vadd.f32 0.0, %v2697
        %v2699 = vpop.f32.mrf.mxu0
        %2700 = vdwg.mxu0
        %v2701 = vadd.f32 %v2612, %v2698
        %v2702 = vld [vmem:[#allocation8] sm:$0xff]
        %v2703 = vld [vmem:[#allocation8 + $0x8] sm:$0xff]
        %v2704 = vld [vmem:[#allocation8 + $0x10] sm:$0xff]
        %v2705 = vld [vmem:[#allocation8 + $0x18] sm:$0xff]
        %v2706 = vld [vmem:[#allocation8 + $0x20] sm:$0xff]
        %v2707 = vld [vmem:[#allocation8 + $0x28] sm:$0xff]
        %v2708 = vld [vmem:[#allocation8 + $0x30] sm:$0xff]
        %v2709 = vld [vmem:[#allocation8 + $0x38] sm:$0xff]
        %v2710 = vld [vmem:[#allocation8 + $0x40] sm:$0xff]
        %v2711 = vld [vmem:[#allocation8 + $0x48] sm:$0xff]
        %v2712 = vld [vmem:[#allocation8 + $0x50] sm:$0xff]
        %v2713 = vld [vmem:[#allocation8 + $0x58] sm:$0xff]
        %v2714 = vld [vmem:[#allocation8 + $0x60] sm:$0xff]
        %v2715 = vld [vmem:[#allocation8 + $0x68] sm:$0xff]
        %v2716 = vld [vmem:[#allocation8 + $0x70] sm:$0xff]
        %v2717 = vld [vmem:[#allocation8 + $0x78] sm:$0xff]
        %v2718 = vrot.slane %v2081, 7
        %2720 = vmatprep.subr.mxu0 0.0
        %2721 = vmatpush1.msra.mxu0 %v2717
        %2722 = vmatprep.subr.mxu0 0.0
        %2723 = vmatpush1.msra.mxu0 %v2716
        %2724 = vmatprep.subr.mxu0 0.0
        %2725 = vmatpush1.msra.mxu0 %v2715
        %2726 = vmatprep.subr.mxu0 0.0
        %2727 = vmatpush1.msra.mxu0 %v2714
        %2728 = vmatprep.subr.mxu0 0.0
        %2729 = vmatpush1.msra.mxu0 %v2713
        %2730 = vmatprep.subr.mxu0 0.0
        %2731 = vmatpush1.msra.mxu0 %v2712
        %2732 = vmatprep.subr.mxu0 0.0
        %2733 = vmatpush1.msra.mxu0 %v2711
        %2734 = vmatprep.subr.mxu0 0.0
        %2735 = vmatpush1.msra.mxu0 %v2710
        %2736 = vmatprep.subr.mxu0 0.0
        %2737 = vmatpush1.msra.mxu0 %v2709
        %2738 = vmatprep.subr.mxu0 0.0
        %2739 = vmatpush1.msra.mxu0 %v2708
        %2740 = vmatprep.subr.mxu0 0.0
        %2741 = vmatpush1.msra.mxu0 %v2707
        %2742 = vmatprep.subr.mxu0 0.0
        %2743 = vmatpush1.msra.mxu0 %v2706
        %2744 = vmatprep.subr.mxu0 0.0
        %2745 = vmatpush1.msra.mxu0 %v2705
        %2746 = vmatprep.subr.mxu0 0.0
        %2747 = vmatpush1.msra.mxu0 %v2704
        %2748 = vmatprep.subr.mxu0 0.0
        %2749 = vmatpush1.msra.mxu0 %v2703
        %2750 = vmatprep.subr.mxu0 0.0
        %2751 = vmatpush1.msra.mxu0 %v2702
        %2752 = vmatprep.subr.mxu0 0.0
        %2753 = vmatpush2.msra.mxu0 0.0
        %2754 = vmatprep.subr.mxu0 0.0
        %2755 = vmatpush2.msra.mxu0 0.0
        %2756 = vmatprep.subr.mxu0 0.0
        %2757 = vmatpush2.msra.mxu0 0.0
        %2758 = vmatprep.subr.mxu0 0.0
        %2759 = vmatpush2.msra.mxu0 0.0
        %2760 = vmatprep.subr.mxu0 0.0
        %2761 = vmatpush2.msra.mxu0 0.0
        %2762 = vmatprep.subr.mxu0 0.0
        %2763 = vmatpush2.msra.mxu0 0.0
        %2764 = vmatprep.subr.mxu0 0.0
        %2765 = vmatpush2.msra.mxu0 0.0
        %2766 = vmatprep.subr.mxu0 0.0
        %2767 = vmatpush2.msra.mxu0 0.0
        %2768 = vmatprep.subr.mxu0 0.0
        %2769 = vmatpush2.msra.mxu0 0.0
        %2770 = vmatprep.subr.mxu0 0.0
        %2771 = vmatpush2.msra.mxu0 0.0
        %2772 = vmatprep.subr.mxu0 0.0
        %2773 = vmatpush2.msra.mxu0 0.0
        %2774 = vmatprep.subr.mxu0 0.0
        %2775 = vmatpush2.msra.mxu0 0.0
        %2776 = vmatprep.subr.mxu0 0.0
        %2777 = vmatpush2.msra.mxu0 0.0
        %2778 = vmatprep.subr.mxu0 0.0
        %2779 = vmatpush2.msra.mxu0 0.0
        %2780 = vmatprep.subr.mxu0 0.0
        %2781 = vmatpush2.msra.mxu0 0.0
        %2782 = vmatprep.subr.mxu0 0.0
        %2783 = vmatpush2.msra.mxu0 0.0
        %2784 = vmatprep.mubr.f32.mxu0 0.0
        %2785 = vmatmul.mubr.f32.gmra.mxu0 %v2718
        %v2786 = vpop.f32.mrf.mxu0
        %v2787 = vadd.f32 0.0, %v2786
        %v2788 = vpop.f32.mrf.mxu0
        %2789 = vdwg.mxu0
        %v2790 = vadd.f32 %v2701, %v2787
        %v2791 = vld [vmem:[#allocation2] sm:$0x1]
        %v2792 = vld [vmem:[#allocation9] sm:$0xff]
        %v2793 = vld [vmem:[#allocation9 + $0x8] sm:$0xff]
        %v2794 = vld [vmem:[#allocation9 + $0x10] sm:$0xff]
        %v2795 = vld [vmem:[#allocation9 + $0x18] sm:$0xff]
        %v2796 = vld [vmem:[#allocation9 + $0x20] sm:$0xff]
        %v2797 = vld [vmem:[#allocation9 + $0x28] sm:$0xff]
        %v2798 = vld [vmem:[#allocation9 + $0x30] sm:$0xff]
        %v2799 = vld [vmem:[#allocation9 + $0x38] sm:$0xff]
        %v2800 = vld [vmem:[#allocation9 + $0x40] sm:$0xff]
        %v2801 = vld [vmem:[#allocation9 + $0x48] sm:$0xff]
        %v2802 = vld [vmem:[#allocation9 + $0x50] sm:$0xff]
        %v2803 = vld [vmem:[#allocation9 + $0x58] sm:$0xff]
        %v2804 = vld [vmem:[#allocation9 + $0x60] sm:$0xff]
        %v2805 = vld [vmem:[#allocation9 + $0x68] sm:$0xff]
        %v2806 = vld [vmem:[#allocation9 + $0x70] sm:$0xff]
        %v2807 = vld [vmem:[#allocation9 + $0x78] sm:$0xff]
        %2808 = vmatprep.subr.mxu0 0.0
        %2809 = vmatpush1.msra.mxu0 %v2807
        %2810 = vmatprep.subr.mxu0 0.0
        %2811 = vmatpush1.msra.mxu0 %v2806
        %2812 = vmatprep.subr.mxu0 0.0
        %2813 = vmatpush1.msra.mxu0 %v2805
        %2814 = vmatprep.subr.mxu0 0.0
        %2815 = vmatpush1.msra.mxu0 %v2804
        %2816 = vmatprep.subr.mxu0 0.0
        %2817 = vmatpush1.msra.mxu0 %v2803
        %2818 = vmatprep.subr.mxu0 0.0
        %2819 = vmatpush1.msra.mxu0 %v2802
        %2820 = vmatprep.subr.mxu0 0.0
        %2821 = vmatpush1.msra.mxu0 %v2801
        %2822 = vmatprep.subr.mxu0 0.0
        %2823 = vmatpush1.msra.mxu0 %v2800
        %2824 = vmatprep.subr.mxu0 0.0
        %2825 = vmatpush1.msra.mxu0 %v2799
        %2826 = vmatprep.subr.mxu0 0.0
        %2827 = vmatpush1.msra.mxu0 %v2798
        %2828 = vmatprep.subr.mxu0 0.0
        %2829 = vmatpush1.msra.mxu0 %v2797
        %2830 = vmatprep.subr.mxu0 0.0
        %2831 = vmatpush1.msra.mxu0 %v2796
        %2832 = vmatprep.subr.mxu0 0.0
        %2833 = vmatpush1.msra.mxu0 %v2795
        %2834 = vmatprep.subr.mxu0 0.0
        %2835 = vmatpush1.msra.mxu0 %v2794
        %2836 = vmatprep.subr.mxu0 0.0
        %2837 = vmatpush1.msra.mxu0 %v2793
        %2838 = vmatprep.subr.mxu0 0.0
        %2839 = vmatpush1.msra.mxu0 %v2792
        %2840 = vmatprep.subr.mxu0 0.0
        %2841 = vmatpush2.msra.mxu0 0.0
        %2842 = vmatprep.subr.mxu0 0.0
        %2843 = vmatpush2.msra.mxu0 0.0
        %2844 = vmatprep.subr.mxu0 0.0
        %2845 = vmatpush2.msra.mxu0 0.0
        %2846 = vmatprep.subr.mxu0 0.0
        %2847 = vmatpush2.msra.mxu0 0.0
        %2848 = vmatprep.subr.mxu0 0.0
        %2849 = vmatpush2.msra.mxu0 0.0
        %2850 = vmatprep.subr.mxu0 0.0
        %2851 = vmatpush2.msra.mxu0 0.0
        %2852 = vmatprep.subr.mxu0 0.0
        %2853 = vmatpush2.msra.mxu0 0.0
        %2854 = vmatprep.subr.mxu0 0.0
        %2855 = vmatpush2.msra.mxu0 0.0
        %2856 = vmatprep.subr.mxu0 0.0
        %2857 = vmatpush2.msra.mxu0 0.0
        %2858 = vmatprep.subr.mxu0 0.0
        %2859 = vmatpush2.msra.mxu0 0.0
        %2860 = vmatprep.subr.mxu0 0.0
        %2861 = vmatpush2.msra.mxu0 0.0
        %2862 = vmatprep.subr.mxu0 0.0
        %2863 = vmatpush2.msra.mxu0 0.0
        %2864 = vmatprep.subr.mxu0 0.0
        %2865 = vmatpush2.msra.mxu0 0.0
        %2866 = vmatprep.subr.mxu0 0.0
        %2867 = vmatpush2.msra.mxu0 0.0
        %2868 = vmatprep.subr.mxu0 0.0
        %2869 = vmatpush2.msra.mxu0 0.0
        %2870 = vmatprep.subr.mxu0 0.0
        %2871 = vmatpush2.msra.mxu0 0.0
        %2872 = vmatprep.mubr.f32.mxu0 0.0
        %2873 = vmatmul.mubr.f32.gmra.mxu0 %v2791
        %v2874 = vpop.f32.mrf.mxu0
        %v2875 = vadd.f32 %v2790, %v2874
        %v2876 = vpop.f32.mrf.mxu0
        %2877 = vdwg.mxu0
        %2878 = vst [vmem:[#allocation2] sm:$0x1] %v2875
        %v2879 = vld [vmem:[%s6] sm:$0xff]
        %v2880 = vld [vmem:[%s6 + $0x8] sm:$0xff]
        %v2881 = vld [vmem:[%s6 + $0x10] sm:$0xff]
        %v2882 = vld [vmem:[%s6 + $0x18] sm:$0xff]
        %v2883 = vld [vmem:[%s6 + $0x20] sm:$0xff]
        %v2884 = vld [vmem:[%s6 + $0x28] sm:$0xff]
        %v2885 = vld [vmem:[%s6 + $0x30] sm:$0xff]
        %v2886 = vld [vmem:[%s6 + $0x38] sm:$0xff]
        %v2887 = vld [vmem:[%s6 + $0x40] sm:$0xff]
        %v2888 = vld [vmem:[%s6 + $0x48] sm:$0xff]
        %v2889 = vld [vmem:[%s6 + $0x50] sm:$0xff]
        %v2890 = vld [vmem:[%s6 + $0x58] sm:$0xff]
        %v2891 = vld [vmem:[%s6 + $0x60] sm:$0xff]
        %v2892 = vld [vmem:[%s6 + $0x68] sm:$0xff]
        %v2893 = vld [vmem:[%s6 + $0x70] sm:$0xff]
        %v2894 = vld [vmem:[%s6 + $0x78] sm:$0xff]
        %v2895 = vld [vmem:[%s7] sm:$0x1]
        %2896 = vmatprep.subr.mxu0 0.0
        %2897 = vmatpush1.msra.mxu0 %v2894
        %2898 = vmatprep.subr.mxu0 0.0
        %2899 = vmatpush1.msra.mxu0 %v2893
        %2900 = vmatprep.subr.mxu0 0.0
        %2901 = vmatpush1.msra.mxu0 %v2892
        %2902 = vmatprep.subr.mxu0 0.0
        %2903 = vmatpush1.msra.mxu0 %v2891
        %2904 = vmatprep.subr.mxu0 0.0
        %2905 = vmatpush1.msra.mxu0 %v2890
        %2906 = vmatprep.subr.mxu0 0.0
        %2907 = vmatpush1.msra.mxu0 %v2889
        %2908 = vmatprep.subr.mxu0 0.0
        %2909 = vmatpush1.msra.mxu0 %v2888
        %2910 = vmatprep.subr.mxu0 0.0
        %2911 = vmatpush1.msra.mxu0 %v2887
        %2912 = vmatprep.subr.mxu0 0.0
        %2913 = vmatpush1.msra.mxu0 %v2886
        %2914 = vmatprep.subr.mxu0 0.0
        %2915 = vmatpush1.msra.mxu0 %v2885
        %2916 = vmatprep.subr.mxu0 0.0
        %2917 = vmatpush1.msra.mxu0 %v2884
        %2918 = vmatprep.subr.mxu0 0.0
        %2919 = vmatpush1.msra.mxu0 %v2883
        %2920 = vmatprep.subr.mxu0 0.0
        %2921 = vmatpush1.msra.mxu0 %v2882
        %2922 = vmatprep.subr.mxu0 0.0
        %2923 = vmatpush1.msra.mxu0 %v2881
        %2924 = vmatprep.subr.mxu0 0.0
        %2925 = vmatpush1.msra.mxu0 %v2880
        %2926 = vmatprep.subr.mxu0 0.0
        %2927 = vmatpush1.msra.mxu0 %v2879
        %2928 = vmatprep.subr.mxu0 0.0
        %2929 = vmatpush2.msra.mxu0 0.0
        %2930 = vmatprep.subr.mxu0 0.0
        %2931 = vmatpush2.msra.mxu0 0.0
        %2932 = vmatprep.subr.mxu0 0.0
        %2933 = vmatpush2.msra.mxu0 0.0
        %2934 = vmatprep.subr.mxu0 0.0
        %2935 = vmatpush2.msra.mxu0 0.0
        %2936 = vmatprep.subr.mxu0 0.0
        %2937 = vmatpush2.msra.mxu0 0.0
        %2938 = vmatprep.subr.mxu0 0.0
        %2939 = vmatpush2.msra.mxu0 0.0
        %2940 = vmatprep.subr.mxu0 0.0
        %2941 = vmatpush2.msra.mxu0 0.0
        %2942 = vmatprep.subr.mxu0 0.0
        %2943 = vmatpush2.msra.mxu0 0.0
        %2944 = vmatprep.subr.mxu0 0.0
        %2945 = vmatpush2.msra.mxu0 0.0
        %2946 = vmatprep.subr.mxu0 0.0
        %2947 = vmatpush2.msra.mxu0 0.0
        %2948 = vmatprep.subr.mxu0 0.0
        %2949 = vmatpush2.msra.mxu0 0.0
        %2950 = vmatprep.subr.mxu0 0.0
        %2951 = vmatpush2.msra.mxu0 0.0
        %2952 = vmatprep.subr.mxu0 0.0
        %2953 = vmatpush2.msra.mxu0 0.0
        %2954 = vmatprep.subr.mxu0 0.0
        %2955 = vmatpush2.msra.mxu0 0.0
        %2956 = vmatprep.subr.mxu0 0.0
        %2957 = vmatpush2.msra.mxu0 0.0
        %2958 = vmatprep.subr.mxu0 0.0
        %2959 = vmatpush2.msra.mxu0 0.0
        %2960 = vmatprep.mubr.f32.mxu0 0.0
        %2961 = vmatmul.mubr.f32.gmra.mxu0 %v2875
        %v2962 = vpop.f32.mrf.mxu0
        %v2963 = vadd.f32 %v2895, %v2962
        %v2964 = vpop.f32.mrf.mxu0
        %2965 = vdwg.mxu0
        %vm2966 = vcmask 8192
        %2967 = vst.msk [vmem:[#allocation11] sm:$0x1] %vm2966, %v2963
        // Predicated region
        $region73: #{tpu_custom_call.1} parent=51 // pred_check
          %p2968 = pneg %p211
        $region74: #{tpu_custom_call.1} parent=51 // pred_check_branch
          %2970 = sbr.rel (%p2968) target = $region76
        $region75: #{tpu_custom_call.1} parent=51 // pred_region
          %s2972 = ssub.s32 16, 16
          %2973 = vsyncadd [#allocation5], %s2972
          %s2975 = sshll.u32 [#allocation11], 4
          %s2976 = int_to_ptr.vmem [resolvable:$true] %s2975
          %2978 = dma.vmem_to_hbm [thread:$0]  %s2976, 16, %s8, [#allocation5]
        $region76: #{tpu_custom_call.1} parent=51 // pred_fallthru
          _
        // Predicated region
        $region77: #{tpu_custom_call.1} parent=51 // pred_check
          %p2979 = pneg %p211
        $region78: #{tpu_custom_call.1} parent=51 // pred_check_branch
          %2981 = sbr.rel (%p2979) target = $region80
        $region79: #{tpu_custom_call.1} parent=51 // pred_region
          %2982 = dma.done [#allocation5], 16
        $region80: #{tpu_custom_call.1} parent=51 // pred_fallthru
          _
      $region52: #{tpu_custom_call.1} parent=5 // pred_fallthru
        _
      %p2983 = scmp.le.s32.totalorder 2, %s20
      // Predicated region
      $region81: #{tpu_custom_call.1} parent=5 // pred_check
        %p2984 = pneg %p2983
      $region82: #{tpu_custom_call.1} parent=5 // pred_check_branch
        %2986 = sbr.rel (%p2984) target = $region84
      $region83: #{tpu_custom_call.1} parent=5 // pred_region
        %s2987 = ssub.s32 %s20, 2
      $region84: #{tpu_custom_call.1} parent=5 // pred_fallthru
        _
    $region6: #{tpu_custom_call.1} parent=1 // loop_footer
      %s24 = sadd.s32 1, %s20
    $region7: #{tpu_custom_call.1} parent=1 // loop_footer_branch
      %19 = sbr.rel target = $region3
    $region8: #{tpu_custom_call.1} parent=1 // loop_exit
      _
    %2988 = vsyncpa [#allocation4], 1
    %s2989 = scalar_lea.sflag [#allocation4], 1
    %2990 = vsyncpa %s2989, 1
    %2991 = vsyncpa [#allocation7], 1
    %2992 = vsyncpa [#allocation10], 1
    %2993 = vsyncpa [#allocation5], 1
    %s2994 = scalar_lea.sflag [#allocation5], 1
    %2995 = vsyncpa %s2994, 1

</llo_original>
